<compile_context>
chip_gen: v7x
topology: tpu7x:2x2x1
jax: 0.10.0
libtpu: 0.0.40
codegen_flags: <defaults>
</compile_context>

<pallas_src>
import functools

import jax
import jax.numpy as jnp
import numpy as np
from jax.experimental import pallas as pl
from jax.experimental.pallas import tpu as pltpu

BN_EPS = 1e-5
LANE = 128


# ----------------------------------------------------------------------------
# small helpers / VMEM budgeting
# ----------------------------------------------------------------------------
def _round_up(x, m):
    return (x + m - 1) // m * m


def _vmem_capacity_bytes():
    try:
        return int(pltpu.get_tpu_info().vmem_capacity_bytes)
    except Exception:
        return 64 * 1024 * 1024                      # conservative: v7x per-TC


_VMEM_CAP = _vmem_capacity_bytes()
# Scoped-VMEM request per pallas_call: generous on v5e/v6e (128 MiB physical),
# honest on v7x (64 MiB per TensorCore).
_VMEM_LIMIT = int(min(0.70 * _VMEM_CAP, 96 * 1024 * 1024))
# Budget for deciding fused-vs-tiled and for sizing M tiles.
_FUSED_BUDGET = int(0.45 * _VMEM_LIMIT)


def _fused_footprint(m, k, cp, out_bytes, has_res):
    """Per-grid-step VMEM bytes of the fully fused conv+BN(+res) kernel."""
    blk = (m * k * 2              # patches tile (bf16)
           + k * cp * 2           # weights (bf16)
           + 3 * cp * 4           # gamma / beta / relu-mask
           + m * cp * out_bytes   # output tile
           + (m * cp * 2 if has_res else 0))
    acc = 3 * m * cp * 4          # f32 accumulator + live temporaries
    return 2 * blk + acc          # x2: double-buffered pipeline


def _pick_tile_m(m, k, cp, has_res):
    """Largest 8-aligned M tile whose tiled-path footprint fits the budget."""
    tile = min(_round_up(m, 8), 2048)

    def footprint(t):
        blk = (t * k * 2 + k * cp * 2 + t * cp * 2
               + (t * cp * 2 if has_res else 0) + 6 * cp * 4)
        return 2 * blk + 2 * t * cp * 4

    while tile > 8 and footprint(tile) > _FUSED_BUDGET:
        tile = max(8, _round_up(tile // 2, 8))
    return tile


# ----------------------------------------------------------------------------
# Pallas kernels
# ----------------------------------------------------------------------------
def _fused_conv_bn_kernel(*refs, m_valid, eps, res_scale, has_res):
    """Fully fused conv (matmul) + BN(batch stats) + per-channel ReLU
    (+ optional residual scale-add + outer ReLU) for one group entry.

    Blocks carry a leading group dim of 1:
      p_ref (1,M,K) bf16, w_ref (1,K,Cp) bf16, gamma/beta/mask (1,1,Cp) f32,
      [res (1,M,Cp) bf16], o_ref (1,M,Cp) out_dtype.
    M is the exact (unpadded) row count, so batch statistics are exact.
    """
    if has_res:
        p_ref, w_ref, g_ref, b_ref, msk_ref, r_ref, o_ref = refs
    else:
        p_ref, w_ref, g_ref, b_ref, msk_ref, o_ref = refs

    acc = jnp.dot(p_ref[0], w_ref[0], preferred_element_type=jnp.float32)
    inv_m = 1.0 / m_valid
    mean = jnp.sum(acc, axis=0, keepdims=True) * inv_m           # (1, Cp)
    cent = acc - mean
    var = jnp.sum(cent * cent, axis=0, keepdims=True) * inv_m    # centered var
    scale = g_ref[0] * jax.lax.rsqrt(var + eps)
    y = cent * scale + b_ref[0]
    y = jnp.where(msk_ref[0] > 0.5, jnp.maximum(y, 0.0), y)
    if has_res:
        y = jnp.maximum(y * res_scale + r_ref[0].astype(jnp.float32), 0.0)
    o_ref[0] = y.astype(o_ref.dtype)


def _conv_stats_kernel(p_ref, w_ref, o_ref, s1_ref, s2_ref):
    """Tiled pass 1: conv tile (bf16 out) + BN statistics accumulated in
    resident output blocks (constant block index across the M grid)."""
    @pl.when(pl.program_id(0) == 0)
    def _():
        s1_ref[...] = jnp.zeros_like(s1_ref)
        s2_ref[...] = jnp.zeros_like(s2_ref)

    acc = jnp.dot(p_ref[...], w_ref[...], preferred_element_type=jnp.float32)
    o_ref[...] = acc.astype(o_ref.dtype)
    s1_ref[...] += jnp.sum(acc, axis=0, keepdims=True)
    s2_ref[...] += jnp.sum(acc * acc, axis=0, keepdims=True)


def _bn_apply_kernel(*refs, m_valid, eps, res_scale, has_res):
    """Tiled pass 2: fold BN from the accumulated stats, per-channel ReLU,
    optional residual scale-add + outer ReLU.  All BN math in-kernel."""
    if has_res:
        y_ref, s1_ref, s2_ref, g_ref, b_ref, msk_ref, r_ref, o_ref = refs
    else:
        y_ref, s1_ref, s2_ref, g_ref, b_ref, msk_ref, o_ref = refs

    inv_m = 1.0 / m_valid
    mean = s1_ref[...] * inv_m
    var = jnp.maximum(s2_ref[...] * inv_m - mean * mean, 0.0)
    scale = g_ref[...] * jax.lax.rsqrt(var + eps)
    shift = b_ref[...] - mean * scale
    y = y_ref[...].astype(jnp.float32) * scale + shift
    y = jnp.where(msk_ref[...] > 0.5, jnp.maximum(y, 0.0), y)
    if has_res:
        y = jnp.maximum(y * res_scale + r_ref[...].astype(jnp.float32), 0.0)
    o_ref[...] = y.astype(o_ref.dtype)


# ----------------------------------------------------------------------------
# im2col (wrapper-side layout; 1x1 convs are a pure reshape)
# ----------------------------------------------------------------------------
def _im2col(x, kh, kw, stride, padding, dilation):
    n, h, w, cin = x.shape
    ph, pw = padding
    if kh == 1 and kw == 1 and ph == 0 and pw == 0:
        xs = x[:, ::stride, ::stride, :]
        n_, ho, wo, _ = xs.shape
        return xs.reshape(n_ * ho * wo, cin), (n_, ho, wo)

    xp = jnp.pad(x, ((0, 0), (ph, ph), (pw, pw), (0, 0)))
    hp, wp = h + 2 * ph, w + 2 * pw
    ho = (hp - dilation * (kh - 1) - 1) // stride + 1
    wo = (wp - dilation * (kw - 1) - 1) // stride + 1
    m = n * ho * wo
    taps = []
    for i in range(kh):
        for j in range(kw):
            sl = xp[:,
                    i * dilation: i * dilation + (ho - 1) * stride + 1: stride,
                    j * dilation: j * dilation + (wo - 1) * stride + 1: stride,
                    :]
            taps.append(sl.reshape(m, cin))
    return jnp.concatenate(taps, axis=-1), (n, ho, wo)


def _conv_entry(x, w, gamma, beta, relu_vec, *, stride, padding, dilation):
    """Pack one BasicConv into bf16 patches / weights with Cout padded to a
    multiple of 128 (lane-dense output stores, full MXU columns)."""
    kh, kw, cin, cout = w.shape
    patches, (n, ho, wo) = _im2col(x.astype(jnp.bfloat16), kh, kw, stride,
                                   padding, dilation)
    k = kh * kw * cin
    cp = _round_up(cout, LANE)
    pad_c = cp - cout
    w2 = jnp.pad(w.reshape(k, cout).astype(jnp.bfloat16), ((0, 0), (0, pad_c)))
    g2 = jnp.pad(gamma.astype(jnp.float32), (0, pad_c)).reshape(1, cp)
    b2 = jnp.pad(beta.astype(jnp.float32), (0, pad_c)).reshape(1, cp)
    r2 = jnp.pad(relu_vec.astype(jnp.float32), (0, pad_c)).reshape(1, cp)
    return dict(patches=patches, w=w2, gamma=g2, beta=b2, mask=r2,
                m=int(patches.shape[0]), k=k, cout=cout, cp=cp,
                shape=(n, ho, wo))


# ----------------------------------------------------------------------------
# runners
# ----------------------------------------------------------------------------
def _fused_group(patches, w, gamma, beta, mask, residual, *, m_valid,
                 res_scale, out_dtype):
    """One pallas_call over a group of conv+BN entries (grid over the group,
    'parallel' so v7x can shard the group across TensorCores)."""
    g, m, k = patches.shape
    cp = w.shape[-1]
    has_res = residual is not None

    in_specs = [pl.BlockSpec((1, m, k), lambda i: (i, 0, 0)),
                pl.BlockSpec((1, k, cp), lambda i: (i, 0, 0)),
                pl.BlockSpec((1, 1, cp), lambda i: (i, 0, 0)),
                pl.BlockSpec((1, 1, cp), lambda i: (i, 0, 0)),
                pl.BlockSpec((1, 1, cp), lambda i: (i, 0, 0))]
    args = [patches, w, gamma, beta, mask]
    if has_res:
        in_specs.append(pl.BlockSpec((1, m, cp), lambda i: (i, 0, 0)))
        args.append(residual)

    return pl.pallas_call(
        functools.partial(_fused_conv_bn_kernel, m_valid=m_valid, eps=BN_EPS,
                          res_scale=res_scale, has_res=has_res),
        out_shape=jax.ShapeDtypeStruct((g, m, cp), out_dtype),
        grid=(g,),
        in_specs=in_specs,
        out_specs=pl.BlockSpec((1, m, cp), lambda i: (i, 0, 0)),
        compiler_params=pltpu.CompilerParams(
            dimension_semantics=("parallel",),
            vmem_limit_bytes=_VMEM_LIMIT),
    )(*args)


def _tiled_conv_bn(patches, w, gamma, beta, mask, residual, *, m_valid,
                   res_scale, out_dtype, tile_m):
    m_pad, k = patches.shape
    cp = w.shape[-1]
    n_tiles = m_pad // tile_m
    has_res = residual is not None

    # Pass 1: conv tiles (bf16) + stats accumulated in resident output blocks.
    conv_out, s1, s2 = pl.pallas_call(
        _conv_stats_kernel,
        out_shape=(jax.ShapeDtypeStruct((m_pad, cp), jnp.bfloat16),
                   jax.ShapeDtypeStruct((1, cp), jnp.float32),
                   jax.ShapeDtypeStruct((1, cp), jnp.float32)),
        grid=(n_tiles,),
        in_specs=[pl.BlockSpec((tile_m, k), lambda i: (i, 0)),
                  pl.BlockSpec((k, cp), lambda i: (0, 0))],
        out_specs=(pl.BlockSpec((tile_m, cp), lambda i: (i, 0)),
                   pl.BlockSpec((1, cp), lambda i: (0, 0)),
                   pl.BlockSpec((1, cp), lambda i: (0, 0))),
        compiler_params=pltpu.CompilerParams(
            dimension_semantics=("arbitrary",),
            vmem_limit_bytes=_VMEM_LIMIT),
    )(patches, w)

    # Pass 2: fold BN + ReLU (+ residual) from the stats, all in-kernel.
    in_specs = [pl.BlockSpec((tile_m, cp), lambda i: (i, 0)),
                pl.BlockSpec((1, cp), lambda i: (0, 0)),
                pl.BlockSpec((1, cp), lambda i: (0, 0)),
                pl.BlockSpec((1, cp), lambda i: (0, 0)),
                pl.BlockSpec((1, cp), lambda i: (0, 0)),
                pl.BlockSpec((1, cp), lambda i: (0, 0))]
    args = [conv_out, s1, s2, gamma, beta, mask]
    if has_res:
        in_specs.append(pl.BlockSpec((tile_m, cp), lambda i: (i, 0)))
        args.append(residual)

    return pl.pallas_call(
        functools.partial(_bn_apply_kernel, m_valid=m_valid, eps=BN_EPS,
                          res_scale=res_scale, has_res=has_res),
        out_shape=jax.ShapeDtypeStruct((m_pad, cp), out_dtype),
        grid=(n_tiles,),
        in_specs=in_specs,
        out_specs=pl.BlockSpec((tile_m, cp), lambda i: (i, 0)),
        compiler_params=pltpu.CompilerParams(
            dimension_semantics=("parallel",),
            vmem_limit_bytes=_VMEM_LIMIT),
    )(*args)


def _tiled_single(e, residual, res_scale, out_dtype, force_tile_m=None):
    m, k, cp = e["m"], e["k"], e["cp"]
    has_res = residual is not None
    tile_m = force_tile_m if force_tile_m is not None else _pick_tile_m(
        m, k, cp, has_res)
    m_pad = _round_up(m, tile_m)
    patches = e["patches"]
    if m_pad != m:
        patches = jnp.pad(patches, ((0, m_pad - m), (0, 0)))
    res = None
    if has_res:
        res = residual if m_pad == m else jnp.pad(residual,
                                                  ((0, m_pad - m), (0, 0)))
    y = _tiled_conv_bn(patches, e["w"], e["gamma"], e["beta"], e["mask"], res,
                       m_valid=m, res_scale=res_scale, out_dtype=out_dtype,
                       tile_m=tile_m)
    return y[:m]


def run_entries(entries, residual=None, res_scale=0.0,
                out_dtype=jnp.bfloat16):
    """Run a group of conv+BN(+ReLU) entries with identical (M, K, Cp).
    Fused single pallas_call when it fits VMEM; per-entry tiled pipeline
    otherwise.  Returns a list of (M, Cp) arrays (padded channels)."""
    g = len(entries)
    e0 = entries[0]
    m, k, cp = e0["m"], e0["k"], e0["cp"]
    for e in entries:
        assert (e["m"], e["k"], e["cp"]) == (m, k, cp)
    has_res = residual is not None
    assert not (has_res and g > 1)

    out_bytes = jnp.dtype(out_dtype).itemsize
    if _fused_footprint(m, k, cp, out_bytes, has_res) <= _FUSED_BUDGET:
        patches = jnp.stack([e["patches"] for e in entries])
        w = jnp.stack([e["w"] for e in entries])
        gamma = jnp.stack([e["gamma"] for e in entries])
        beta = jnp.stack([e["beta"] for e in entries])
        mask = jnp.stack([e["mask"] for e in entries])
        res = residual[None] if has_res else None
        y = _fused_group(patches, w, gamma, beta, mask, res, m_valid=m,
                         res_scale=res_scale, out_dtype=out_dtype)
        return [y[i] for i in range(g)]

    return [_tiled_single(e, residual if has_res else None, res_scale,
                          out_dtype) for e in entries]


# ----------------------------------------------------------------------------
# static configs (never traced) and array params (jit-traced)
# ----------------------------------------------------------------------------
def _cfg(stride=1, padding=(0, 0), dilation=1, relu=True):
    return dict(stride=stride, padding=padding, dilation=dilation, relu=relu)


def make_basic_rfb_a_configs(stride=1):
    return dict(
        branch0=[_cfg(), _cfg(padding=(1, 1), relu=False)],
        branch1=[_cfg(), _cfg(padding=(1, 0)),
                 _cfg(padding=(3, 3), dilation=3, relu=False)],
        branch2=[_cfg(), _cfg(stride=stride, padding=(0, 1)),
                 _cfg(padding=(3, 3), dilation=3, relu=False)],
        branch3=[_cfg(), _cfg(padding=(0, 1)),
                 _cfg(stride=stride, padding=(1, 0)),
                 _cfg(padding=(5, 5), dilation=5, relu=False)],
        conv_linear=_cfg(relu=False),
        shortcut=_cfg(stride=stride, relu=False),
    )


def init_basic_rfb_a_params(key, in_planes, out_planes):
    ip = in_planes // 4
    keys = iter(jax.random.split(key, 14))

    def mk(cin, cout, kh, kw):
        w = jax.random.normal(next(keys), (kh, kw, cin, cout), jnp.float32)
        w = w / np.sqrt(kh * kw * cin)
        return dict(w=w,
                    gamma=jnp.ones((cout,), jnp.float32),
                    beta=jnp.zeros((cout,), jnp.float32))

    return dict(
        branch0=[mk(in_planes, ip, 1, 1), mk(ip, ip, 3, 3)],
        branch1=[mk(in_planes, ip, 1, 1), mk(ip, ip, 3, 1), mk(ip, ip, 3, 3)],
        branch2=[mk(in_planes, ip, 1, 1), mk(ip, ip, 1, 3), mk(ip, ip, 3, 3)],
        branch3=[mk(in_planes, ip // 2, 1, 1),
                 mk(ip // 2, (ip // 4) * 3, 1, 3),
                 mk((ip // 4) * 3, ip, 3, 1),
                 mk(ip, ip, 3, 3)],
        conv_linear=mk(4 * ip, out_planes, 1, 1),
        shortcut=mk(in_planes, out_planes, 1, 1),
    )


# ----------------------------------------------------------------------------
# BasicRFB_a forward
# ----------------------------------------------------------------------------
def make_forward(configs, scale=0.1):
    def relu_vec(cout, flag):
        return jnp.full((cout,), 1.0 if flag else 0.0, jnp.float32)

    def entry(x, p, cfg):
        cout = p["w"].shape[-1]
        return _conv_entry(x, p["w"], p["gamma"], p["beta"],
                           relu_vec(cout, cfg["relu"]),
                           stride=cfg["stride"], padding=cfg["padding"],
                           dilation=cfg["dilation"])

    def single(x, p, cfg, out_dtype=jnp.bfloat16):
        e = entry(x, p, cfg)
        y = run_entries([e], out_dtype=out_dtype)[0]
        n, ho, wo = e["shape"]
        return y[:, :e["cout"]].reshape(n, ho, wo, e["cout"])

    def maybe_group(entries):
        key0 = (entries[0]["m"], entries[0]["k"], entries[0]["cp"])
        if all((e["m"], e["k"], e["cp"]) == key0 for e in entries):
            return run_entries(entries)
        return [run_entries([e])[0] for e in entries]

    def forward(params, x):
        x = x.astype(jnp.bfloat16)   # bf16 activations end-to-end (cast once)

        # --- fused 1x1 head: 4 branch heads (+ shortcut when stride==1) -----
        head_pc = [(params[b][0], configs[b][0])
                   for b in ("branch0", "branch1", "branch2", "branch3")]
        fuse_short = configs["shortcut"]["stride"] == 1
        if fuse_short:
            head_pc.append((params["shortcut"], configs["shortcut"]))
        w_cat = jnp.concatenate([p["w"] for p, _ in head_pc], axis=-1)
        g_cat = jnp.concatenate([p["gamma"] for p, _ in head_pc])
        b_cat = jnp.concatenate([p["beta"] for p, _ in head_pc])
        r_cat = jnp.concatenate([relu_vec(p["w"].shape[-1], c["relu"])
                                 for p, c in head_pc])
        e_head = _conv_entry(x, w_cat, g_cat, b_cat, r_cat,
                             stride=1, padding=(0, 0), dilation=1)
        y_head = run_entries([e_head])[0]                  # (M, Cp) bf16
        n, ho, wo = e_head["shape"]
        outs, off = [], 0
        for p, _ in head_pc:
            co = p["w"].shape[-1]
            outs.append(y_head[:, off:off + co].reshape(n, ho, wo, co))
            off += co
        if fuse_short:
            h0, h1, h2, h3, short = outs
        else:
            h0, h1, h2, h3 = outs
            short = single(x, params["shortcut"], configs["shortcut"])

        # --- branch middles: (3,1) & (1,3) convs batched into one call ------
        e1 = entry(h1, params["branch1"][1], configs["branch1"][1])
        e2 = entry(h2, params["branch2"][1], configs["branch2"][1])
        y1, y2 = maybe_group([e1, e2])
        m1 = y1[:, :e1["cout"]].reshape(*e1["shape"], e1["cout"])
        m2 = y2[:, :e2["cout"]].reshape(*e2["shape"], e2["cout"])
        # branch3 middles (distinct shapes -> individual calls)
        m3 = single(h3, params["branch3"][1], configs["branch3"][1])
        m3 = single(m3, params["branch3"][2], configs["branch3"][2])

        # --- final 3x3 convs of the four branches batched into one call -----
        fin = [entry(h0, params["branch0"][1], configs["branch0"][1]),
               entry(m1, params["branch1"][2], configs["branch1"][2]),
               entry(m2, params["branch2"][2], configs["branch2"][2]),
               entry(m3, params["branch3"][3], configs["branch3"][3])]
        ys = maybe_group(fin)
        xs = [yy[:, :f["cout"]].reshape(*f["shape"], f["cout"])
              for yy, f in zip(ys, fin)]

        # --- ConvLinear with the residual + final ReLU fused in-kernel ------
        cat = jnp.concatenate(xs, axis=-1)                 # NHWC channel cat
        e_lin = entry(cat, params["conv_linear"], configs["conv_linear"])
        res = short.reshape(-1, short.shape[-1]).astype(jnp.bfloat16)
        res = jnp.pad(res, ((0, 0), (0, e_lin["cp"] - res.shape[-1])))
        y = run_entries([e_lin], residual=res, res_scale=scale,
                        out_dtype=jnp.float32)[0]
        n2, ho2, wo2 = e_lin["shape"]
        return y[:, :e_lin["cout"]].reshape(n2, ho2, wo2, e_lin["cout"])

    return forward


# ----------------------------------------------------------------------------
# pure-JAX (f32, XLA conv) reference of the same train-mode forward
# ----------------------------------------------------------------------------
def _ref_basic_conv(x, p, cfg):
    y = jax.lax.conv_general_dilated(
        x, p["w"],
        window_strides=(cfg["stride"], cfg["stride"]),
        padding=((cfg["padding"][0], cfg["padding"][0]),
                 (cfg["padding"][1], cfg["padding"][1])),
        rhs_dilation=(cfg["dilation"], cfg["dilation"]),
        dimension_numbers=("NHWC", "HWIO", "NHWC"))
    mean = jnp.mean(y, axis=(0, 1, 2))
    var = jnp.mean(jnp.square(y - mean), axis=(0, 1, 2))
    y = (y - mean) * jax.lax.rsqrt(var + BN_EPS) * p["gamma"] + p["beta"]
    return jnp.maximum(y, 0.0) if cfg["relu"] else y


def _ref_forward(params, x, configs, scale):
    def seq(name):
        h = x
        for p, c in zip(params[name], configs[name]):
            h = _ref_basic_conv(h, p, c)
        return h

    out = jnp.concatenate([seq("branch0"), seq("branch1"),
                           seq("branch2"), seq("branch3")], axis=-1)
    out = _ref_basic_conv(out, params["conv_linear"], configs["conv_linear"])
    short = _ref_basic_conv(x, params["shortcut"], configs["shortcut"])
    return jnp.maximum(out * scale + short, 0.0)


# ----------------------------------------------------------------------------
if __name__ == "__main__":
    # Small shapes consistent with the module: in_planes=16 -> inter_planes=4.
    N, H, W, IN_PLANES, OUT_PLANES = 2, 8, 8, 16, 16

    key = jax.random.PRNGKey(0)
    k_params, k_x = jax.random.split(key, 2)

    configs = make_basic_rfb_a_configs(stride=1)      # static (never traced)
    params = init_basic_rfb_a_params(k_params, IN_PLANES, OUT_PLANES)

    # layout: NHWC (PyTorch-equivalent NCHW shape would be (2, 16, 8, 8))
    x = jax.random.normal(k_x, (N, H, W, IN_PLANES), jnp.float32)

    fwd = jax.jit(make_forward(configs, scale=0.1))
    out = fwd(params, x)
    jax.block_until_ready(out)

    assert out.shape == (N, H, W, OUT_PLANES), out.shape
    assert out.dtype == jnp.float32
    assert bool(jnp.all(out >= 0.0))                  # final ReLU
    assert bool(jnp.all(jnp.isfinite(out)))

    # Cross-check vs. a pure-JAX f32 reference (bf16 kernel path -> loose tol).
    ref = jax.jit(lambda p, a: _ref_forward(p, a, configs, 0.1))(params, x)
    jax.block_until_ready(ref)
    max_err = float(jnp.max(jnp.abs(out - ref)))
    assert max_err < 0.1, f"max |pallas - ref| = {max_err}"

    # Cross-check: fused single-call path vs. tiled two-pass (cross-tile BN
    # stats accumulated in-kernel) path on one 3x3 conv layer.
    xt = jax.random.normal(jax.random.PRNGKey(1), (1, 16, 16, 8), jnp.float32)
    wt = jax.random.normal(jax.random.PRNGKey(2), (3, 3, 8, 8),
                           jnp.float32) / np.sqrt(72.0)
    gt = jnp.ones((8,), jnp.float32)
    bt = jnp.zeros((8,), jnp.float32)
    rv = jnp.ones((8,), jnp.float32)

    def one_layer(force_tile_m):
        def f(a, ww, gg, bb):
            e = _conv_entry(a, ww, gg, bb, rv, stride=1, padding=(1, 1),
                            dilation=1)
            if force_tile_m is None:
                y = run_entries([e], out_dtype=jnp.float32)[0]
            else:
                y = _tiled_single(e, None, 0.0, jnp.float32,
                                  force_tile_m=force_tile_m)
            return y[:, :e["cout"]]
        return jax.jit(f)

    y_fused = one_layer(None)(xt, wt, gt, bt)
    y_tiled = one_layer(64)(xt, wt, gt, bt)
    jax.block_until_ready((y_fused, y_tiled))
    np.testing.assert_allclose(np.asarray(y_fused), np.asarray(y_tiled),
                               rtol=2e-2, atol=3e-2)

    print("KERNEL_OK")
</pallas_src>

<mosaic_0001>
module attributes {stable_mosaic.version = 11 : i64} {
  func.func @_fused_conv_bn_kernel(%arg0: i32, %arg1: memref<1x128x16xbf16, #tpu.memory_space<vmem>>, %arg2: memref<1x16x128xbf16, #tpu.memory_space<vmem>>, %arg3: memref<1x1x128xf32, #tpu.memory_space<vmem>>, %arg4: memref<1x1x128xf32, #tpu.memory_space<vmem>>, %arg5: memref<1x1x128xf32, #tpu.memory_space<vmem>>, %arg6: memref<1x128x128xbf16, #tpu.memory_space<vmem>>) attributes {dimension_semantics = [#tpu.dimension_semantics<parallel>], iteration_bounds = array<i64: 1>, scalar_prefetch = 0 : i64, scratch_operands = 0 : i64, tpu.core_type = #tpu.core_type<tc>, window_params = [{transform_indices = @transform_0, window_bounds = array<i64: 1, 128, 16>}, {transform_indices = @transform_1, window_bounds = array<i64: 1, 16, 128>}, {transform_indices = @transform_2, window_bounds = array<i64: 1, 1, 128>}, {transform_indices = @transform_3, window_bounds = array<i64: 1, 1, 128>}, {transform_indices = @transform_4, window_bounds = array<i64: 1, 1, 128>}, {transform_indices = @transform_5, window_bounds = array<i64: 1, 128, 128>}]} {
    %c0 = arith.constant 0 : index
    %c0_0 = arith.constant 0 : index
    %c0_1 = arith.constant 0 : index
    %0 = vector.load %arg1[%c0, %c0_0, %c0_1] : memref<1x128x16xbf16, #tpu.memory_space<vmem>>, vector<1x128x16xbf16>
    %1 = vector.shape_cast %0 : vector<1x128x16xbf16> to vector<128x16xbf16>
    %c0_2 = arith.constant 0 : index
    %c0_3 = arith.constant 0 : index
    %c0_4 = arith.constant 0 : index
    %2 = vector.load %arg2[%c0_2, %c0_3, %c0_4] : memref<1x16x128xbf16, #tpu.memory_space<vmem>>, vector<1x16x128xbf16>
    %3 = vector.shape_cast %2 : vector<1x16x128xbf16> to vector<16x128xbf16>
    %cst = arith.constant dense<0.000000e+00> : vector<128x128xf32>
    %4 = tpu.matmul %1, %3, %cst {dimension_numbers = #tpu.dot_dimension_numbers<[1], [0], [0], [1], [0, 0, 1, 1], [], []>} : vector<128x16xbf16>, vector<16x128xbf16>, vector<128x128xf32> -> vector<128x128xf32>
    %cst_5 = arith.constant dense<0.000000e+00> : vector<128xf32>
    %5 = vector.multi_reduction <add>, %4, %cst_5 [0] : vector<128x128xf32> to vector<128xf32>
    %6 = vector.shape_cast %5 : vector<128xf32> to vector<1x128xf32>
    %cst_6 = arith.constant 7.812500e-03 : f32
    %7 = vector.broadcast %cst_6 : f32 to vector<1x128xf32>
    %8 = arith.mulf %6, %7 : vector<1x128xf32>
    %9 = vector.broadcast %8 : vector<1x128xf32> to vector<128x128xf32>
    %10 = arith.subf %4, %9 : vector<128x128xf32>
    %11 = arith.mulf %10, %10 : vector<128x128xf32>
    %cst_7 = arith.constant dense<0.000000e+00> : vector<128xf32>
    %12 = vector.multi_reduction <add>, %11, %cst_7 [0] : vector<128x128xf32> to vector<128xf32>
    %13 = vector.shape_cast %12 : vector<128xf32> to vector<1x128xf32>
    %cst_8 = arith.constant 7.812500e-03 : f32
    %14 = vector.broadcast %cst_8 : f32 to vector<1x128xf32>
    %15 = arith.mulf %13, %14 : vector<1x128xf32>
    %c0_9 = arith.constant 0 : index
    %c0_10 = arith.constant 0 : index
    %c0_11 = arith.constant 0 : index
    %16 = vector.load %arg3[%c0_9, %c0_10, %c0_11] : memref<1x1x128xf32, #tpu.memory_space<vmem>>, vector<1x1x128xf32>
    %17 = vector.shape_cast %16 : vector<1x1x128xf32> to vector<1x128xf32>
    %cst_12 = arith.constant 9.99999974E-6 : f32
    %18 = vector.broadcast %cst_12 : f32 to vector<1x128xf32>
    %19 = arith.addf %15, %18 : vector<1x128xf32>
    %20 = math.rsqrt %19 : vector<1x128xf32>
    %21 = arith.mulf %17, %20 : vector<1x128xf32>
    %22 = vector.broadcast %21 : vector<1x128xf32> to vector<128x128xf32>
    %23 = arith.mulf %10, %22 : vector<128x128xf32>
    %c0_13 = arith.constant 0 : index
    %c0_14 = arith.constant 0 : index
    %c0_15 = arith.constant 0 : index
    %24 = vector.load %arg4[%c0_13, %c0_14, %c0_15] : memref<1x1x128xf32, #tpu.memory_space<vmem>>, vector<1x1x128xf32>
    %25 = vector.shape_cast %24 : vector<1x1x128xf32> to vector<1x128xf32>
    %26 = vector.broadcast %25 : vector<1x128xf32> to vector<128x128xf32>
    %27 = arith.addf %23, %26 : vector<128x128xf32>
    %c0_16 = arith.constant 0 : index
    %c0_17 = arith.constant 0 : index
    %c0_18 = arith.constant 0 : index
    %28 = vector.load %arg5[%c0_16, %c0_17, %c0_18] : memref<1x1x128xf32, #tpu.memory_space<vmem>>, vector<1x1x128xf32>
    %29 = vector.shape_cast %28 : vector<1x1x128xf32> to vector<1x128xf32>
    %cst_19 = arith.constant 5.000000e-01 : f32
    %30 = vector.broadcast %cst_19 : f32 to vector<1x128xf32>
    %31 = arith.cmpf ogt, %29, %30 : vector<1x128xf32>
    %cst_20 = arith.constant 0.000000e+00 : f32
    %32 = vector.broadcast %cst_20 : f32 to vector<128x128xf32>
    %33 = arith.maximumf %27, %32 : vector<128x128xf32>
    %34 = vector.shape_cast %31 : vector<1x128xi1> to vector<1x128xi1>
    %35 = vector.broadcast %34 : vector<1x128xi1> to vector<128x128xi1>
    %36 = arith.select %35, %33, %27 : vector<128x128xi1>, vector<128x128xf32>
    %37 = arith.truncf %36 : vector<128x128xf32> to vector<128x128xbf16>
    %c0_21 = arith.constant 0 : index
    %c0_22 = arith.constant 0 : index
    %c0_23 = arith.constant 0 : index
    %38 = vector.load %arg6[%c0_21, %c0_22, %c0_23] : memref<1x128x128xbf16, #tpu.memory_space<vmem>>, vector<1x128x128xbf16>
    %39 = vector.shape_cast %38 : vector<1x128x128xbf16> to vector<128x128xbf16>
    %40 = vector.shape_cast %37 : vector<128x128xbf16> to vector<1x128x128xbf16>
    tpu.vector_store %arg6[%c0_21, %c0_22, %c0_23], %40 {strides = array<i32>} : memref<1x128x128xbf16, #tpu.memory_space<vmem>>, vector<1x128x128xbf16>,
    return
  }
  func.func @transform_0(%arg0: i32) -> (i32, i32, i32) {
    %c0_i32 = arith.constant 0 : i32
    %c0_i32_0 = arith.constant 0 : i32
    %c0_i32_1 = arith.constant 0 : i32
    return %arg0, %c0_i32, %c0_i32_0 : i32, i32, i32
  }
  func.func @transform_1(%arg0: i32) -> (i32, i32, i32) {
    %c0_i32 = arith.constant 0 : i32
    %c0_i32_0 = arith.constant 0 : i32
    %c0_i32_1 = arith.constant 0 : i32
    return %arg0, %c0_i32, %c0_i32_0 : i32, i32, i32
  }
  func.func @transform_2(%arg0: i32) -> (i32, i32, i32) {
    %c0_i32 = arith.constant 0 : i32
    %c0_i32_0 = arith.constant 0 : i32
    %c0_i32_1 = arith.constant 0 : i32
    return %arg0, %c0_i32, %c0_i32_0 : i32, i32, i32
  }
  func.func @transform_3(%arg0: i32) -> (i32, i32, i32) {
    %c0_i32 = arith.constant 0 : i32
    %c0_i32_0 = arith.constant 0 : i32
    %c0_i32_1 = arith.constant 0 : i32
    return %arg0, %c0_i32, %c0_i32_0 : i32, i32, i32
  }
  func.func @transform_4(%arg0: i32) -> (i32, i32, i32) {
    %c0_i32 = arith.constant 0 : i32
    %c0_i32_0 = arith.constant 0 : i32
    %c0_i32_1 = arith.constant 0 : i32
    return %arg0, %c0_i32, %c0_i32_0 : i32, i32, i32
  }
  func.func @transform_5(%arg0: i32) -> (i32, i32, i32) {
    %c0_i32 = arith.constant 0 : i32
    %c0_i32_0 = arith.constant 0 : i32
    %c0_i32_1 = arith.constant 0 : i32
    return %arg0, %c0_i32, %c0_i32_0 : i32, i32, i32
  }
}

module attributes {stable_mosaic.version = 11 : i64} {
  func.func @_fused_conv_bn_kernel(%arg0: i32, %arg1: memref<1x128x12xbf16, #tpu.memory_space<vmem>>, %arg2: memref<1x12x128xbf16, #tpu.memory_space<vmem>>, %arg3: memref<1x1x128xf32, #tpu.memory_space<vmem>>, %arg4: memref<1x1x128xf32, #tpu.memory_space<vmem>>, %arg5: memref<1x1x128xf32, #tpu.memory_space<vmem>>, %arg6: memref<1x128x128xbf16, #tpu.memory_space<vmem>>) attributes {dimension_semantics = [#tpu.dimension_semantics<parallel>], iteration_bounds = array<i64: 2>, scalar_prefetch = 0 : i64, scratch_operands = 0 : i64, tpu.core_type = #tpu.core_type<tc>, window_params = [{transform_indices = @transform_0, window_bounds = array<i64: 1, 128, 12>}, {transform_indices = @transform_1, window_bounds = array<i64: 1, 12, 128>}, {transform_indices = @transform_2, window_bounds = array<i64: 1, 1, 128>}, {transform_indices = @transform_3, window_bounds = array<i64: 1, 1, 128>}, {transform_indices = @transform_4, window_bounds = array<i64: 1, 1, 128>}, {transform_indices = @transform_5, window_bounds = array<i64: 1, 128, 128>}]} {
    %c0 = arith.constant 0 : index
    %c0_0 = arith.constant 0 : index
    %c0_1 = arith.constant 0 : index
    %0 = vector.load %arg1[%c0, %c0_0, %c0_1] : memref<1x128x12xbf16, #tpu.memory_space<vmem>>, vector<1x128x12xbf16>
    %1 = vector.shape_cast %0 : vector<1x128x12xbf16> to vector<128x12xbf16>
    %c0_2 = arith.constant 0 : index
    %c0_3 = arith.constant 0 : index
    %c0_4 = arith.constant 0 : index
    %2 = vector.load %arg2[%c0_2, %c0_3, %c0_4] : memref<1x12x128xbf16, #tpu.memory_space<vmem>>, vector<1x12x128xbf16>
    %3 = vector.shape_cast %2 : vector<1x12x128xbf16> to vector<12x128xbf16>
    %cst = arith.constant dense<0.000000e+00> : vector<128x128xf32>
    %4 = tpu.matmul %1, %3, %cst {dimension_numbers = #tpu.dot_dimension_numbers<[1], [0], [0], [1], [0, 0, 1, 1], [], []>} : vector<128x12xbf16>, vector<12x128xbf16>, vector<128x128xf32> -> vector<128x128xf32>
    %cst_5 = arith.constant dense<0.000000e+00> : vector<128xf32>
    %5 = vector.multi_reduction <add>, %4, %cst_5 [0] : vector<128x128xf32> to vector<128xf32>
    %6 = vector.shape_cast %5 : vector<128xf32> to vector<1x128xf32>
    %cst_6 = arith.constant 7.812500e-03 : f32
    %7 = vector.broadcast %cst_6 : f32 to vector<1x128xf32>
    %8 = arith.mulf %6, %7 : vector<1x128xf32>
    %9 = vector.broadcast %8 : vector<1x128xf32> to vector<128x128xf32>
    %10 = arith.subf %4, %9 : vector<128x128xf32>
    %11 = arith.mulf %10, %10 : vector<128x128xf32>
    %cst_7 = arith.constant dense<0.000000e+00> : vector<128xf32>
    %12 = vector.multi_reduction <add>, %11, %cst_7 [0] : vector<128x128xf32> to vector<128xf32>
    %13 = vector.shape_cast %12 : vector<128xf32> to vector<1x128xf32>
    %cst_8 = arith.constant 7.812500e-03 : f32
    %14 = vector.broadcast %cst_8 : f32 to vector<1x128xf32>
    %15 = arith.mulf %13, %14 : vector<1x128xf32>
    %c0_9 = arith.constant 0 : index
    %c0_10 = arith.constant 0 : index
    %c0_11 = arith.constant 0 : index
    %16 = vector.load %arg3[%c0_9, %c0_10, %c0_11] : memref<1x1x128xf32, #tpu.memory_space<vmem>>, vector<1x1x128xf32>
    %17 = vector.shape_cast %16 : vector<1x1x128xf32> to vector<1x128xf32>
    %cst_12 = arith.constant 9.99999974E-6 : f32
    %18 = vector.broadcast %cst_12 : f32 to vector<1x128xf32>
    %19 = arith.addf %15, %18 : vector<1x128xf32>
    %20 = math.rsqrt %19 : vector<1x128xf32>
    %21 = arith.mulf %17, %20 : vector<1x128xf32>
    %22 = vector.broadcast %21 : vector<1x128xf32> to vector<128x128xf32>
    %23 = arith.mulf %10, %22 : vector<128x128xf32>
    %c0_13 = arith.constant 0 : index
    %c0_14 = arith.constant 0 : index
    %c0_15 = arith.constant 0 : index
    %24 = vector.load %arg4[%c0_13, %c0_14, %c0_15] : memref<1x1x128xf32, #tpu.memory_space<vmem>>, vector<1x1x128xf32>
    %25 = vector.shape_cast %24 : vector<1x1x128xf32> to vector<1x128xf32>
    %26 = vector.broadcast %25 : vector<1x128xf32> to vector<128x128xf32>
    %27 = arith.addf %23, %26 : vector<128x128xf32>
    %c0_16 = arith.constant 0 : index
    %c0_17 = arith.constant 0 : index
    %c0_18 = arith.constant 0 : index
    %28 = vector.load %arg5[%c0_16, %c0_17, %c0_18] : memref<1x1x128xf32, #tpu.memory_space<vmem>>, vector<1x1x128xf32>
    %29 = vector.shape_cast %28 : vector<1x1x128xf32> to vector<1x128xf32>
    %cst_19 = arith.constant 5.000000e-01 : f32
    %30 = vector.broadcast %cst_19 : f32 to vector<1x128xf32>
    %31 = arith.cmpf ogt, %29, %30 : vector<1x128xf32>
    %cst_20 = arith.constant 0.000000e+00 : f32
    %32 = vector.broadcast %cst_20 : f32 to vector<128x128xf32>
    %33 = arith.maximumf %27, %32 : vector<128x128xf32>
    %34 = vector.shape_cast %31 : vector<1x128xi1> to vector<1x128xi1>
    %35 = vector.broadcast %34 : vector<1x128xi1> to vector<128x128xi1>
    %36 = arith.select %35, %33, %27 : vector<128x128xi1>, vector<128x128xf32>
    %37 = arith.truncf %36 : vector<128x128xf32> to vector<128x128xbf16>
    %c0_21 = arith.constant 0 : index
    %c0_22 = arith.constant 0 : index
    %c0_23 = arith.constant 0 : index
    %38 = vector.load %arg6[%c0_21, %c0_22, %c0_23] : memref<1x128x128xbf16, #tpu.memory_space<vmem>>, vector<1x128x128xbf16>
    %39 = vector.shape_cast %38 : vector<1x128x128xbf16> to vector<128x128xbf16>
    %40 = vector.shape_cast %37 : vector<128x128xbf16> to vector<1x128x128xbf16>
    tpu.vector_store %arg6[%c0_21, %c0_22, %c0_23], %40 {strides = array<i32>} : memref<1x128x128xbf16, #tpu.memory_space<vmem>>, vector<1x128x128xbf16>,
    return
  }
  func.func @transform_0(%arg0: i32) -> (i32, i32, i32) {
    %c0_i32 = arith.constant 0 : i32
    %c0_i32_0 = arith.constant 0 : i32
    %c0_i32_1 = arith.constant 0 : i32
    return %arg0, %c0_i32, %c0_i32_0 : i32, i32, i32
  }
  func.func @transform_1(%arg0: i32) -> (i32, i32, i32) {
    %c0_i32 = arith.constant 0 : i32
    %c0_i32_0 = arith.constant 0 : i32
    %c0_i32_1 = arith.constant 0 : i32
    return %arg0, %c0_i32, %c0_i32_0 : i32, i32, i32
  }
  func.func @transform_2(%arg0: i32) -> (i32, i32, i32) {
    %c0_i32 = arith.constant 0 : i32
    %c0_i32_0 = arith.constant 0 : i32
    %c0_i32_1 = arith.constant 0 : i32
    return %arg0, %c0_i32, %c0_i32_0 : i32, i32, i32
  }
  func.func @transform_3(%arg0: i32) -> (i32, i32, i32) {
    %c0_i32 = arith.constant 0 : i32
    %c0_i32_0 = arith.constant 0 : i32
    %c0_i32_1 = arith.constant 0 : i32
    return %arg0, %c0_i32, %c0_i32_0 : i32, i32, i32
  }
  func.func @transform_4(%arg0: i32) -> (i32, i32, i32) {
    %c0_i32 = arith.constant 0 : i32
    %c0_i32_0 = arith.constant 0 : i32
    %c0_i32_1 = arith.constant 0 : i32
    return %arg0, %c0_i32, %c0_i32_0 : i32, i32, i32
  }
  func.func @transform_5(%arg0: i32) -> (i32, i32, i32) {
    %c0_i32 = arith.constant 0 : i32
    %c0_i32_0 = arith.constant 0 : i32
    %c0_i32_1 = arith.constant 0 : i32
    return %arg0, %c0_i32, %c0_i32_0 : i32, i32, i32
  }
}

module attributes {stable_mosaic.version = 11 : i64} {
  func.func @_fused_conv_bn_kernel(%arg0: i32, %arg1: memref<1x128x6xbf16, #tpu.memory_space<vmem>>, %arg2: memref<1x6x128xbf16, #tpu.memory_space<vmem>>, %arg3: memref<1x1x128xf32, #tpu.memory_space<vmem>>, %arg4: memref<1x1x128xf32, #tpu.memory_space<vmem>>, %arg5: memref<1x1x128xf32, #tpu.memory_space<vmem>>, %arg6: memref<1x128x128xbf16, #tpu.memory_space<vmem>>) attributes {dimension_semantics = [#tpu.dimension_semantics<parallel>], iteration_bounds = array<i64: 1>, scalar_prefetch = 0 : i64, scratch_operands = 0 : i64, tpu.core_type = #tpu.core_type<tc>, window_params = [{transform_indices = @transform_0, window_bounds = array<i64: 1, 128, 6>}, {transform_indices = @transform_1, window_bounds = array<i64: 1, 6, 128>}, {transform_indices = @transform_2, window_bounds = array<i64: 1, 1, 128>}, {transform_indices = @transform_3, window_bounds = array<i64: 1, 1, 128>}, {transform_indices = @transform_4, window_bounds = array<i64: 1, 1, 128>}, {transform_indices = @transform_5, window_bounds = array<i64: 1, 128, 128>}]} {
    %c0 = arith.constant 0 : index
    %c0_0 = arith.constant 0 : index
    %c0_1 = arith.constant 0 : index
    %0 = vector.load %arg1[%c0, %c0_0, %c0_1] : memref<1x128x6xbf16, #tpu.memory_space<vmem>>, vector<1x128x6xbf16>
    %1 = vector.shape_cast %0 : vector<1x128x6xbf16> to vector<128x6xbf16>
    %c0_2 = arith.constant 0 : index
    %c0_3 = arith.constant 0 : index
    %c0_4 = arith.constant 0 : index
    %2 = vector.load %arg2[%c0_2, %c0_3, %c0_4] : memref<1x6x128xbf16, #tpu.memory_space<vmem>>, vector<1x6x128xbf16>
    %3 = vector.shape_cast %2 : vector<1x6x128xbf16> to vector<6x128xbf16>
    %cst = arith.constant dense<0.000000e+00> : vector<128x128xf32>
    %4 = tpu.matmul %1, %3, %cst {dimension_numbers = #tpu.dot_dimension_numbers<[1], [0], [0], [1], [0, 0, 1, 1], [], []>} : vector<128x6xbf16>, vector<6x128xbf16>, vector<128x128xf32> -> vector<128x128xf32>
    %cst_5 = arith.constant dense<0.000000e+00> : vector<128xf32>
    %5 = vector.multi_reduction <add>, %4, %cst_5 [0] : vector<128x128xf32> to vector<128xf32>
    %6 = vector.shape_cast %5 : vector<128xf32> to vector<1x128xf32>
    %cst_6 = arith.constant 7.812500e-03 : f32
    %7 = vector.broadcast %cst_6 : f32 to vector<1x128xf32>
    %8 = arith.mulf %6, %7 : vector<1x128xf32>
    %9 = vector.broadcast %8 : vector<1x128xf32> to vector<128x128xf32>
    %10 = arith.subf %4, %9 : vector<128x128xf32>
    %11 = arith.mulf %10, %10 : vector<128x128xf32>
    %cst_7 = arith.constant dense<0.000000e+00> : vector<128xf32>
    %12 = vector.multi_reduction <add>, %11, %cst_7 [0] : vector<128x128xf32> to vector<128xf32>
    %13 = vector.shape_cast %12 : vector<128xf32> to vector<1x128xf32>
    %cst_8 = arith.constant 7.812500e-03 : f32
    %14 = vector.broadcast %cst_8 : f32 to vector<1x128xf32>
    %15 = arith.mulf %13, %14 : vector<1x128xf32>
    %c0_9 = arith.constant 0 : index
    %c0_10 = arith.constant 0 : index
    %c0_11 = arith.constant 0 : index
    %16 = vector.load %arg3[%c0_9, %c0_10, %c0_11] : memref<1x1x128xf32, #tpu.memory_space<vmem>>, vector<1x1x128xf32>
    %17 = vector.shape_cast %16 : vector<1x1x128xf32> to vector<1x128xf32>
    %cst_12 = arith.constant 9.99999974E-6 : f32
    %18 = vector.broadcast %cst_12 : f32 to vector<1x128xf32>
    %19 = arith.addf %15, %18 : vector<1x128xf32>
    %20 = math.rsqrt %19 : vector<1x128xf32>
    %21 = arith.mulf %17, %20 : vector<1x128xf32>
    %22 = vector.broadcast %21 : vector<1x128xf32> to vector<128x128xf32>
    %23 = arith.mulf %10, %22 : vector<128x128xf32>
    %c0_13 = arith.constant 0 : index
    %c0_14 = arith.constant 0 : index
    %c0_15 = arith.constant 0 : index
    %24 = vector.load %arg4[%c0_13, %c0_14, %c0_15] : memref<1x1x128xf32, #tpu.memory_space<vmem>>, vector<1x1x128xf32>
    %25 = vector.shape_cast %24 : vector<1x1x128xf32> to vector<1x128xf32>
    %26 = vector.broadcast %25 : vector<1x128xf32> to vector<128x128xf32>
    %27 = arith.addf %23, %26 : vector<128x128xf32>
    %c0_16 = arith.constant 0 : index
    %c0_17 = arith.constant 0 : index
    %c0_18 = arith.constant 0 : index
    %28 = vector.load %arg5[%c0_16, %c0_17, %c0_18] : memref<1x1x128xf32, #tpu.memory_space<vmem>>, vector<1x1x128xf32>
    %29 = vector.shape_cast %28 : vector<1x1x128xf32> to vector<1x128xf32>
    %cst_19 = arith.constant 5.000000e-01 : f32
    %30 = vector.broadcast %cst_19 : f32 to vector<1x128xf32>
    %31 = arith.cmpf ogt, %29, %30 : vector<1x128xf32>
    %cst_20 = arith.constant 0.000000e+00 : f32
    %32 = vector.broadcast %cst_20 : f32 to vector<128x128xf32>
    %33 = arith.maximumf %27, %32 : vector<128x128xf32>
    %34 = vector.shape_cast %31 : vector<1x128xi1> to vector<1x128xi1>
    %35 = vector.broadcast %34 : vector<1x128xi1> to vector<128x128xi1>
    %36 = arith.select %35, %33, %27 : vector<128x128xi1>, vector<128x128xf32>
    %37 = arith.truncf %36 : vector<128x128xf32> to vector<128x128xbf16>
    %c0_21 = arith.constant 0 : index
    %c0_22 = arith.constant 0 : index
    %c0_23 = arith.constant 0 : index
    %38 = vector.load %arg6[%c0_21, %c0_22, %c0_23] : memref<1x128x128xbf16, #tpu.memory_space<vmem>>, vector<1x128x128xbf16>
    %39 = vector.shape_cast %38 : vector<1x128x128xbf16> to vector<128x128xbf16>
    %40 = vector.shape_cast %37 : vector<128x128xbf16> to vector<1x128x128xbf16>
    tpu.vector_store %arg6[%c0_21, %c0_22, %c0_23], %40 {strides = array<i32>} : memref<1x128x128xbf16, #tpu.memory_space<vmem>>, vector<1x128x128xbf16>,
    return
  }
  func.func @transform_0(%arg0: i32) -> (i32, i32, i32) {
    %c0_i32 = arith.constant 0 : i32
    %c0_i32_0 = arith.constant 0 : i32
    %c0_i32_1 = arith.constant 0 : i32
    return %arg0, %c0_i32, %c0_i32_0 : i32, i32, i32
  }
  func.func @transform_1(%arg0: i32) -> (i32, i32, i32) {
    %c0_i32 = arith.constant 0 : i32
    %c0_i32_0 = arith.constant 0 : i32
    %c0_i32_1 = arith.constant 0 : i32
    return %arg0, %c0_i32, %c0_i32_0 : i32, i32, i32
  }
  func.func @transform_2(%arg0: i32) -> (i32, i32, i32) {
    %c0_i32 = arith.constant 0 : i32
    %c0_i32_0 = arith.constant 0 : i32
    %c0_i32_1 = arith.constant 0 : i32
    return %arg0, %c0_i32, %c0_i32_0 : i32, i32, i32
  }
  func.func @transform_3(%arg0: i32) -> (i32, i32, i32) {
    %c0_i32 = arith.constant 0 : i32
    %c0_i32_0 = arith.constant 0 : i32
    %c0_i32_1 = arith.constant 0 : i32
    return %arg0, %c0_i32, %c0_i32_0 : i32, i32, i32
  }
  func.func @transform_4(%arg0: i32) -> (i32, i32, i32) {
    %c0_i32 = arith.constant 0 : i32
    %c0_i32_0 = arith.constant 0 : i32
    %c0_i32_1 = arith.constant 0 : i32
    return %arg0, %c0_i32, %c0_i32_0 : i32, i32, i32
  }
  func.func @transform_5(%arg0: i32) -> (i32, i32, i32) {
    %c0_i32 = arith.constant 0 : i32
    %c0_i32_0 = arith.constant 0 : i32
    %c0_i32_1 = arith.constant 0 : i32
    return %arg0, %c0_i32, %c0_i32_0 : i32, i32, i32
  }
}

module attributes {stable_mosaic.version = 11 : i64} {
  func.func @_fused_conv_bn_kernel(%arg0: i32, %arg1: memref<1x128x9xbf16, #tpu.memory_space<vmem>>, %arg2: memref<1x9x128xbf16, #tpu.memory_space<vmem>>, %arg3: memref<1x1x128xf32, #tpu.memory_space<vmem>>, %arg4: memref<1x1x128xf32, #tpu.memory_space<vmem>>, %arg5: memref<1x1x128xf32, #tpu.memory_space<vmem>>, %arg6: memref<1x128x128xbf16, #tpu.memory_space<vmem>>) attributes {dimension_semantics = [#tpu.dimension_semantics<parallel>], iteration_bounds = array<i64: 1>, scalar_prefetch = 0 : i64, scratch_operands = 0 : i64, tpu.core_type = #tpu.core_type<tc>, window_params = [{transform_indices = @transform_0, window_bounds = array<i64: 1, 128, 9>}, {transform_indices = @transform_1, window_bounds = array<i64: 1, 9, 128>}, {transform_indices = @transform_2, window_bounds = array<i64: 1, 1, 128>}, {transform_indices = @transform_3, window_bounds = array<i64: 1, 1, 128>}, {transform_indices = @transform_4, window_bounds = array<i64: 1, 1, 128>}, {transform_indices = @transform_5, window_bounds = array<i64: 1, 128, 128>}]} {
    %c0 = arith.constant 0 : index
    %c0_0 = arith.constant 0 : index
    %c0_1 = arith.constant 0 : index
    %0 = vector.load %arg1[%c0, %c0_0, %c0_1] : memref<1x128x9xbf16, #tpu.memory_space<vmem>>, vector<1x128x9xbf16>
    %1 = vector.shape_cast %0 : vector<1x128x9xbf16> to vector<128x9xbf16>
    %c0_2 = arith.constant 0 : index
    %c0_3 = arith.constant 0 : index
    %c0_4 = arith.constant 0 : index
    %2 = vector.load %arg2[%c0_2, %c0_3, %c0_4] : memref<1x9x128xbf16, #tpu.memory_space<vmem>>, vector<1x9x128xbf16>
    %3 = vector.shape_cast %2 : vector<1x9x128xbf16> to vector<9x128xbf16>
    %cst = arith.constant dense<0.000000e+00> : vector<128x128xf32>
    %4 = tpu.matmul %1, %3, %cst {dimension_numbers = #tpu.dot_dimension_numbers<[1], [0], [0], [1], [0, 0, 1, 1], [], []>} : vector<128x9xbf16>, vector<9x128xbf16>, vector<128x128xf32> -> vector<128x128xf32>
    %cst_5 = arith.constant dense<0.000000e+00> : vector<128xf32>
    %5 = vector.multi_reduction <add>, %4, %cst_5 [0] : vector<128x128xf32> to vector<128xf32>
    %6 = vector.shape_cast %5 : vector<128xf32> to vector<1x128xf32>
    %cst_6 = arith.constant 7.812500e-03 : f32
    %7 = vector.broadcast %cst_6 : f32 to vector<1x128xf32>
    %8 = arith.mulf %6, %7 : vector<1x128xf32>
    %9 = vector.broadcast %8 : vector<1x128xf32> to vector<128x128xf32>
    %10 = arith.subf %4, %9 : vector<128x128xf32>
    %11 = arith.mulf %10, %10 : vector<128x128xf32>
    %cst_7 = arith.constant dense<0.000000e+00> : vector<128xf32>
    %12 = vector.multi_reduction <add>, %11, %cst_7 [0] : vector<128x128xf32> to vector<128xf32>
    %13 = vector.shape_cast %12 : vector<128xf32> to vector<1x128xf32>
    %cst_8 = arith.constant 7.812500e-03 : f32
    %14 = vector.broadcast %cst_8 : f32 to vector<1x128xf32>
    %15 = arith.mulf %13, %14 : vector<1x128xf32>
    %c0_9 = arith.constant 0 : index
    %c0_10 = arith.constant 0 : index
    %c0_11 = arith.constant 0 : index
    %16 = vector.load %arg3[%c0_9, %c0_10, %c0_11] : memref<1x1x128xf32, #tpu.memory_space<vmem>>, vector<1x1x128xf32>
    %17 = vector.shape_cast %16 : vector<1x1x128xf32> to vector<1x128xf32>
    %cst_12 = arith.constant 9.99999974E-6 : f32
    %18 = vector.broadcast %cst_12 : f32 to vector<1x128xf32>
    %19 = arith.addf %15, %18 : vector<1x128xf32>
    %20 = math.rsqrt %19 : vector<1x128xf32>
    %21 = arith.mulf %17, %20 : vector<1x128xf32>
    %22 = vector.broadcast %21 : vector<1x128xf32> to vector<128x128xf32>
    %23 = arith.mulf %10, %22 : vector<128x128xf32>
    %c0_13 = arith.constant 0 : index
    %c0_14 = arith.constant 0 : index
    %c0_15 = arith.constant 0 : index
    %24 = vector.load %arg4[%c0_13, %c0_14, %c0_15] : memref<1x1x128xf32, #tpu.memory_space<vmem>>, vector<1x1x128xf32>
    %25 = vector.shape_cast %24 : vector<1x1x128xf32> to vector<1x128xf32>
    %26 = vector.broadcast %25 : vector<1x128xf32> to vector<128x128xf32>
    %27 = arith.addf %23, %26 : vector<128x128xf32>
    %c0_16 = arith.constant 0 : index
    %c0_17 = arith.constant 0 : index
    %c0_18 = arith.constant 0 : index
    %28 = vector.load %arg5[%c0_16, %c0_17, %c0_18] : memref<1x1x128xf32, #tpu.memory_space<vmem>>, vector<1x1x128xf32>
    %29 = vector.shape_cast %28 : vector<1x1x128xf32> to vector<1x128xf32>
    %cst_19 = arith.constant 5.000000e-01 : f32
    %30 = vector.broadcast %cst_19 : f32 to vector<1x128xf32>
    %31 = arith.cmpf ogt, %29, %30 : vector<1x128xf32>
    %cst_20 = arith.constant 0.000000e+00 : f32
    %32 = vector.broadcast %cst_20 : f32 to vector<128x128xf32>
    %33 = arith.maximumf %27, %32 : vector<128x128xf32>
    %34 = vector.shape_cast %31 : vector<1x128xi1> to vector<1x128xi1>
    %35 = vector.broadcast %34 : vector<1x128xi1> to vector<128x128xi1>
    %36 = arith.select %35, %33, %27 : vector<128x128xi1>, vector<128x128xf32>
    %37 = arith.truncf %36 : vector<128x128xf32> to vector<128x128xbf16>
    %c0_21 = arith.constant 0 : index
    %c0_22 = arith.constant 0 : index
    %c0_23 = arith.constant 0 : index
    %38 = vector.load %arg6[%c0_21, %c0_22, %c0_23] : memref<1x128x128xbf16, #tpu.memory_space<vmem>>, vector<1x128x128xbf16>
    %39 = vector.shape_cast %38 : vector<1x128x128xbf16> to vector<128x128xbf16>
    %40 = vector.shape_cast %37 : vector<128x128xbf16> to vector<1x128x128xbf16>
    tpu.vector_store %arg6[%c0_21, %c0_22, %c0_23], %40 {strides = array<i32>} : memref<1x128x128xbf16, #tpu.memory_space<vmem>>, vector<1x128x128xbf16>,
    return
  }
  func.func @transform_0(%arg0: i32) -> (i32, i32, i32) {
    %c0_i32 = arith.constant 0 : i32
    %c0_i32_0 = arith.constant 0 : i32
    %c0_i32_1 = arith.constant 0 : i32
    return %arg0, %c0_i32, %c0_i32_0 : i32, i32, i32
  }
  func.func @transform_1(%arg0: i32) -> (i32, i32, i32) {
    %c0_i32 = arith.constant 0 : i32
    %c0_i32_0 = arith.constant 0 : i32
    %c0_i32_1 = arith.constant 0 : i32
    return %arg0, %c0_i32, %c0_i32_0 : i32, i32, i32
  }
  func.func @transform_2(%arg0: i32) -> (i32, i32, i32) {
    %c0_i32 = arith.constant 0 : i32
    %c0_i32_0 = arith.constant 0 : i32
    %c0_i32_1 = arith.constant 0 : i32
    return %arg0, %c0_i32, %c0_i32_0 : i32, i32, i32
  }
  func.func @transform_3(%arg0: i32) -> (i32, i32, i32) {
    %c0_i32 = arith.constant 0 : i32
    %c0_i32_0 = arith.constant 0 : i32
    %c0_i32_1 = arith.constant 0 : i32
    return %arg0, %c0_i32, %c0_i32_0 : i32, i32, i32
  }
  func.func @transform_4(%arg0: i32) -> (i32, i32, i32) {
    %c0_i32 = arith.constant 0 : i32
    %c0_i32_0 = arith.constant 0 : i32
    %c0_i32_1 = arith.constant 0 : i32
    return %arg0, %c0_i32, %c0_i32_0 : i32, i32, i32
  }
  func.func @transform_5(%arg0: i32) -> (i32, i32, i32) {
    %c0_i32 = arith.constant 0 : i32
    %c0_i32_0 = arith.constant 0 : i32
    %c0_i32_1 = arith.constant 0 : i32
    return %arg0, %c0_i32, %c0_i32_0 : i32, i32, i32
  }
}

module attributes {stable_mosaic.version = 11 : i64} {
  func.func @_fused_conv_bn_kernel(%arg0: i32, %arg1: memref<1x128x36xbf16, #tpu.memory_space<vmem>>, %arg2: memref<1x36x128xbf16, #tpu.memory_space<vmem>>, %arg3: memref<1x1x128xf32, #tpu.memory_space<vmem>>, %arg4: memref<1x1x128xf32, #tpu.memory_space<vmem>>, %arg5: memref<1x1x128xf32, #tpu.memory_space<vmem>>, %arg6: memref<1x128x128xbf16, #tpu.memory_space<vmem>>) attributes {dimension_semantics = [#tpu.dimension_semantics<parallel>], iteration_bounds = array<i64: 4>, scalar_prefetch = 0 : i64, scratch_operands = 0 : i64, tpu.core_type = #tpu.core_type<tc>, window_params = [{transform_indices = @transform_0, window_bounds = array<i64: 1, 128, 36>}, {transform_indices = @transform_1, window_bounds = array<i64: 1, 36, 128>}, {transform_indices = @transform_2, window_bounds = array<i64: 1, 1, 128>}, {transform_indices = @transform_3, window_bounds = array<i64: 1, 1, 128>}, {transform_indices = @transform_4, window_bounds = array<i64: 1, 1, 128>}, {transform_indices = @transform_5, window_bounds = array<i64: 1, 128, 128>}]} {
    %c0 = arith.constant 0 : index
    %c0_0 = arith.constant 0 : index
    %c0_1 = arith.constant 0 : index
    %0 = vector.load %arg1[%c0, %c0_0, %c0_1] : memref<1x128x36xbf16, #tpu.memory_space<vmem>>, vector<1x128x36xbf16>
    %1 = vector.shape_cast %0 : vector<1x128x36xbf16> to vector<128x36xbf16>
    %c0_2 = arith.constant 0 : index
    %c0_3 = arith.constant 0 : index
    %c0_4 = arith.constant 0 : index
    %2 = vector.load %arg2[%c0_2, %c0_3, %c0_4] : memref<1x36x128xbf16, #tpu.memory_space<vmem>>, vector<1x36x128xbf16>
    %3 = vector.shape_cast %2 : vector<1x36x128xbf16> to vector<36x128xbf16>
    %cst = arith.constant dense<0.000000e+00> : vector<128x128xf32>
    %4 = tpu.matmul %1, %3, %cst {dimension_numbers = #tpu.dot_dimension_numbers<[1], [0], [0], [1], [0, 0, 1, 1], [], []>} : vector<128x36xbf16>, vector<36x128xbf16>, vector<128x128xf32> -> vector<128x128xf32>
    %cst_5 = arith.constant dense<0.000000e+00> : vector<128xf32>
    %5 = vector.multi_reduction <add>, %4, %cst_5 [0] : vector<128x128xf32> to vector<128xf32>
    %6 = vector.shape_cast %5 : vector<128xf32> to vector<1x128xf32>
    %cst_6 = arith.constant 7.812500e-03 : f32
    %7 = vector.broadcast %cst_6 : f32 to vector<1x128xf32>
    %8 = arith.mulf %6, %7 : vector<1x128xf32>
    %9 = vector.broadcast %8 : vector<1x128xf32> to vector<128x128xf32>
    %10 = arith.subf %4, %9 : vector<128x128xf32>
    %11 = arith.mulf %10, %10 : vector<128x128xf32>
    %cst_7 = arith.constant dense<0.000000e+00> : vector<128xf32>
    %12 = vector.multi_reduction <add>, %11, %cst_7 [0] : vector<128x128xf32> to vector<128xf32>
    %13 = vector.shape_cast %12 : vector<128xf32> to vector<1x128xf32>
    %cst_8 = arith.constant 7.812500e-03 : f32
    %14 = vector.broadcast %cst_8 : f32 to vector<1x128xf32>
    %15 = arith.mulf %13, %14 : vector<1x128xf32>
    %c0_9 = arith.constant 0 : index
    %c0_10 = arith.constant 0 : index
    %c0_11 = arith.constant 0 : index
    %16 = vector.load %arg3[%c0_9, %c0_10, %c0_11] : memref<1x1x128xf32, #tpu.memory_space<vmem>>, vector<1x1x128xf32>
    %17 = vector.shape_cast %16 : vector<1x1x128xf32> to vector<1x128xf32>
    %cst_12 = arith.constant 9.99999974E-6 : f32
    %18 = vector.broadcast %cst_12 : f32 to vector<1x128xf32>
    %19 = arith.addf %15, %18 : vector<1x128xf32>
    %20 = math.rsqrt %19 : vector<1x128xf32>
    %21 = arith.mulf %17, %20 : vector<1x128xf32>
    %22 = vector.broadcast %21 : vector<1x128xf32> to vector<128x128xf32>
    %23 = arith.mulf %10, %22 : vector<128x128xf32>
    %c0_13 = arith.constant 0 : index
    %c0_14 = arith.constant 0 : index
    %c0_15 = arith.constant 0 : index
    %24 = vector.load %arg4[%c0_13, %c0_14, %c0_15] : memref<1x1x128xf32, #tpu.memory_space<vmem>>, vector<1x1x128xf32>
    %25 = vector.shape_cast %24 : vector<1x1x128xf32> to vector<1x128xf32>
    %26 = vector.broadcast %25 : vector<1x128xf32> to vector<128x128xf32>
    %27 = arith.addf %23, %26 : vector<128x128xf32>
    %c0_16 = arith.constant 0 : index
    %c0_17 = arith.constant 0 : index
    %c0_18 = arith.constant 0 : index
    %28 = vector.load %arg5[%c0_16, %c0_17, %c0_18] : memref<1x1x128xf32, #tpu.memory_space<vmem>>, vector<1x1x128xf32>
    %29 = vector.shape_cast %28 : vector<1x1x128xf32> to vector<1x128xf32>
    %cst_19 = arith.constant 5.000000e-01 : f32
    %30 = vector.broadcast %cst_19 : f32 to vector<1x128xf32>
    %31 = arith.cmpf ogt, %29, %30 : vector<1x128xf32>
    %cst_20 = arith.constant 0.000000e+00 : f32
    %32 = vector.broadcast %cst_20 : f32 to vector<128x128xf32>
    %33 = arith.maximumf %27, %32 : vector<128x128xf32>
    %34 = vector.shape_cast %31 : vector<1x128xi1> to vector<1x128xi1>
    %35 = vector.broadcast %34 : vector<1x128xi1> to vector<128x128xi1>
    %36 = arith.select %35, %33, %27 : vector<128x128xi1>, vector<128x128xf32>
    %37 = arith.truncf %36 : vector<128x128xf32> to vector<128x128xbf16>
    %c0_21 = arith.constant 0 : index
    %c0_22 = arith.constant 0 : index
    %c0_23 = arith.constant 0 : index
    %38 = vector.load %arg6[%c0_21, %c0_22, %c0_23] : memref<1x128x128xbf16, #tpu.memory_space<vmem>>, vector<1x128x128xbf16>
    %39 = vector.shape_cast %38 : vector<1x128x128xbf16> to vector<128x128xbf16>
    %40 = vector.shape_cast %37 : vector<128x128xbf16> to vector<1x128x128xbf16>
    tpu.vector_store %arg6[%c0_21, %c0_22, %c0_23], %40 {strides = array<i32>} : memref<1x128x128xbf16, #tpu.memory_space<vmem>>, vector<1x128x128xbf16>,
    return
  }
  func.func @transform_0(%arg0: i32) -> (i32, i32, i32) {
    %c0_i32 = arith.constant 0 : i32
    %c0_i32_0 = arith.constant 0 : i32
    %c0_i32_1 = arith.constant 0 : i32
    return %arg0, %c0_i32, %c0_i32_0 : i32, i32, i32
  }
  func.func @transform_1(%arg0: i32) -> (i32, i32, i32) {
    %c0_i32 = arith.constant 0 : i32
    %c0_i32_0 = arith.constant 0 : i32
    %c0_i32_1 = arith.constant 0 : i32
    return %arg0, %c0_i32, %c0_i32_0 : i32, i32, i32
  }
  func.func @transform_2(%arg0: i32) -> (i32, i32, i32) {
    %c0_i32 = arith.constant 0 : i32
    %c0_i32_0 = arith.constant 0 : i32
    %c0_i32_1 = arith.constant 0 : i32
    return %arg0, %c0_i32, %c0_i32_0 : i32, i32, i32
  }
  func.func @transform_3(%arg0: i32) -> (i32, i32, i32) {
    %c0_i32 = arith.constant 0 : i32
    %c0_i32_0 = arith.constant 0 : i32
    %c0_i32_1 = arith.constant 0 : i32
    return %arg0, %c0_i32, %c0_i32_0 : i32, i32, i32
  }
  func.func @transform_4(%arg0: i32) -> (i32, i32, i32) {
    %c0_i32 = arith.constant 0 : i32
    %c0_i32_0 = arith.constant 0 : i32
    %c0_i32_1 = arith.constant 0 : i32
    return %arg0, %c0_i32, %c0_i32_0 : i32, i32, i32
  }
  func.func @transform_5(%arg0: i32) -> (i32, i32, i32) {
    %c0_i32 = arith.constant 0 : i32
    %c0_i32_0 = arith.constant 0 : i32
    %c0_i32_1 = arith.constant 0 : i32
    return %arg0, %c0_i32, %c0_i32_0 : i32, i32, i32
  }
}

module attributes {stable_mosaic.version = 11 : i64} {
  func.func @_fused_conv_bn_kernel(%arg0: i32, %arg1: memref<1x128x16xbf16, #tpu.memory_space<vmem>>, %arg2: memref<1x16x128xbf16, #tpu.memory_space<vmem>>, %arg3: memref<1x1x128xf32, #tpu.memory_space<vmem>>, %arg4: memref<1x1x128xf32, #tpu.memory_space<vmem>>, %arg5: memref<1x1x128xf32, #tpu.memory_space<vmem>>, %arg6: memref<1x128x128xbf16, #tpu.memory_space<vmem>>, %arg7: memref<1x128x128xf32, #tpu.memory_space<vmem>>) attributes {dimension_semantics = [#tpu.dimension_semantics<parallel>], iteration_bounds = array<i64: 1>, scalar_prefetch = 0 : i64, scratch_operands = 0 : i64, tpu.core_type = #tpu.core_type<tc>, window_params = [{transform_indices = @transform_0, window_bounds = array<i64: 1, 128, 16>}, {transform_indices = @transform_1, window_bounds = array<i64: 1, 16, 128>}, {transform_indices = @transform_2, window_bounds = array<i64: 1, 1, 128>}, {transform_indices = @transform_3, window_bounds = array<i64: 1, 1, 128>}, {transform_indices = @transform_4, window_bounds = array<i64: 1, 1, 128>}, {transform_indices = @transform_5, window_bounds = array<i64: 1, 128, 128>}, {transform_indices = @transform_6, window_bounds = array<i64: 1, 128, 128>}]} {
    %c0 = arith.constant 0 : index
    %c0_0 = arith.constant 0 : index
    %c0_1 = arith.constant 0 : index
    %0 = vector.load %arg1[%c0, %c0_0, %c0_1] : memref<1x128x16xbf16, #tpu.memory_space<vmem>>, vector<1x128x16xbf16>
    %1 = vector.shape_cast %0 : vector<1x128x16xbf16> to vector<128x16xbf16>
    %c0_2 = arith.constant 0 : index
    %c0_3 = arith.constant 0 : index
    %c0_4 = arith.constant 0 : index
    %2 = vector.load %arg2[%c0_2, %c0_3, %c0_4] : memref<1x16x128xbf16, #tpu.memory_space<vmem>>, vector<1x16x128xbf16>
    %3 = vector.shape_cast %2 : vector<1x16x128xbf16> to vector<16x128xbf16>
    %cst = arith.constant dense<0.000000e+00> : vector<128x128xf32>
    %4 = tpu.matmul %1, %3, %cst {dimension_numbers = #tpu.dot_dimension_numbers<[1], [0], [0], [1], [0, 0, 1, 1], [], []>} : vector<128x16xbf16>, vector<16x128xbf16>, vector<128x128xf32> -> vector<128x128xf32>
    %cst_5 = arith.constant dense<0.000000e+00> : vector<128xf32>
    %5 = vector.multi_reduction <add>, %4, %cst_5 [0] : vector<128x128xf32> to vector<128xf32>
    %6 = vector.shape_cast %5 : vector<128xf32> to vector<1x128xf32>
    %cst_6 = arith.constant 7.812500e-03 : f32
    %7 = vector.broadcast %cst_6 : f32 to vector<1x128xf32>
    %8 = arith.mulf %6, %7 : vector<1x128xf32>
    %9 = vector.broadcast %8 : vector<1x128xf32> to vector<128x128xf32>
    %10 = arith.subf %4, %9 : vector<128x128xf32>
    %11 = arith.mulf %10, %10 : vector<128x128xf32>
    %cst_7 = arith.constant dense<0.000000e+00> : vector<128xf32>
    %12 = vector.multi_reduction <add>, %11, %cst_7 [0] : vector<128x128xf32> to vector<128xf32>
    %13 = vector.shape_cast %12 : vector<128xf32> to vector<1x128xf32>
    %cst_8 = arith.constant 7.812500e-03 : f32
    %14 = vector.broadcast %cst_8 : f32 to vector<1x128xf32>
    %15 = arith.mulf %13, %14 : vector<1x128xf32>
    %c0_9 = arith.constant 0 : index
    %c0_10 = arith.constant 0 : index
    %c0_11 = arith.constant 0 : index
    %16 = vector.load %arg3[%c0_9, %c0_10, %c0_11] : memref<1x1x128xf32, #tpu.memory_space<vmem>>, vector<1x1x128xf32>
    %17 = vector.shape_cast %16 : vector<1x1x128xf32> to vector<1x128xf32>
    %cst_12 = arith.constant 9.99999974E-6 : f32
    %18 = vector.broadcast %cst_12 : f32 to vector<1x128xf32>
    %19 = arith.addf %15, %18 : vector<1x128xf32>
    %20 = math.rsqrt %19 : vector<1x128xf32>
    %21 = arith.mulf %17, %20 : vector<1x128xf32>
    %22 = vector.broadcast %21 : vector<1x128xf32> to vector<128x128xf32>
    %23 = arith.mulf %10, %22 : vector<128x128xf32>
    %c0_13 = arith.constant 0 : index
    %c0_14 = arith.constant 0 : index
    %c0_15 = arith.constant 0 : index
    %24 = vector.load %arg4[%c0_13, %c0_14, %c0_15] : memref<1x1x128xf32, #tpu.memory_space<vmem>>, vector<1x1x128xf32>
    %25 = vector.shape_cast %24 : vector<1x1x128xf32> to vector<1x128xf32>
    %26 = vector.broadcast %25 : vector<1x128xf32> to vector<128x128xf32>
    %27 = arith.addf %23, %26 : vector<128x128xf32>
    %c0_16 = arith.constant 0 : index
    %c0_17 = arith.constant 0 : index
    %c0_18 = arith.constant 0 : index
    %28 = vector.load %arg5[%c0_16, %c0_17, %c0_18] : memref<1x1x128xf32, #tpu.memory_space<vmem>>, vector<1x1x128xf32>
    %29 = vector.shape_cast %28 : vector<1x1x128xf32> to vector<1x128xf32>
    %cst_19 = arith.constant 5.000000e-01 : f32
    %30 = vector.broadcast %cst_19 : f32 to vector<1x128xf32>
    %31 = arith.cmpf ogt, %29, %30 : vector<1x128xf32>
    %cst_20 = arith.constant 0.000000e+00 : f32
    %32 = vector.broadcast %cst_20 : f32 to vector<128x128xf32>
    %33 = arith.maximumf %27, %32 : vector<128x128xf32>
    %34 = vector.shape_cast %31 : vector<1x128xi1> to vector<1x128xi1>
    %35 = vector.broadcast %34 : vector<1x128xi1> to vector<128x128xi1>
    %36 = arith.select %35, %33, %27 : vector<128x128xi1>, vector<128x128xf32>
    %cst_21 = arith.constant 1.000000e-01 : f32
    %37 = vector.broadcast %cst_21 : f32 to vector<128x128xf32>
    %38 = arith.mulf %36, %37 : vector<128x128xf32>
    %c0_22 = arith.constant 0 : index
    %c0_23 = arith.constant 0 : index
    %c0_24 = arith.constant 0 : index
    %39 = vector.load %arg6[%c0_22, %c0_23, %c0_24] : memref<1x128x128xbf16, #tpu.memory_space<vmem>>, vector<1x128x128xbf16>
    %40 = vector.shape_cast %39 : vector<1x128x128xbf16> to vector<128x128xbf16>
    %41 = arith.extf %40 : vector<128x128xbf16> to vector<128x128xf32>
    %42 = arith.addf %38, %41 : vector<128x128xf32>
    %cst_25 = arith.constant 0.000000e+00 : f32
    %43 = vector.broadcast %cst_25 : f32 to vector<128x128xf32>
    %44 = arith.maximumf %42, %43 : vector<128x128xf32>
    %c0_26 = arith.constant 0 : index
    %c0_27 = arith.constant 0 : index
    %c0_28 = arith.constant 0 : index
    %45 = vector.load %arg7[%c0_26, %c0_27, %c0_28] : memref<1x128x128xf32, #tpu.memory_space<vmem>>, vector<1x128x128xf32>
    %46 = vector.shape_cast %45 : vector<1x128x128xf32> to vector<128x128xf32>
    %47 = vector.shape_cast %44 : vector<128x128xf32> to vector<1x128x128xf32>
    tpu.vector_store %arg7[%c0_26, %c0_27, %c0_28], %47 {strides = array<i32>} : memref<1x128x128xf32, #tpu.memory_space<vmem>>, vector<1x128x128xf32>,
    return
  }
  func.func @transform_0(%arg0: i32) -> (i32, i32, i32) {
    %c0_i32 = arith.constant 0 : i32
    %c0_i32_0 = arith.constant 0 : i32
    %c0_i32_1 = arith.constant 0 : i32
    return %arg0, %c0_i32, %c0_i32_0 : i32, i32, i32
  }
  func.func @transform_1(%arg0: i32) -> (i32, i32, i32) {
    %c0_i32 = arith.constant 0 : i32
    %c0_i32_0 = arith.constant 0 : i32
    %c0_i32_1 = arith.constant 0 : i32
    return %arg0, %c0_i32, %c0_i32_0 : i32, i32, i32
  }
  func.func @transform_2(%arg0: i32) -> (i32, i32, i32) {
    %c0_i32 = arith.constant 0 : i32
    %c0_i32_0 = arith.constant 0 : i32
    %c0_i32_1 = arith.constant 0 : i32
    return %arg0, %c0_i32, %c0_i32_0 : i32, i32, i32
  }
  func.func @transform_3(%arg0: i32) -> (i32, i32, i32) {
    %c0_i32 = arith.constant 0 : i32
    %c0_i32_0 = arith.constant 0 : i32
    %c0_i32_1 = arith.constant 0 : i32
    return %arg0, %c0_i32, %c0_i32_0 : i32, i32, i32
  }
  func.func @transform_4(%arg0: i32) -> (i32, i32, i32) {
    %c0_i32 = arith.constant 0 : i32
    %c0_i32_0 = arith.constant 0 : i32
    %c0_i32_1 = arith.constant 0 : i32
    return %arg0, %c0_i32, %c0_i32_0 : i32, i32, i32
  }
  func.func @transform_5(%arg0: i32) -> (i32, i32, i32) {
    %c0_i32 = arith.constant 0 : i32
    %c0_i32_0 = arith.constant 0 : i32
    %c0_i32_1 = arith.constant 0 : i32
    return %arg0, %c0_i32, %c0_i32_0 : i32, i32, i32
  }
  func.func @transform_6(%arg0: i32) -> (i32, i32, i32) {
    %c0_i32 = arith.constant 0 : i32
    %c0_i32_0 = arith.constant 0 : i32
    %c0_i32_1 = arith.constant 0 : i32
    return %arg0, %c0_i32, %c0_i32_0 : i32, i32, i32
  }
}

</mosaic_0001>

<llo_original>
// kernel: forward.6
$region0: #{forward.6}
  #allocation0 [shape = 'u32[]', space=smem, size = 0x4, offset = 0x4, fixed_abs, tag = 'smem constant byte address 0x4 - core index']
  #allocation1 [shape = 'u32[144,128]{1,0:T(1,128)}', space=vmem, size = 0x12000, scoped, tag = 'internal scratch']
  %s0 = inlined_call_operand.vmem [shape: bf16[1,128,16], index: 0, kind: input, shape index: {}]
  %s1 = inlined_call_operand.vmem [shape: bf16[1,16,128], index: 1, kind: input, shape index: {}]
  %s2 = inlined_call_operand.vmem [shape: f32[1,1,128], index: 2, kind: input, shape index: {}]
  %s3 = inlined_call_operand.vmem [shape: f32[1,1,128], index: 3, kind: input, shape index: {}]
  %s4 = inlined_call_operand.vmem [shape: f32[1,1,128], index: 4, kind: input, shape index: {}]
  %s5 = inlined_call_operand.vmem [shape: bf16[1,128,128], index: 5, kind: output, shape index: {}]
  %s6 = sld [smem:[#allocation0]]
  $region30: #{forward.6} parent=0
    _
  %s8 = ssub.s32 1, %s6
  %s9 = scalar_select 0, %s8, %s6
  // Predicated region
  $region2: #{forward.6} parent=0 // pred_check
    _
  $region3: #{forward.6} parent=0 // pred_check_branch
    %11 = sbr.rel (0) target = $region5
  $region4: #{forward.6} parent=0 // pred_region
    _
  $region5: #{forward.6} parent=0 // pred_fallthru
    _
  // Predicated region
  $region6: #{forward.6} parent=0 // pred_check
    _
  $region7: #{forward.6} parent=0 // pred_check_branch
    %13 = sbr.rel (0) target = $region9
  $region8: #{forward.6} parent=0 // pred_region
    _
  $region9: #{forward.6} parent=0 // pred_fallthru
    _
  // Predicated region
  $region10: #{forward.6} parent=0 // pred_check
    _
  $region11: #{forward.6} parent=0 // pred_check_branch
    %15 = sbr.rel (0) target = $region13
  $region12: #{forward.6} parent=0 // pred_region
    _
  $region13: #{forward.6} parent=0 // pred_fallthru
    _
  // Predicated region
  $region14: #{forward.6} parent=0 // pred_check
    _
  $region15: #{forward.6} parent=0 // pred_check_branch
    %17 = sbr.rel (0) target = $region17
  $region16: #{forward.6} parent=0 // pred_region
    _
  $region17: #{forward.6} parent=0 // pred_fallthru
    _
  // Predicated region
  $region18: #{forward.6} parent=0 // pred_check
    _
  $region19: #{forward.6} parent=0 // pred_check_branch
    %19 = sbr.rel (0) target = $region21
  $region20: #{forward.6} parent=0 // pred_region
    _
  $region21: #{forward.6} parent=0 // pred_fallthru
    _
  %v21 = vld [vmem:[%s0] sm:$0xf]
  %v22 = vld [vmem:[%s0 + $0x4] sm:$0xf]
  %v23 = vld [vmem:[%s0 + $0x8] sm:$0xf]
  %v24 = vld [vmem:[%s0 + $0xc] sm:$0xf]
  %v25 = vld [vmem:[%s0 + $0x10] sm:$0xf]
  %v26 = vld [vmem:[%s0 + $0x14] sm:$0xf]
  %v27 = vld [vmem:[%s0 + $0x18] sm:$0xf]
  %v28 = vld [vmem:[%s0 + $0x1c] sm:$0xf]
  %v29 = vld [vmem:[%s0 + $0x20] sm:$0xf]
  %v30 = vld [vmem:[%s0 + $0x24] sm:$0xf]
  %v31 = vld [vmem:[%s0 + $0x28] sm:$0xf]
  %v32 = vld [vmem:[%s0 + $0x2c] sm:$0xf]
  %v33 = vld [vmem:[%s0 + $0x30] sm:$0xf]
  %v34 = vld [vmem:[%s0 + $0x34] sm:$0xf]
  %v35 = vld [vmem:[%s0 + $0x38] sm:$0xf]
  %v36 = vld [vmem:[%s0 + $0x3c] sm:$0xf]
  %v37 = vld [vmem:[%s1] sm:$0xf]
  %v38 = vld [vmem:[%s1 + $0x4] sm:$0xf]
  %v55 = vunpack.c.l.b16 %v21
  %v56 = vunpack.c.l.b16 %v22
  %v57 = vunpack.c.l.b16 %v23
  %v58 = vunpack.c.l.b16 %v24
  %v59 = vunpack.c.l.b16 %v25
  %v60 = vunpack.c.l.b16 %v26
  %v61 = vunpack.c.l.b16 %v27
  %v62 = vunpack.c.l.b16 %v28
  %v63 = vunpack.c.l.b16 %v29
  %v64 = vunpack.c.l.b16 %v30
  %v65 = vunpack.c.l.b16 %v31
  %v66 = vunpack.c.l.b16 %v32
  %v67 = vunpack.c.l.b16 %v33
  %v68 = vunpack.c.l.b16 %v34
  %v69 = vunpack.c.l.b16 %v35
  %v70 = vunpack.c.l.b16 %v36
  %v71 = vpack.c.b16 %v56, %v55
  %v72 = vpack.c.b16 %v58, %v57
  %v73 = vpack.c.b16 %v60, %v59
  %v74 = vpack.c.b16 %v62, %v61
  %v75 = vpack.c.b16 %v64, %v63
  %v76 = vpack.c.b16 %v66, %v65
  %v77 = vpack.c.b16 %v68, %v67
  %v78 = vpack.c.b16 %v70, %v69
  %v81 = vunpack.c.l.b16 %v37
  %v82 = vunpack.c.l.b16 %v38
  %v83 = vpack.c.b16 %v82, %v81
  %vm85 = vcmask 130048
  %v87 = vsel %vm85, %v71, 0
  %v90 = vsel %vm85, %v72, 0
  %v93 = vsel %vm85, %v73, 0
  %v96 = vsel %vm85, %v74, 0
  %v99 = vsel %vm85, %v75, 0
  %v102 = vsel %vm85, %v76, 0
  %v105 = vsel %vm85, %v77, 0
  %v108 = vsel %vm85, %v78, 0
  %110 = vmatprep.subr.bf16.mxu0 0
  %111 = vmatpush1.bf16.msra.mxu0 %v83
  %112 = vmatprep.subr.bf16.mxu0 0
  %113 = vmatpush1.bf16.msra.mxu0 0
  %114 = vmatprep.subr.bf16.mxu0 0
  %115 = vmatpush1.bf16.msra.mxu0 0
  %116 = vmatprep.subr.bf16.mxu0 0
  %117 = vmatpush1.bf16.msra.mxu0 0
  %118 = vmatprep.subr.bf16.mxu0 0
  %119 = vmatpush1.bf16.msra.mxu0 0
  %120 = vmatprep.subr.bf16.mxu0 0
  %121 = vmatpush1.bf16.msra.mxu0 0
  %122 = vmatprep.subr.bf16.mxu0 0
  %123 = vmatpush1.bf16.msra.mxu0 0
  %124 = vmatprep.subr.bf16.mxu0 0
  %125 = vmatpush1.bf16.msra.mxu0 0
  %126 = vmatprep.subr.bf16.mxu0 0
  %127 = vmatpush1.bf16.msra.mxu0 0
  %128 = vmatprep.subr.bf16.mxu0 0
  %129 = vmatpush1.bf16.msra.mxu0 0
  %130 = vmatprep.subr.bf16.mxu0 0
  %131 = vmatpush1.bf16.msra.mxu0 0
  %132 = vmatprep.subr.bf16.mxu0 0
  %133 = vmatpush1.bf16.msra.mxu0 0
  %134 = vmatprep.subr.bf16.mxu0 0
  %135 = vmatpush1.bf16.msra.mxu0 0
  %136 = vmatprep.subr.bf16.mxu0 0
  %137 = vmatpush1.bf16.msra.mxu0 0
  %138 = vmatprep.subr.bf16.mxu0 0
  %139 = vmatpush1.bf16.msra.mxu0 0
  %140 = vmatprep.subr.bf16.mxu0 0
  %141 = vmatpush1.bf16.msra.mxu0 0
  %142 = vmatprep.mubr.bf16.mxu0 0
  %143 = vmatmul.mubr.bf16.gmra.mrb[0].mxu0 %v87
  %v144 = vpop.f32.mrb[0].mxu0
  %v145 = vadd.f32 0.0, %v144
  %v146 = vpop.f32.mrb[0].mxu0
  %v147 = vpop.f32.mrb[0].mxu0
  %v148 = vadd.f32 0.0, %v147
  %v149 = vpop.f32.mrb[0].mxu0
  %150 = vmatprep.mubr.bf16.mxu0 0
  %151 = vmatmul.mubr.bf16.gmra.mrb[0].mxu0 %v90
  %v152 = vpop.f32.mrb[0].mxu0
  %v153 = vadd.f32 0.0, %v152
  %v154 = vpop.f32.mrb[0].mxu0
  %v155 = vpop.f32.mrb[0].mxu0
  %v156 = vadd.f32 0.0, %v155
  %v157 = vpop.f32.mrb[0].mxu0
  %158 = vmatprep.mubr.bf16.mxu0 0
  %159 = vmatmul.mubr.bf16.gmra.mrb[0].mxu0 %v93
  %v160 = vpop.f32.mrb[0].mxu0
  %v161 = vadd.f32 0.0, %v160
  %v162 = vpop.f32.mrb[0].mxu0
  %v163 = vpop.f32.mrb[0].mxu0
  %v164 = vadd.f32 0.0, %v163
  %v165 = vpop.f32.mrb[0].mxu0
  %166 = vmatprep.mubr.bf16.mxu0 0
  %167 = vmatmul.mubr.bf16.gmra.mrb[0].mxu0 %v96
  %v168 = vpop.f32.mrb[0].mxu0
  %v169 = vadd.f32 0.0, %v168
  %v170 = vpop.f32.mrb[0].mxu0
  %v171 = vpop.f32.mrb[0].mxu0
  %v172 = vadd.f32 0.0, %v171
  %v173 = vpop.f32.mrb[0].mxu0
  %174 = vmatprep.mubr.bf16.mxu0 0
  %175 = vmatmul.mubr.bf16.gmra.mrb[0].mxu0 %v99
  %v176 = vpop.f32.mrb[0].mxu0
  %v177 = vadd.f32 0.0, %v176
  %v178 = vpop.f32.mrb[0].mxu0
  %v179 = vpop.f32.mrb[0].mxu0
  %v180 = vadd.f32 0.0, %v179
  %v181 = vpop.f32.mrb[0].mxu0
  %182 = vmatprep.mubr.bf16.mxu0 0
  %183 = vmatmul.mubr.bf16.gmra.mrb[0].mxu0 %v102
  %v184 = vpop.f32.mrb[0].mxu0
  %v185 = vadd.f32 0.0, %v184
  %v186 = vpop.f32.mrb[0].mxu0
  %v187 = vpop.f32.mrb[0].mxu0
  %v188 = vadd.f32 0.0, %v187
  %v189 = vpop.f32.mrb[0].mxu0
  %190 = vmatprep.mubr.bf16.mxu0 0
  %191 = vmatmul.mubr.bf16.gmra.mrb[0].mxu0 %v105
  %v192 = vpop.f32.mrb[0].mxu0
  %v193 = vadd.f32 0.0, %v192
  %v194 = vpop.f32.mrb[0].mxu0
  %v195 = vpop.f32.mrb[0].mxu0
  %v196 = vadd.f32 0.0, %v195
  %v197 = vpop.f32.mrb[0].mxu0
  %198 = vmatprep.mubr.bf16.mxu0 0
  %199 = vmatmul.mubr.bf16.gmra.mrb[0].mxu0 %v108
  %v200 = vpop.f32.mrb[0].mxu0
  %v201 = vadd.f32 0.0, %v200
  %v202 = vpop.f32.mrb[0].mxu0
  %v203 = vpop.f32.mrb[0].mxu0
  %v204 = vadd.f32 0.0, %v203
  %v205 = vpop.f32.mrb[0].mxu0
  %206 = vdwg.mxu0
  %v207 = vadd.f32 %v145, %v148
  %v208 = vadd.f32 %v207, %v153
  %v209 = vadd.f32 %v208, %v156
  %v210 = vadd.f32 %v209, %v161
  %v211 = vadd.f32 %v210, %v164
  %v212 = vadd.f32 %v211, %v169
  %v213 = vadd.f32 %v212, %v172
  %v214 = vadd.f32 %v213, %v177
  %v215 = vadd.f32 %v214, %v180
  %v216 = vadd.f32 %v215, %v185
  %v217 = vadd.f32 %v216, %v188
  %v218 = vadd.f32 %v217, %v193
  %v219 = vadd.f32 %v218, %v196
  %v220 = vadd.f32 %v219, %v201
  %v221 = vadd.f32 %v220, %v204
  %v222 = vrot.slane %v221, 4
  %v223 = vadd.f32 %v221, %v222
  %v224 = vrot.slane %v223, 2
  %v225 = vadd.f32 %v223, %v224
  %v226 = vrot.slane %v225, 1
  %v227 = vadd.f32 %v225, %v226
  %v228 = vmul.f32 %v227, 0.0078125
  %v229 = vsub.f32 %v145, %v228
  %v230 = vsub.f32 %v148, %v228
  %v231 = vsub.f32 %v153, %v228
  %v232 = vsub.f32 %v156, %v228
  %v233 = vsub.f32 %v161, %v228
  %v234 = vsub.f32 %v164, %v228
  %v235 = vsub.f32 %v169, %v228
  %v236 = vsub.f32 %v172, %v228
  %v237 = vsub.f32 %v177, %v228
  %v238 = vsub.f32 %v180, %v228
  %v239 = vsub.f32 %v185, %v228
  %v240 = vsub.f32 %v188, %v228
  %v241 = vsub.f32 %v193, %v228
  %v242 = vsub.f32 %v196, %v228
  %v243 = vsub.f32 %v201, %v228
  %v244 = vsub.f32 %v204, %v228
  %v245 = vmul.f32 %v229, %v229
  %v246 = vmul.f32 %v230, %v230
  %v247 = vmul.f32 %v231, %v231
  %v248 = vmul.f32 %v232, %v232
  %v249 = vmul.f32 %v233, %v233
  %v250 = vmul.f32 %v234, %v234
  %v251 = vmul.f32 %v235, %v235
  %v252 = vmul.f32 %v236, %v236
  %v253 = vmul.f32 %v237, %v237
  %v254 = vmul.f32 %v238, %v238
  %v255 = vmul.f32 %v239, %v239
  %v256 = vmul.f32 %v240, %v240
  %v257 = vmul.f32 %v241, %v241
  %v258 = vmul.f32 %v242, %v242
  %v259 = vmul.f32 %v243, %v243
  %v260 = vmul.f32 %v244, %v244
  %v261 = vadd.f32 %v245, %v246
  %v262 = vadd.f32 %v261, %v247
  %v263 = vadd.f32 %v262, %v248
  %v264 = vadd.f32 %v263, %v249
  %v265 = vadd.f32 %v264, %v250
  %v266 = vadd.f32 %v265, %v251
  %v267 = vadd.f32 %v266, %v252
  %v268 = vadd.f32 %v267, %v253
  %v269 = vadd.f32 %v268, %v254
  %v270 = vadd.f32 %v269, %v255
  %v271 = vadd.f32 %v270, %v256
  %v272 = vadd.f32 %v271, %v257
  %v273 = vadd.f32 %v272, %v258
  %v274 = vadd.f32 %v273, %v259
  %v275 = vadd.f32 %v274, %v260
  %v276 = vrot.slane %v275, 4
  %v277 = vadd.f32 %v275, %v276
  %v278 = vrot.slane %v277, 2
  %v279 = vadd.f32 %v277, %v278
  %v280 = vrot.slane %v279, 1
  %v281 = vadd.f32 %v279, %v280
  %v282 = vmul.f32 %v281, 0.0078125
  %v283 = vld [vmem:[%s2] sm:$0x1]
  %v284 = vadd.f32 %v282, 1e-05
  %v285 = vrsqrt.pop %v284
  %v286 = vmul.f32 %v283, %v285
  %v288 = vlaneseq
  %v289 = vshrl.u32 %v288, 7
  %v290 = vsub.s32 0, %v289
  %v291 = vrot.slane %v286, %v290
  %v293 = vmul.f32 %v229, %v291
  %v294 = vmul.f32 %v230, %v291
  %v295 = vmul.f32 %v231, %v291
  %v296 = vmul.f32 %v232, %v291
  %v297 = vmul.f32 %v233, %v291
  %v298 = vmul.f32 %v234, %v291
  %v299 = vmul.f32 %v235, %v291
  %v300 = vmul.f32 %v236, %v291
  %v301 = vmul.f32 %v237, %v291
  %v302 = vmul.f32 %v238, %v291
  %v303 = vmul.f32 %v239, %v291
  %v304 = vmul.f32 %v240, %v291
  %v305 = vmul.f32 %v241, %v291
  %v306 = vmul.f32 %v242, %v291
  %v307 = vmul.f32 %v243, %v291
  %v308 = vmul.f32 %v244, %v291
  %v309 = vld [vmem:[%s3] sm:$0x1]
  %v311 = vlaneseq
  %v312 = vshrl.u32 %v311, 7
  %v313 = vsub.s32 0, %v312
  %v314 = vrot.slane %v309, %v313
  %v316 = vadd.f32 %v293, %v314
  %v317 = vadd.f32 %v294, %v314
  %v318 = vadd.f32 %v295, %v314
  %v319 = vadd.f32 %v296, %v314
  %v320 = vadd.f32 %v297, %v314
  %v321 = vadd.f32 %v298, %v314
  %v322 = vadd.f32 %v299, %v314
  %v323 = vadd.f32 %v300, %v314
  %v324 = vadd.f32 %v301, %v314
  %v325 = vadd.f32 %v302, %v314
  %v326 = vadd.f32 %v303, %v314
  %v327 = vadd.f32 %v304, %v314
  %v328 = vadd.f32 %v305, %v314
  %v329 = vadd.f32 %v306, %v314
  %v330 = vadd.f32 %v307, %v314
  %v331 = vadd.f32 %v308, %v314
  %v332 = vld [vmem:[%s4] sm:$0x1]
  %vm333 = vcmp.gt.f32.partialorder %v332, 0.5
  %v334 = vmax.f32 %v316, 0.0
  %v335 = vmax.f32 %v317, 0.0
  %v336 = vmax.f32 %v318, 0.0
  %v337 = vmax.f32 %v319, 0.0
  %v338 = vmax.f32 %v320, 0.0
  %v339 = vmax.f32 %v321, 0.0
  %v340 = vmax.f32 %v322, 0.0
  %v341 = vmax.f32 %v323, 0.0
  %v342 = vmax.f32 %v324, 0.0
  %v343 = vmax.f32 %v325, 0.0
  %v344 = vmax.f32 %v326, 0.0
  %v345 = vmax.f32 %v327, 0.0
  %v346 = vmax.f32 %v328, 0.0
  %v347 = vmax.f32 %v329, 0.0
  %v348 = vmax.f32 %v330, 0.0
  %v349 = vmax.f32 %v331, 0.0
  %v350 = vsel %vm333, 1, 0
  %v351 = vlaneseq
  %v352 = vshrl.u32 %v351, 7
  %v353 = vsub.s32 0, %v352
  %v354 = vrot.slane %v350, %v353
  %vm355 = vcmp.eq.s32.totalorder %v354, 1
  %v356 = vsel %vm355, %v334, %v316
  %v357 = vsel %vm355, %v335, %v317
  %v358 = vsel %vm355, %v336, %v318
  %v359 = vsel %vm355, %v337, %v319
  %v360 = vsel %vm355, %v338, %v320
  %v361 = vsel %vm355, %v339, %v321
  %v362 = vsel %vm355, %v340, %v322
  %v363 = vsel %vm355, %v341, %v323
  %v364 = vsel %vm355, %v342, %v324
  %v365 = vsel %vm355, %v343, %v325
  %v366 = vsel %vm355, %v344, %v326
  %v367 = vsel %vm355, %v345, %v327
  %v368 = vsel %vm355, %v346, %v328
  %v369 = vsel %vm355, %v347, %v329
  %v370 = vsel %vm355, %v348, %v330
  %v371 = vsel %vm355, %v349, %v331
  %v372 = vpack.c.bf16 %v357, %v356
  %v373 = vpack.c.bf16 %v359, %v358
  %v374 = vpack.c.bf16 %v361, %v360
  %v375 = vpack.c.bf16 %v363, %v362
  %v376 = vpack.c.bf16 %v365, %v364
  %v377 = vpack.c.bf16 %v367, %v366
  %v378 = vpack.c.bf16 %v369, %v368
  %v379 = vpack.c.bf16 %v371, %v370
  %v388 = vunpack.c.l.b16 %v372
  %v389 = vunpack.c.h.b16 %v372
  %v390 = vunpack.c.l.b16 %v373
  %v391 = vunpack.c.h.b16 %v373
  %v392 = vunpack.c.l.b16 %v374
  %v393 = vunpack.c.h.b16 %v374
  %v394 = vunpack.c.l.b16 %v375
  %v395 = vunpack.c.h.b16 %v375
  %v396 = vunpack.c.l.b16 %v376
  %v397 = vunpack.c.h.b16 %v376
  %v398 = vunpack.c.l.b16 %v377
  %v399 = vunpack.c.h.b16 %v377
  %v400 = vunpack.c.l.b16 %v378
  %v401 = vunpack.c.h.b16 %v378
  %v402 = vunpack.c.l.b16 %v379
  %v403 = vunpack.c.h.b16 %v379
  %v404 = vpack.c.b16 %v388, %v388
  %v405 = vpack.c.b16 %v389, %v389
  %v406 = vpack.c.b16 %v390, %v390
  %v407 = vpack.c.b16 %v391, %v391
  %v408 = vpack.c.b16 %v392, %v392
  %v409 = vpack.c.b16 %v393, %v393
  %v410 = vpack.c.b16 %v394, %v394
  %v411 = vpack.c.b16 %v395, %v395
  %v412 = vpack.c.b16 %v396, %v396
  %v413 = vpack.c.b16 %v397, %v397
  %v414 = vpack.c.b16 %v398, %v398
  %v415 = vpack.c.b16 %v399, %v399
  %v416 = vpack.c.b16 %v400, %v400
  %v417 = vpack.c.b16 %v401, %v401
  %v418 = vpack.c.b16 %v402, %v402
  %v419 = vpack.c.b16 %v403, %v403
  %436 = vst [vmem:[%s5] sm:$0xf] %v404
  %437 = vst [vmem:[%s5 + $0x4] sm:$0xf] %v405
  %438 = vst [vmem:[%s5 + $0x8] sm:$0xf] %v406
  %439 = vst [vmem:[%s5 + $0xc] sm:$0xf] %v407
  %440 = vst [vmem:[%s5 + $0x10] sm:$0xf] %v408
  %441 = vst [vmem:[%s5 + $0x14] sm:$0xf] %v409
  %442 = vst [vmem:[%s5 + $0x18] sm:$0xf] %v410
  %443 = vst [vmem:[%s5 + $0x1c] sm:$0xf] %v411
  %444 = vst [vmem:[%s5 + $0x20] sm:$0xf] %v412
  %445 = vst [vmem:[%s5 + $0x24] sm:$0xf] %v413
  %446 = vst [vmem:[%s5 + $0x28] sm:$0xf] %v414
  %447 = vst [vmem:[%s5 + $0x2c] sm:$0xf] %v415
  %448 = vst [vmem:[%s5 + $0x30] sm:$0xf] %v416
  %449 = vst [vmem:[%s5 + $0x34] sm:$0xf] %v417
  %450 = vst [vmem:[%s5 + $0x38] sm:$0xf] %v418
  %451 = vst [vmem:[%s5 + $0x3c] sm:$0xf] %v419
  // Predicated region
  $region22: #{forward.6} parent=0 // pred_check
    _
  $region23: #{forward.6} parent=0 // pred_check_branch
    %453 = sbr.rel (0) target = $region25
  $region24: #{forward.6} parent=0 // pred_region
    _
  $region25: #{forward.6} parent=0 // pred_fallthru
    _
  // Predicated region
  $region26: #{forward.6} parent=0 // pred_check
    _
  $region27: #{forward.6} parent=0 // pred_check_branch
    %455 = sbr.rel (0) target = $region29
  $region28: #{forward.6} parent=0 // pred_region
    _
  $region29: #{forward.6} parent=0 // pred_fallthru
    _

// kernel: forward.7
$region0: #{forward.7}
  #allocation0 [shape = 'u32[]', space=smem, size = 0x4, offset = 0x4, fixed_abs, tag = 'smem constant byte address 0x4 - core index']
  #allocation1 [shape = 'u32[144,128]{1,0:T(1,128)}', space=vmem, size = 0x12000, scoped, tag = 'internal scratch']
  %s0 = inlined_call_operand.vmem [shape: bf16[2,128,12], index: 0, kind: input, shape index: {}]
  %s1 = inlined_call_operand.vmem [shape: bf16[2,12,128], index: 1, kind: input, shape index: {}]
  %s2 = inlined_call_operand.vmem [shape: f32[2,1,128], index: 2, kind: input, shape index: {}]
  %s3 = inlined_call_operand.vmem [shape: f32[2,1,128], index: 3, kind: input, shape index: {}]
  %s4 = inlined_call_operand.vmem [shape: f32[2,1,128], index: 4, kind: input, shape index: {}]
  %s5 = inlined_call_operand.vmem [shape: bf16[2,128,128], index: 5, kind: output, shape index: {}]
  %s6 = sld [smem:[#allocation0]]
  $region53: #{forward.7} parent=0
    _
  %s8 = ssub.s32 1, %s6
  %s9 = scalar_select 0, %s8, %s6
  loop: start=0, step=1, limit=4
  $region2: #{forward.7} parent=0 // loop_pre_header
    _
  $region3: #{forward.7} parent=0 // loop_header
    %s11 = sphi 0, %s15
    %p12 = scmp.ge.s32.totalorder %s11, 4
    %s21 = sphi 0, %s23
    %s24 = sphi 0, %s21
    %s25 = sphi 0, %s24
    %s41 = sphi 0, %s25
    %s47 = sphi 0, %s49
    %s50 = sphi 0, %s47
    %s51 = sphi 0, %s50
    %s67 = sphi 0, %s51
    %s73 = sphi 0, %s75
    %s76 = sphi 0, %s73
    %s77 = sphi 0, %s76
    %s93 = sphi 0, %s77
    %s99 = sphi 0, %s101
    %s102 = sphi 0, %s99
    %s103 = sphi 0, %s102
    %s119 = sphi 0, %s103
    %s125 = sphi 0, %s127
    %s128 = sphi 0, %s125
    %s129 = sphi 0, %s128
    %s145 = sphi 0, %s129
    %s151 = sphi 0, %s153
    %s154 = sphi 0, %s151
    %s155 = sphi 0, %s154
    %s171 = sphi 0, %s155
  $region4: #{forward.7} parent=0 // loop_header_branch
    %14 = sbr.rel (%p12) target = $region8
  $region5: #{forward.7} parent=0 // loop_body
    %s16 = ssub.s32 %s11, 1
    %s17 = ssub.s32 %s11, 2
    %s18 = sadd.s32 %s11, 1
    %s19 = ssub.s32 %s11, %s18
    %p20 = scmp.eq.s32.totalorder %s19, 0
    %s22 = sadd.s32 %s21, 1
    %s23 = scalar_select %p20, %s21, %s22
    %p26 = pneg %p20
    %p27 = scmp.eq.s32.totalorder %s11, 1
    %p28 = por %p26, %p27
    %p29 = scmp.ne.s32.totalorder %s21, %s24
    %p30 = scmp.eq.s32.totalorder %s11, 0
    %p31 = por %p29, %p30
    %p32 = scmp.ne.s32.totalorder %s21, %s24
    %p33 = scmp.eq.s32.totalorder %s16, 1
    %p34 = por %p32, %p33
    %p35 = scmp.ne.s32.totalorder %s24, %s25
    %p36 = scmp.eq.s32.totalorder %s16, 0
    %p37 = por %p35, %p36
    %p38 = scmp.ne.s32.totalorder %s24, %s25
    %p39 = scmp.eq.s32.totalorder %s17, 1
    %p40 = por %p38, %p39
    %p42 = scmp.ne.s32.totalorder %s25, %s41
    %p43 = scmp.eq.s32.totalorder %s17, 0
    %p44 = por %p42, %p43
    %s45 = ssub.s32 %s11, %s18
    %p46 = scmp.eq.s32.totalorder %s45, 0
    %s48 = sadd.s32 %s47, 1
    %s49 = scalar_select %p46, %s47, %s48
    %p52 = pneg %p46
    %p53 = scmp.eq.s32.totalorder %s11, 1
    %p54 = por %p52, %p53
    %p55 = scmp.ne.s32.totalorder %s47, %s50
    %p56 = scmp.eq.s32.totalorder %s11, 0
    %p57 = por %p55, %p56
    %p58 = scmp.ne.s32.totalorder %s47, %s50
    %p59 = scmp.eq.s32.totalorder %s16, 1
    %p60 = por %p58, %p59
    %p61 = scmp.ne.s32.totalorder %s50, %s51
    %p62 = scmp.eq.s32.totalorder %s16, 0
    %p63 = por %p61, %p62
    %p64 = scmp.ne.s32.totalorder %s50, %s51
    %p65 = scmp.eq.s32.totalorder %s17, 1
    %p66 = por %p64, %p65
    %p68 = scmp.ne.s32.totalorder %s51, %s67
    %p69 = scmp.eq.s32.totalorder %s17, 0
    %p70 = por %p68, %p69
    %s71 = ssub.s32 %s11, %s18
    %p72 = scmp.eq.s32.totalorder %s71, 0
    %s74 = sadd.s32 %s73, 1
    %s75 = scalar_select %p72, %s73, %s74
    %p78 = pneg %p72
    %p79 = scmp.eq.s32.totalorder %s11, 1
    %p80 = por %p78, %p79
    %p81 = scmp.ne.s32.totalorder %s73, %s76
    %p82 = scmp.eq.s32.totalorder %s11, 0
    %p83 = por %p81, %p82
    %p84 = scmp.ne.s32.totalorder %s73, %s76
    %p85 = scmp.eq.s32.totalorder %s16, 1
    %p86 = por %p84, %p85
    %p87 = scmp.ne.s32.totalorder %s76, %s77
    %p88 = scmp.eq.s32.totalorder %s16, 0
    %p89 = por %p87, %p88
    %p90 = scmp.ne.s32.totalorder %s76, %s77
    %p91 = scmp.eq.s32.totalorder %s17, 1
    %p92 = por %p90, %p91
    %p94 = scmp.ne.s32.totalorder %s77, %s93
    %p95 = scmp.eq.s32.totalorder %s17, 0
    %p96 = por %p94, %p95
    %s97 = ssub.s32 %s11, %s18
    %p98 = scmp.eq.s32.totalorder %s97, 0
    %s100 = sadd.s32 %s99, 1
    %s101 = scalar_select %p98, %s99, %s100
    %p104 = pneg %p98
    %p105 = scmp.eq.s32.totalorder %s11, 1
    %p106 = por %p104, %p105
    %p107 = scmp.ne.s32.totalorder %s99, %s102
    %p108 = scmp.eq.s32.totalorder %s11, 0
    %p109 = por %p107, %p108
    %p110 = scmp.ne.s32.totalorder %s99, %s102
    %p111 = scmp.eq.s32.totalorder %s16, 1
    %p112 = por %p110, %p111
    %p113 = scmp.ne.s32.totalorder %s102, %s103
    %p114 = scmp.eq.s32.totalorder %s16, 0
    %p115 = por %p113, %p114
    %p116 = scmp.ne.s32.totalorder %s102, %s103
    %p117 = scmp.eq.s32.totalorder %s17, 1
    %p118 = por %p116, %p117
    %p120 = scmp.ne.s32.totalorder %s103, %s119
    %p121 = scmp.eq.s32.totalorder %s17, 0
    %p122 = por %p120, %p121
    %s123 = ssub.s32 %s11, %s18
    %p124 = scmp.eq.s32.totalorder %s123, 0
    %s126 = sadd.s32 %s125, 1
    %s127 = scalar_select %p124, %s125, %s126
    %p130 = pneg %p124
    %p131 = scmp.eq.s32.totalorder %s11, 1
    %p132 = por %p130, %p131
    %p133 = scmp.ne.s32.totalorder %s125, %s128
    %p134 = scmp.eq.s32.totalorder %s11, 0
    %p135 = por %p133, %p134
    %p136 = scmp.ne.s32.totalorder %s125, %s128
    %p137 = scmp.eq.s32.totalorder %s16, 1
    %p138 = por %p136, %p137
    %p139 = scmp.ne.s32.totalorder %s128, %s129
    %p140 = scmp.eq.s32.totalorder %s16, 0
    %p141 = por %p139, %p140
    %p142 = scmp.ne.s32.totalorder %s128, %s129
    %p143 = scmp.eq.s32.totalorder %s17, 1
    %p144 = por %p142, %p143
    %p146 = scmp.ne.s32.totalorder %s129, %s145
    %p147 = scmp.eq.s32.totalorder %s17, 0
    %p148 = por %p146, %p147
    %s149 = ssub.s32 %s11, %s18
    %p150 = scmp.eq.s32.totalorder %s149, 0
    %s152 = sadd.s32 %s151, 1
    %s153 = scalar_select %p150, %s151, %s152
    %p156 = pneg %p150
    %p157 = scmp.eq.s32.totalorder %s11, 1
    %p158 = por %p156, %p157
    %p159 = scmp.ne.s32.totalorder %s151, %s154
    %p160 = scmp.eq.s32.totalorder %s11, 0
    %p161 = por %p159, %p160
    %p162 = scmp.ne.s32.totalorder %s151, %s154
    %p163 = scmp.eq.s32.totalorder %s16, 1
    %p164 = por %p162, %p163
    %p165 = scmp.ne.s32.totalorder %s154, %s155
    %p166 = scmp.eq.s32.totalorder %s16, 0
    %p167 = por %p165, %p166
    %p168 = scmp.ne.s32.totalorder %s154, %s155
    %p169 = scmp.eq.s32.totalorder %s17, 1
    %p170 = por %p168, %p169
    %p172 = scmp.ne.s32.totalorder %s155, %s171
    %p173 = scmp.eq.s32.totalorder %s17, 0
    %p174 = por %p172, %p173
    %p175 = scmp.le.s32.totalorder 1, %s11
    %p176 = scmp.lt.s32.totalorder %s11, 3
    %p177 = pnand %p175, %p176
    %p178 = pneg %p177
    // Predicated region
    $region9: #{forward.7} parent=5 // pred_check
      _
    $region10: #{forward.7} parent=5 // pred_check_branch
      %180 = sbr.rel (%p177) target = $region12
    $region11: #{forward.7} parent=5 // pred_region
      %s181 = ssub.s32 %s11, 1
    $region12: #{forward.7} parent=5 // pred_fallthru
      _
    %p182 = scmp.lt.s32.totalorder %s11, 2
    // Predicated region
    $region13: #{forward.7} parent=5 // pred_check
      %p183 = pneg %p182
    $region14: #{forward.7} parent=5 // pred_check_branch
      %185 = sbr.rel (%p183) target = $region16
    $region15: #{forward.7} parent=5 // pred_region
      // Predicated region
      $region17: #{forward.7} parent=15 // pred_check
        %p186 = pneg %p31
      $region18: #{forward.7} parent=15 // pred_check_branch
        %188 = sbr.rel (%p186) target = $region20
      $region19: #{forward.7} parent=15 // pred_region
        %p189 = scmp.lt.s32.totalorder %s11, 1
        %s190 = scalar_select %p189, %s11, 1
        %s191 = smul.addr %s190, 16
        %s192 = smul.addr %s191, 4
        %s193 = scalar_lea.vmem %s0, %s192
      $region20: #{forward.7} parent=15 // pred_fallthru
        _
      // Predicated region
      $region21: #{forward.7} parent=15 // pred_check
        %p194 = pneg %p57
      $region22: #{forward.7} parent=15 // pred_check_branch
        %196 = sbr.rel (%p194) target = $region24
      $region23: #{forward.7} parent=15 // pred_region
        %p197 = scmp.lt.s32.totalorder %s11, 1
        %s198 = scalar_select %p197, %s11, 1
        %s199 = smul.addr %s198, 2
        %s200 = smul.addr %s199, 4
        %s201 = scalar_lea.vmem %s1, %s200
      $region24: #{forward.7} parent=15 // pred_fallthru
        _
      // Predicated region
      $region25: #{forward.7} parent=15 // pred_check
        %p202 = pneg %p83
      $region26: #{forward.7} parent=15 // pred_check_branch
        %204 = sbr.rel (%p202) target = $region28
      $region27: #{forward.7} parent=15 // pred_region
        %p205 = scmp.lt.s32.totalorder %s11, 1
        %s206 = scalar_select %p205, %s11, 1
        %s207 = scalar_lea.vmem %s2, %s206
      $region28: #{forward.7} parent=15 // pred_fallthru
        _
      // Predicated region
      $region29: #{forward.7} parent=15 // pred_check
        %p208 = pneg %p109
      $region30: #{forward.7} parent=15 // pred_check_branch
        %210 = sbr.rel (%p208) target = $region32
      $region31: #{forward.7} parent=15 // pred_region
        %p211 = scmp.lt.s32.totalorder %s11, 1
        %s212 = scalar_select %p211, %s11, 1
        %s213 = scalar_lea.vmem %s3, %s212
      $region32: #{forward.7} parent=15 // pred_fallthru
        _
      // Predicated region
      $region33: #{forward.7} parent=15 // pred_check
        %p214 = pneg %p135
      $region34: #{forward.7} parent=15 // pred_check_branch
        %216 = sbr.rel (%p214) target = $region36
      $region35: #{forward.7} parent=15 // pred_region
        %p217 = scmp.lt.s32.totalorder %s11, 1
        %s218 = scalar_select %p217, %s11, 1
        %s219 = scalar_lea.vmem %s4, %s218
      $region36: #{forward.7} parent=15 // pred_fallthru
        _
    $region16: #{forward.7} parent=5 // pred_fallthru
      _
    %p220 = scmp.le.s32.totalorder 1, %s11
    %p221 = scmp.lt.s32.totalorder %s11, 3
    %p222 = pnand %p220, %p221
    %p223 = pneg %p222
    // Predicated region
    $region37: #{forward.7} parent=5 // pred_check
      _
    $region38: #{forward.7} parent=5 // pred_check_branch
      %225 = sbr.rel (%p222) target = $region40
    $region39: #{forward.7} parent=5 // pred_region
      %s226 = ssub.s32 %s11, 1
      %p227 = scmp.lt.s32.totalorder %s16, 1
      %s228 = scalar_select %p227, %s16, 1
      %s229 = smul.addr %s228, 16
      %s230 = smul.addr %s229, 4
      %s231 = scalar_lea.vmem %s0, %s230
      %p232 = pneg %p37
      %p233 = pneg %p34
      %p234 = scmp.lt.s32.totalorder %s16, 1
      %s235 = scalar_select %p234, %s16, 1
      %s236 = smul.addr %s235, 2
      %s237 = smul.addr %s236, 4
      %s238 = scalar_lea.vmem %s1, %s237
      %p239 = pneg %p63
      %p240 = pneg %p60
      %p241 = scmp.lt.s32.totalorder %s16, 1
      %s242 = scalar_select %p241, %s16, 1
      %s243 = scalar_lea.vmem %s2, %s242
      %p244 = pneg %p89
      %p245 = pneg %p86
      %p246 = scmp.lt.s32.totalorder %s16, 1
      %s247 = scalar_select %p246, %s16, 1
      %s248 = scalar_lea.vmem %s3, %s247
      %p249 = pneg %p115
      %p250 = pneg %p112
      %p251 = scmp.lt.s32.totalorder %s16, 1
      %s252 = scalar_select %p251, %s16, 1
      %s253 = scalar_lea.vmem %s4, %s252
      %p254 = pneg %p141
      %p255 = pneg %p138
      %p256 = pneg %p167
      %p257 = pneg %p164
      %p258 = scmp.lt.s32.totalorder %s16, 1
      %s259 = scalar_select %p258, %s16, 1
      %s260 = smul.addr %s259, 16
      %s261 = smul.addr %s260, 4
      %s262 = scalar_lea.vmem %s5, %s261
      %p263 = scmp.lt.s32.totalorder %s16, 1
      %s264 = scalar_select %p263, %s16, 1
      %s265 = smul.addr %s264, 16
      %s266 = smul.addr %s265, 4
      %s267 = scalar_lea.vmem %s0, %s266
      %p268 = scmp.lt.s32.totalorder %s16, 1
      %s269 = scalar_select %p268, %s16, 1
      %s270 = smul.addr %s269, 2
      %s271 = smul.addr %s270, 4
      %s272 = scalar_lea.vmem %s1, %s271
      %p273 = scmp.lt.s32.totalorder %s16, 1
      %s274 = scalar_select %p273, %s16, 1
      %s275 = scalar_lea.vmem %s2, %s274
      %p276 = scmp.lt.s32.totalorder %s16, 1
      %s277 = scalar_select %p276, %s16, 1
      %s278 = scalar_lea.vmem %s3, %s277
      %p279 = scmp.lt.s32.totalorder %s16, 1
      %s280 = scalar_select %p279, %s16, 1
      %s281 = scalar_lea.vmem %s4, %s280
      %p282 = scmp.lt.s32.totalorder %s16, 1
      %s283 = scalar_select %p282, %s16, 1
      %s284 = smul.addr %s283, 16
      %s285 = smul.addr %s284, 4
      %s286 = scalar_lea.vmem %s5, %s285
      %v288 = vld [vmem:[%s267] sm:$0xf]
      %v289 = vld [vmem:[%s267 + $0x4] sm:$0xf]
      %v290 = vld [vmem:[%s267 + $0x8] sm:$0xf]
      %v291 = vld [vmem:[%s267 + $0xc] sm:$0xf]
      %v292 = vld [vmem:[%s267 + $0x10] sm:$0xf]
      %v293 = vld [vmem:[%s267 + $0x14] sm:$0xf]
      %v294 = vld [vmem:[%s267 + $0x18] sm:$0xf]
      %v295 = vld [vmem:[%s267 + $0x1c] sm:$0xf]
      %v296 = vld [vmem:[%s267 + $0x20] sm:$0xf]
      %v297 = vld [vmem:[%s267 + $0x24] sm:$0xf]
      %v298 = vld [vmem:[%s267 + $0x28] sm:$0xf]
      %v299 = vld [vmem:[%s267 + $0x2c] sm:$0xf]
      %v300 = vld [vmem:[%s267 + $0x30] sm:$0xf]
      %v301 = vld [vmem:[%s267 + $0x34] sm:$0xf]
      %v302 = vld [vmem:[%s267 + $0x38] sm:$0xf]
      %v303 = vld [vmem:[%s267 + $0x3c] sm:$0xf]
      %v304 = vld [vmem:[%s272] sm:$0xf]
      %v305 = vld [vmem:[%s272 + $0x4] sm:$0x3]
      %v322 = vunpack.c.l.b16 %v288
      %v323 = vunpack.c.l.b16 %v289
      %v324 = vunpack.c.l.b16 %v290
      %v325 = vunpack.c.l.b16 %v291
      %v326 = vunpack.c.l.b16 %v292
      %v327 = vunpack.c.l.b16 %v293
      %v328 = vunpack.c.l.b16 %v294
      %v329 = vunpack.c.l.b16 %v295
      %v330 = vunpack.c.l.b16 %v296
      %v331 = vunpack.c.l.b16 %v297
      %v332 = vunpack.c.l.b16 %v298
      %v333 = vunpack.c.l.b16 %v299
      %v334 = vunpack.c.l.b16 %v300
      %v335 = vunpack.c.l.b16 %v301
      %v336 = vunpack.c.l.b16 %v302
      %v337 = vunpack.c.l.b16 %v303
      %v338 = vpack.c.b16 %v323, %v322
      %v339 = vpack.c.b16 %v325, %v324
      %v340 = vpack.c.b16 %v327, %v326
      %v341 = vpack.c.b16 %v329, %v328
      %v342 = vpack.c.b16 %v331, %v330
      %v343 = vpack.c.b16 %v333, %v332
      %v344 = vpack.c.b16 %v335, %v334
      %v345 = vpack.c.b16 %v337, %v336
      %v348 = vunpack.c.l.b16 %v304
      %v349 = vunpack.c.l.b16 %v305
      %v350 = vpack.c.b16 %v349, %v348
      %vm351 = vcmask 97280
      %v353 = vsel %vm351, %v338, 0
      %v356 = vsel %vm351, %v339, 0
      %v359 = vsel %vm351, %v340, 0
      %v362 = vsel %vm351, %v341, 0
      %v365 = vsel %vm351, %v342, 0
      %v368 = vsel %vm351, %v343, 0
      %v371 = vsel %vm351, %v344, 0
      %v374 = vsel %vm351, %v345, 0
      %vm376 = vcmask 1045504
      %v378 = vsel %vm376, %v350, 0
      %380 = vmatprep.subr.bf16.mxu0 0
      %381 = vmatpush1.bf16.msra.mxu0 %v378
      %382 = vmatprep.subr.bf16.mxu0 0
      %383 = vmatpush1.bf16.msra.mxu0 0
      %384 = vmatprep.subr.bf16.mxu0 0
      %385 = vmatpush1.bf16.msra.mxu0 0
      %386 = vmatprep.subr.bf16.mxu0 0
      %387 = vmatpush1.bf16.msra.mxu0 0
      %388 = vmatprep.subr.bf16.mxu0 0
      %389 = vmatpush1.bf16.msra.mxu0 0
      %390 = vmatprep.subr.bf16.mxu0 0
      %391 = vmatpush1.bf16.msra.mxu0 0
      %392 = vmatprep.subr.bf16.mxu0 0
      %393 = vmatpush1.bf16.msra.mxu0 0
      %394 = vmatprep.subr.bf16.mxu0 0
      %395 = vmatpush1.bf16.msra.mxu0 0
      %396 = vmatprep.subr.bf16.mxu0 0
      %397 = vmatpush1.bf16.msra.mxu0 0
      %398 = vmatprep.subr.bf16.mxu0 0
      %399 = vmatpush1.bf16.msra.mxu0 0
      %400 = vmatprep.subr.bf16.mxu0 0
      %401 = vmatpush1.bf16.msra.mxu0 0
      %402 = vmatprep.subr.bf16.mxu0 0
      %403 = vmatpush1.bf16.msra.mxu0 0
      %404 = vmatprep.subr.bf16.mxu0 0
      %405 = vmatpush1.bf16.msra.mxu0 0
      %406 = vmatprep.subr.bf16.mxu0 0
      %407 = vmatpush1.bf16.msra.mxu0 0
      %408 = vmatprep.subr.bf16.mxu0 0
      %409 = vmatpush1.bf16.msra.mxu0 0
      %410 = vmatprep.subr.bf16.mxu0 0
      %411 = vmatpush1.bf16.msra.mxu0 0
      %412 = vmatprep.mubr.bf16.mxu0 0
      %413 = vmatmul.mubr.bf16.gmra.mrb[0].mxu0 %v353
      %v414 = vpop.f32.mrb[0].mxu0
      %v415 = vadd.f32 0.0, %v414
      %v416 = vpop.f32.mrb[0].mxu0
      %v417 = vpop.f32.mrb[0].mxu0
      %v418 = vadd.f32 0.0, %v417
      %v419 = vpop.f32.mrb[0].mxu0
      %420 = vmatprep.mubr.bf16.mxu0 0
      %421 = vmatmul.mubr.bf16.gmra.mrb[0].mxu0 %v356
      %v422 = vpop.f32.mrb[0].mxu0
      %v423 = vadd.f32 0.0, %v422
      %v424 = vpop.f32.mrb[0].mxu0
      %v425 = vpop.f32.mrb[0].mxu0
      %v426 = vadd.f32 0.0, %v425
      %v427 = vpop.f32.mrb[0].mxu0
      %428 = vmatprep.mubr.bf16.mxu0 0
      %429 = vmatmul.mubr.bf16.gmra.mrb[0].mxu0 %v359
      %v430 = vpop.f32.mrb[0].mxu0
      %v431 = vadd.f32 0.0, %v430
      %v432 = vpop.f32.mrb[0].mxu0
      %v433 = vpop.f32.mrb[0].mxu0
      %v434 = vadd.f32 0.0, %v433
      %v435 = vpop.f32.mrb[0].mxu0
      %436 = vmatprep.mubr.bf16.mxu0 0
      %437 = vmatmul.mubr.bf16.gmra.mrb[0].mxu0 %v362
      %v438 = vpop.f32.mrb[0].mxu0
      %v439 = vadd.f32 0.0, %v438
      %v440 = vpop.f32.mrb[0].mxu0
      %v441 = vpop.f32.mrb[0].mxu0
      %v442 = vadd.f32 0.0, %v441
      %v443 = vpop.f32.mrb[0].mxu0
      %444 = vmatprep.mubr.bf16.mxu0 0
      %445 = vmatmul.mubr.bf16.gmra.mrb[0].mxu0 %v365
      %v446 = vpop.f32.mrb[0].mxu0
      %v447 = vadd.f32 0.0, %v446
      %v448 = vpop.f32.mrb[0].mxu0
      %v449 = vpop.f32.mrb[0].mxu0
      %v450 = vadd.f32 0.0, %v449
      %v451 = vpop.f32.mrb[0].mxu0
      %452 = vmatprep.mubr.bf16.mxu0 0
      %453 = vmatmul.mubr.bf16.gmra.mrb[0].mxu0 %v368
      %v454 = vpop.f32.mrb[0].mxu0
      %v455 = vadd.f32 0.0, %v454
      %v456 = vpop.f32.mrb[0].mxu0
      %v457 = vpop.f32.mrb[0].mxu0
      %v458 = vadd.f32 0.0, %v457
      %v459 = vpop.f32.mrb[0].mxu0
      %460 = vmatprep.mubr.bf16.mxu0 0
      %461 = vmatmul.mubr.bf16.gmra.mrb[0].mxu0 %v371
      %v462 = vpop.f32.mrb[0].mxu0
      %v463 = vadd.f32 0.0, %v462
      %v464 = vpop.f32.mrb[0].mxu0
      %v465 = vpop.f32.mrb[0].mxu0
      %v466 = vadd.f32 0.0, %v465
      %v467 = vpop.f32.mrb[0].mxu0
      %468 = vmatprep.mubr.bf16.mxu0 0
      %469 = vmatmul.mubr.bf16.gmra.mrb[0].mxu0 %v374
      %v470 = vpop.f32.mrb[0].mxu0
      %v471 = vadd.f32 0.0, %v470
      %v472 = vpop.f32.mrb[0].mxu0
      %v473 = vpop.f32.mrb[0].mxu0
      %v474 = vadd.f32 0.0, %v473
      %v475 = vpop.f32.mrb[0].mxu0
      %476 = vdwg.mxu0
      %v477 = vadd.f32 %v415, %v418
      %v478 = vadd.f32 %v477, %v423
      %v479 = vadd.f32 %v478, %v426
      %v480 = vadd.f32 %v479, %v431
      %v481 = vadd.f32 %v480, %v434
      %v482 = vadd.f32 %v481, %v439
      %v483 = vadd.f32 %v482, %v442
      %v484 = vadd.f32 %v483, %v447
      %v485 = vadd.f32 %v484, %v450
      %v486 = vadd.f32 %v485, %v455
      %v487 = vadd.f32 %v486, %v458
      %v488 = vadd.f32 %v487, %v463
      %v489 = vadd.f32 %v488, %v466
      %v490 = vadd.f32 %v489, %v471
      %v491 = vadd.f32 %v490, %v474
      %v492 = vrot.slane %v491, 4
      %v493 = vadd.f32 %v491, %v492
      %v494 = vrot.slane %v493, 2
      %v495 = vadd.f32 %v493, %v494
      %v496 = vrot.slane %v495, 1
      %v497 = vadd.f32 %v495, %v496
      %v498 = vmul.f32 %v497, 0.0078125
      %v499 = vsub.f32 %v415, %v498
      %v500 = vsub.f32 %v418, %v498
      %v501 = vsub.f32 %v423, %v498
      %v502 = vsub.f32 %v426, %v498
      %v503 = vsub.f32 %v431, %v498
      %v504 = vsub.f32 %v434, %v498
      %v505 = vsub.f32 %v439, %v498
      %v506 = vsub.f32 %v442, %v498
      %v507 = vsub.f32 %v447, %v498
      %v508 = vsub.f32 %v450, %v498
      %v509 = vsub.f32 %v455, %v498
      %v510 = vsub.f32 %v458, %v498
      %v511 = vsub.f32 %v463, %v498
      %v512 = vsub.f32 %v466, %v498
      %v513 = vsub.f32 %v471, %v498
      %v514 = vsub.f32 %v474, %v498
      %v515 = vmul.f32 %v499, %v499
      %v516 = vmul.f32 %v500, %v500
      %v517 = vmul.f32 %v501, %v501
      %v518 = vmul.f32 %v502, %v502
      %v519 = vmul.f32 %v503, %v503
      %v520 = vmul.f32 %v504, %v504
      %v521 = vmul.f32 %v505, %v505
      %v522 = vmul.f32 %v506, %v506
      %v523 = vmul.f32 %v507, %v507
      %v524 = vmul.f32 %v508, %v508
      %v525 = vmul.f32 %v509, %v509
      %v526 = vmul.f32 %v510, %v510
      %v527 = vmul.f32 %v511, %v511
      %v528 = vmul.f32 %v512, %v512
      %v529 = vmul.f32 %v513, %v513
      %v530 = vmul.f32 %v514, %v514
      %v531 = vadd.f32 %v515, %v516
      %v532 = vadd.f32 %v531, %v517
      %v533 = vadd.f32 %v532, %v518
      %v534 = vadd.f32 %v533, %v519
      %v535 = vadd.f32 %v534, %v520
      %v536 = vadd.f32 %v535, %v521
      %v537 = vadd.f32 %v536, %v522
      %v538 = vadd.f32 %v537, %v523
      %v539 = vadd.f32 %v538, %v524
      %v540 = vadd.f32 %v539, %v525
      %v541 = vadd.f32 %v540, %v526
      %v542 = vadd.f32 %v541, %v527
      %v543 = vadd.f32 %v542, %v528
      %v544 = vadd.f32 %v543, %v529
      %v545 = vadd.f32 %v544, %v530
      %v546 = vrot.slane %v545, 4
      %v547 = vadd.f32 %v545, %v546
      %v548 = vrot.slane %v547, 2
      %v549 = vadd.f32 %v547, %v548
      %v550 = vrot.slane %v549, 1
      %v551 = vadd.f32 %v549, %v550
      %v552 = vmul.f32 %v551, 0.0078125
      %v553 = vld [vmem:[%s275] sm:$0x1]
      %v554 = vadd.f32 %v552, 1e-05
      %v555 = vrsqrt.pop %v554
      %v556 = vmul.f32 %v553, %v555
      %v558 = vlaneseq
      %v559 = vshrl.u32 %v558, 7
      %v560 = vsub.s32 0, %v559
      %v561 = vrot.slane %v556, %v560
      %v563 = vmul.f32 %v499, %v561
      %v564 = vmul.f32 %v500, %v561
      %v565 = vmul.f32 %v501, %v561
      %v566 = vmul.f32 %v502, %v561
      %v567 = vmul.f32 %v503, %v561
      %v568 = vmul.f32 %v504, %v561
      %v569 = vmul.f32 %v505, %v561
      %v570 = vmul.f32 %v506, %v561
      %v571 = vmul.f32 %v507, %v561
      %v572 = vmul.f32 %v508, %v561
      %v573 = vmul.f32 %v509, %v561
      %v574 = vmul.f32 %v510, %v561
      %v575 = vmul.f32 %v511, %v561
      %v576 = vmul.f32 %v512, %v561
      %v577 = vmul.f32 %v513, %v561
      %v578 = vmul.f32 %v514, %v561
      %v579 = vld [vmem:[%s278] sm:$0x1]
      %v581 = vlaneseq
      %v582 = vshrl.u32 %v581, 7
      %v583 = vsub.s32 0, %v582
      %v584 = vrot.slane %v579, %v583
      %v586 = vadd.f32 %v563, %v584
      %v587 = vadd.f32 %v564, %v584
      %v588 = vadd.f32 %v565, %v584
      %v589 = vadd.f32 %v566, %v584
      %v590 = vadd.f32 %v567, %v584
      %v591 = vadd.f32 %v568, %v584
      %v592 = vadd.f32 %v569, %v584
      %v593 = vadd.f32 %v570, %v584
      %v594 = vadd.f32 %v571, %v584
      %v595 = vadd.f32 %v572, %v584
      %v596 = vadd.f32 %v573, %v584
      %v597 = vadd.f32 %v574, %v584
      %v598 = vadd.f32 %v575, %v584
      %v599 = vadd.f32 %v576, %v584
      %v600 = vadd.f32 %v577, %v584
      %v601 = vadd.f32 %v578, %v584
      %v602 = vld [vmem:[%s281] sm:$0x1]
      %vm603 = vcmp.gt.f32.partialorder %v602, 0.5
      %v604 = vmax.f32 %v586, 0.0
      %v605 = vmax.f32 %v587, 0.0
      %v606 = vmax.f32 %v588, 0.0
      %v607 = vmax.f32 %v589, 0.0
      %v608 = vmax.f32 %v590, 0.0
      %v609 = vmax.f32 %v591, 0.0
      %v610 = vmax.f32 %v592, 0.0
      %v611 = vmax.f32 %v593, 0.0
      %v612 = vmax.f32 %v594, 0.0
      %v613 = vmax.f32 %v595, 0.0
      %v614 = vmax.f32 %v596, 0.0
      %v615 = vmax.f32 %v597, 0.0
      %v616 = vmax.f32 %v598, 0.0
      %v617 = vmax.f32 %v599, 0.0
      %v618 = vmax.f32 %v600, 0.0
      %v619 = vmax.f32 %v601, 0.0
      %v620 = vsel %vm603, 1, 0
      %v621 = vlaneseq
      %v622 = vshrl.u32 %v621, 7
      %v623 = vsub.s32 0, %v622
      %v624 = vrot.slane %v620, %v623
      %vm625 = vcmp.eq.s32.totalorder %v624, 1
      %v626 = vsel %vm625, %v604, %v586
      %v627 = vsel %vm625, %v605, %v587
      %v628 = vsel %vm625, %v606, %v588
      %v629 = vsel %vm625, %v607, %v589
      %v630 = vsel %vm625, %v608, %v590
      %v631 = vsel %vm625, %v609, %v591
      %v632 = vsel %vm625, %v610, %v592
      %v633 = vsel %vm625, %v611, %v593
      %v634 = vsel %vm625, %v612, %v594
      %v635 = vsel %vm625, %v613, %v595
      %v636 = vsel %vm625, %v614, %v596
      %v637 = vsel %vm625, %v615, %v597
      %v638 = vsel %vm625, %v616, %v598
      %v639 = vsel %vm625, %v617, %v599
      %v640 = vsel %vm625, %v618, %v600
      %v641 = vsel %vm625, %v619, %v601
      %v642 = vpack.c.bf16 %v627, %v626
      %v643 = vpack.c.bf16 %v629, %v628
      %v644 = vpack.c.bf16 %v631, %v630
      %v645 = vpack.c.bf16 %v633, %v632
      %v646 = vpack.c.bf16 %v635, %v634
      %v647 = vpack.c.bf16 %v637, %v636
      %v648 = vpack.c.bf16 %v639, %v638
      %v649 = vpack.c.bf16 %v641, %v640
      %v658 = vunpack.c.l.b16 %v642
      %v659 = vunpack.c.h.b16 %v642
      %v660 = vunpack.c.l.b16 %v643
      %v661 = vunpack.c.h.b16 %v643
      %v662 = vunpack.c.l.b16 %v644
      %v663 = vunpack.c.h.b16 %v644
      %v664 = vunpack.c.l.b16 %v645
      %v665 = vunpack.c.h.b16 %v645
      %v666 = vunpack.c.l.b16 %v646
      %v667 = vunpack.c.h.b16 %v646
      %v668 = vunpack.c.l.b16 %v647
      %v669 = vunpack.c.h.b16 %v647
      %v670 = vunpack.c.l.b16 %v648
      %v671 = vunpack.c.h.b16 %v648
      %v672 = vunpack.c.l.b16 %v649
      %v673 = vunpack.c.h.b16 %v649
      %v674 = vpack.c.b16 %v658, %v658
      %v675 = vpack.c.b16 %v659, %v659
      %v676 = vpack.c.b16 %v660, %v660
      %v677 = vpack.c.b16 %v661, %v661
      %v678 = vpack.c.b16 %v662, %v662
      %v679 = vpack.c.b16 %v663, %v663
      %v680 = vpack.c.b16 %v664, %v664
      %v681 = vpack.c.b16 %v665, %v665
      %v682 = vpack.c.b16 %v666, %v666
      %v683 = vpack.c.b16 %v667, %v667
      %v684 = vpack.c.b16 %v668, %v668
      %v685 = vpack.c.b16 %v669, %v669
      %v686 = vpack.c.b16 %v670, %v670
      %v687 = vpack.c.b16 %v671, %v671
      %v688 = vpack.c.b16 %v672, %v672
      %v689 = vpack.c.b16 %v673, %v673
      %706 = vst [vmem:[%s286] sm:$0xf] %v674
      %707 = vst [vmem:[%s286 + $0x4] sm:$0xf] %v675
      %708 = vst [vmem:[%s286 + $0x8] sm:$0xf] %v676
      %709 = vst [vmem:[%s286 + $0xc] sm:$0xf] %v677
      %710 = vst [vmem:[%s286 + $0x10] sm:$0xf] %v678
      %711 = vst [vmem:[%s286 + $0x14] sm:$0xf] %v679
      %712 = vst [vmem:[%s286 + $0x18] sm:$0xf] %v680
      %713 = vst [vmem:[%s286 + $0x1c] sm:$0xf] %v681
      %714 = vst [vmem:[%s286 + $0x20] sm:$0xf] %v682
      %715 = vst [vmem:[%s286 + $0x24] sm:$0xf] %v683
      %716 = vst [vmem:[%s286 + $0x28] sm:$0xf] %v684
      %717 = vst [vmem:[%s286 + $0x2c] sm:$0xf] %v685
      %718 = vst [vmem:[%s286 + $0x30] sm:$0xf] %v686
      %719 = vst [vmem:[%s286 + $0x34] sm:$0xf] %v687
      %720 = vst [vmem:[%s286 + $0x38] sm:$0xf] %v688
      %721 = vst [vmem:[%s286 + $0x3c] sm:$0xf] %v689
      %p722 = scmp.lt.s32.totalorder %s16, 1
      %s723 = scalar_select %p722, %s16, 1
      %s724 = smul.addr %s723, 16
      %s725 = smul.addr %s724, 4
      %s726 = scalar_lea.vmem %s5, %s725
      // Predicated region
      $region41: #{forward.7} parent=39 // pred_check
        %p727 = pneg %p164
      $region42: #{forward.7} parent=39 // pred_check_branch
        %729 = sbr.rel (%p727) target = $region44
      $region43: #{forward.7} parent=39 // pred_region
        _
      $region44: #{forward.7} parent=39 // pred_fallthru
        _
    $region40: #{forward.7} parent=5 // pred_fallthru
      _
    %p730 = scmp.le.s32.totalorder 2, %s11
    // Predicated region
    $region45: #{forward.7} parent=5 // pred_check
      %p731 = pneg %p730
    $region46: #{forward.7} parent=5 // pred_check_branch
      %733 = sbr.rel (%p731) target = $region48
    $region47: #{forward.7} parent=5 // pred_region
      %s734 = ssub.s32 %s11, 2
      // Predicated region
      $region49: #{forward.7} parent=47 // pred_check
        %p735 = pneg %p170
      $region50: #{forward.7} parent=47 // pred_check_branch
        %737 = sbr.rel (%p735) target = $region52
      $region51: #{forward.7} parent=47 // pred_region
        %p738 = scmp.lt.s32.totalorder %s17, 1
        %s739 = scalar_select %p738, %s17, 1
        %s740 = smul.addr %s739, 16
        %s741 = smul.addr %s740, 4
        %s742 = scalar_lea.vmem %s5, %s741
      $region52: #{forward.7} parent=47 // pred_fallthru
        _
    $region48: #{forward.7} parent=5 // pred_fallthru
      _
  $region6: #{forward.7} parent=0 // loop_footer
    %s15 = sadd.s32 1, %s11
  $region7: #{forward.7} parent=0 // loop_footer_branch
    %10 = sbr.rel target = $region3
  $region8: #{forward.7} parent=0 // loop_exit
    _

// kernel: forward.8
$region0: #{forward.8}
  #allocation0 [shape = 'u32[]', space=smem, size = 0x4, offset = 0x4, fixed_abs, tag = 'smem constant byte address 0x4 - core index']
  #allocation1 [shape = 'u32[144,128]{1,0:T(1,128)}', space=vmem, size = 0x12000, scoped, tag = 'internal scratch']
  %s0 = inlined_call_operand.vmem [shape: bf16[1,128,6], index: 0, kind: input, shape index: {}]
  %s1 = inlined_call_operand.vmem [shape: bf16[1,6,128], index: 1, kind: input, shape index: {}]
  %s2 = inlined_call_operand.vmem [shape: f32[1,1,128], index: 2, kind: input, shape index: {}]
  %s3 = inlined_call_operand.vmem [shape: f32[1,1,128], index: 3, kind: input, shape index: {}]
  %s4 = inlined_call_operand.vmem [shape: f32[1,1,128], index: 4, kind: input, shape index: {}]
  %s5 = inlined_call_operand.vmem [shape: bf16[1,128,128], index: 5, kind: output, shape index: {}]
  %s6 = sld [smem:[#allocation0]]
  $region30: #{forward.8} parent=0
    _
  %s8 = ssub.s32 1, %s6
  %s9 = scalar_select 0, %s8, %s6
  // Predicated region
  $region2: #{forward.8} parent=0 // pred_check
    _
  $region3: #{forward.8} parent=0 // pred_check_branch
    %11 = sbr.rel (0) target = $region5
  $region4: #{forward.8} parent=0 // pred_region
    _
  $region5: #{forward.8} parent=0 // pred_fallthru
    _
  // Predicated region
  $region6: #{forward.8} parent=0 // pred_check
    _
  $region7: #{forward.8} parent=0 // pred_check_branch
    %13 = sbr.rel (0) target = $region9
  $region8: #{forward.8} parent=0 // pred_region
    _
  $region9: #{forward.8} parent=0 // pred_fallthru
    _
  // Predicated region
  $region10: #{forward.8} parent=0 // pred_check
    _
  $region11: #{forward.8} parent=0 // pred_check_branch
    %15 = sbr.rel (0) target = $region13
  $region12: #{forward.8} parent=0 // pred_region
    _
  $region13: #{forward.8} parent=0 // pred_fallthru
    _
  // Predicated region
  $region14: #{forward.8} parent=0 // pred_check
    _
  $region15: #{forward.8} parent=0 // pred_check_branch
    %17 = sbr.rel (0) target = $region17
  $region16: #{forward.8} parent=0 // pred_region
    _
  $region17: #{forward.8} parent=0 // pred_fallthru
    _
  // Predicated region
  $region18: #{forward.8} parent=0 // pred_check
    _
  $region19: #{forward.8} parent=0 // pred_check_branch
    %19 = sbr.rel (0) target = $region21
  $region20: #{forward.8} parent=0 // pred_region
    _
  $region21: #{forward.8} parent=0 // pred_fallthru
    _
  %v21 = vld [vmem:[%s0] sm:$0xf]
  %v22 = vld [vmem:[%s0 + $0x4] sm:$0xf]
  %v23 = vld [vmem:[%s0 + $0x8] sm:$0xf]
  %v24 = vld [vmem:[%s0 + $0xc] sm:$0xf]
  %v25 = vld [vmem:[%s0 + $0x10] sm:$0xf]
  %v26 = vld [vmem:[%s0 + $0x14] sm:$0xf]
  %v27 = vld [vmem:[%s0 + $0x18] sm:$0xf]
  %v28 = vld [vmem:[%s0 + $0x1c] sm:$0xf]
  %v29 = vld [vmem:[%s0 + $0x20] sm:$0xf]
  %v30 = vld [vmem:[%s0 + $0x24] sm:$0xf]
  %v31 = vld [vmem:[%s0 + $0x28] sm:$0xf]
  %v32 = vld [vmem:[%s0 + $0x2c] sm:$0xf]
  %v33 = vld [vmem:[%s0 + $0x30] sm:$0xf]
  %v34 = vld [vmem:[%s0 + $0x34] sm:$0xf]
  %v35 = vld [vmem:[%s0 + $0x38] sm:$0xf]
  %v36 = vld [vmem:[%s0 + $0x3c] sm:$0xf]
  %v37 = vld [vmem:[%s1] sm:$0x7]
  %v54 = vunpack.c.l.b16 %v21
  %v55 = vunpack.c.l.b16 %v22
  %v56 = vunpack.c.l.b16 %v23
  %v57 = vunpack.c.l.b16 %v24
  %v58 = vunpack.c.l.b16 %v25
  %v59 = vunpack.c.l.b16 %v26
  %v60 = vunpack.c.l.b16 %v27
  %v61 = vunpack.c.l.b16 %v28
  %v62 = vunpack.c.l.b16 %v29
  %v63 = vunpack.c.l.b16 %v30
  %v64 = vunpack.c.l.b16 %v31
  %v65 = vunpack.c.l.b16 %v32
  %v66 = vunpack.c.l.b16 %v33
  %v67 = vunpack.c.l.b16 %v34
  %v68 = vunpack.c.l.b16 %v35
  %v69 = vunpack.c.l.b16 %v36
  %v70 = vpack.c.b16 %v55, %v54
  %v71 = vpack.c.b16 %v57, %v56
  %v72 = vpack.c.b16 %v59, %v58
  %v73 = vpack.c.b16 %v61, %v60
  %v74 = vpack.c.b16 %v63, %v62
  %v75 = vpack.c.b16 %v65, %v64
  %v76 = vpack.c.b16 %v67, %v66
  %v77 = vpack.c.b16 %v69, %v68
  %vm78 = vcmask 48128
  %v80 = vsel %vm78, %v70, 0
  %v83 = vsel %vm78, %v71, 0
  %v86 = vsel %vm78, %v72, 0
  %v89 = vsel %vm78, %v73, 0
  %v92 = vsel %vm78, %v74, 0
  %v95 = vsel %vm78, %v75, 0
  %v98 = vsel %vm78, %v76, 0
  %v101 = vsel %vm78, %v77, 0
  %vm103 = vcmask 1042432
  %v105 = vsel %vm103, %v37, 0
  %107 = vmatprep.subr.bf16.mxu0 0
  %108 = vmatpush1.bf16.msra.mxu0 %v105
  %109 = vmatprep.subr.bf16.mxu0 0
  %110 = vmatpush1.bf16.msra.mxu0 0
  %111 = vmatprep.subr.bf16.mxu0 0
  %112 = vmatpush1.bf16.msra.mxu0 0
  %113 = vmatprep.subr.bf16.mxu0 0
  %114 = vmatpush1.bf16.msra.mxu0 0
  %115 = vmatprep.subr.bf16.mxu0 0
  %116 = vmatpush1.bf16.msra.mxu0 0
  %117 = vmatprep.subr.bf16.mxu0 0
  %118 = vmatpush1.bf16.msra.mxu0 0
  %119 = vmatprep.subr.bf16.mxu0 0
  %120 = vmatpush1.bf16.msra.mxu0 0
  %121 = vmatprep.subr.bf16.mxu0 0
  %122 = vmatpush1.bf16.msra.mxu0 0
  %123 = vmatprep.subr.bf16.mxu0 0
  %124 = vmatpush1.bf16.msra.mxu0 0
  %125 = vmatprep.subr.bf16.mxu0 0
  %126 = vmatpush1.bf16.msra.mxu0 0
  %127 = vmatprep.subr.bf16.mxu0 0
  %128 = vmatpush1.bf16.msra.mxu0 0
  %129 = vmatprep.subr.bf16.mxu0 0
  %130 = vmatpush1.bf16.msra.mxu0 0
  %131 = vmatprep.subr.bf16.mxu0 0
  %132 = vmatpush1.bf16.msra.mxu0 0
  %133 = vmatprep.subr.bf16.mxu0 0
  %134 = vmatpush1.bf16.msra.mxu0 0
  %135 = vmatprep.subr.bf16.mxu0 0
  %136 = vmatpush1.bf16.msra.mxu0 0
  %137 = vmatprep.subr.bf16.mxu0 0
  %138 = vmatpush1.bf16.msra.mxu0 0
  %139 = vmatprep.mubr.bf16.mxu0 0
  %140 = vmatmul.mubr.bf16.gmra.mrb[0].mxu0 %v80
  %v141 = vpop.f32.mrb[0].mxu0
  %v142 = vadd.f32 0.0, %v141
  %v143 = vpop.f32.mrb[0].mxu0
  %v144 = vpop.f32.mrb[0].mxu0
  %v145 = vadd.f32 0.0, %v144
  %v146 = vpop.f32.mrb[0].mxu0
  %147 = vmatprep.mubr.bf16.mxu0 0
  %148 = vmatmul.mubr.bf16.gmra.mrb[0].mxu0 %v83
  %v149 = vpop.f32.mrb[0].mxu0
  %v150 = vadd.f32 0.0, %v149
  %v151 = vpop.f32.mrb[0].mxu0
  %v152 = vpop.f32.mrb[0].mxu0
  %v153 = vadd.f32 0.0, %v152
  %v154 = vpop.f32.mrb[0].mxu0
  %155 = vmatprep.mubr.bf16.mxu0 0
  %156 = vmatmul.mubr.bf16.gmra.mrb[0].mxu0 %v86
  %v157 = vpop.f32.mrb[0].mxu0
  %v158 = vadd.f32 0.0, %v157
  %v159 = vpop.f32.mrb[0].mxu0
  %v160 = vpop.f32.mrb[0].mxu0
  %v161 = vadd.f32 0.0, %v160
  %v162 = vpop.f32.mrb[0].mxu0
  %163 = vmatprep.mubr.bf16.mxu0 0
  %164 = vmatmul.mubr.bf16.gmra.mrb[0].mxu0 %v89
  %v165 = vpop.f32.mrb[0].mxu0
  %v166 = vadd.f32 0.0, %v165
  %v167 = vpop.f32.mrb[0].mxu0
  %v168 = vpop.f32.mrb[0].mxu0
  %v169 = vadd.f32 0.0, %v168
  %v170 = vpop.f32.mrb[0].mxu0
  %171 = vmatprep.mubr.bf16.mxu0 0
  %172 = vmatmul.mubr.bf16.gmra.mrb[0].mxu0 %v92
  %v173 = vpop.f32.mrb[0].mxu0
  %v174 = vadd.f32 0.0, %v173
  %v175 = vpop.f32.mrb[0].mxu0
  %v176 = vpop.f32.mrb[0].mxu0
  %v177 = vadd.f32 0.0, %v176
  %v178 = vpop.f32.mrb[0].mxu0
  %179 = vmatprep.mubr.bf16.mxu0 0
  %180 = vmatmul.mubr.bf16.gmra.mrb[0].mxu0 %v95
  %v181 = vpop.f32.mrb[0].mxu0
  %v182 = vadd.f32 0.0, %v181
  %v183 = vpop.f32.mrb[0].mxu0
  %v184 = vpop.f32.mrb[0].mxu0
  %v185 = vadd.f32 0.0, %v184
  %v186 = vpop.f32.mrb[0].mxu0
  %187 = vmatprep.mubr.bf16.mxu0 0
  %188 = vmatmul.mubr.bf16.gmra.mrb[0].mxu0 %v98
  %v189 = vpop.f32.mrb[0].mxu0
  %v190 = vadd.f32 0.0, %v189
  %v191 = vpop.f32.mrb[0].mxu0
  %v192 = vpop.f32.mrb[0].mxu0
  %v193 = vadd.f32 0.0, %v192
  %v194 = vpop.f32.mrb[0].mxu0
  %195 = vmatprep.mubr.bf16.mxu0 0
  %196 = vmatmul.mubr.bf16.gmra.mrb[0].mxu0 %v101
  %v197 = vpop.f32.mrb[0].mxu0
  %v198 = vadd.f32 0.0, %v197
  %v199 = vpop.f32.mrb[0].mxu0
  %v200 = vpop.f32.mrb[0].mxu0
  %v201 = vadd.f32 0.0, %v200
  %v202 = vpop.f32.mrb[0].mxu0
  %203 = vdwg.mxu0
  %v204 = vadd.f32 %v142, %v145
  %v205 = vadd.f32 %v204, %v150
  %v206 = vadd.f32 %v205, %v153
  %v207 = vadd.f32 %v206, %v158
  %v208 = vadd.f32 %v207, %v161
  %v209 = vadd.f32 %v208, %v166
  %v210 = vadd.f32 %v209, %v169
  %v211 = vadd.f32 %v210, %v174
  %v212 = vadd.f32 %v211, %v177
  %v213 = vadd.f32 %v212, %v182
  %v214 = vadd.f32 %v213, %v185
  %v215 = vadd.f32 %v214, %v190
  %v216 = vadd.f32 %v215, %v193
  %v217 = vadd.f32 %v216, %v198
  %v218 = vadd.f32 %v217, %v201
  %v219 = vrot.slane %v218, 4
  %v220 = vadd.f32 %v218, %v219
  %v221 = vrot.slane %v220, 2
  %v222 = vadd.f32 %v220, %v221
  %v223 = vrot.slane %v222, 1
  %v224 = vadd.f32 %v222, %v223
  %v225 = vmul.f32 %v224, 0.0078125
  %v226 = vsub.f32 %v142, %v225
  %v227 = vsub.f32 %v145, %v225
  %v228 = vsub.f32 %v150, %v225
  %v229 = vsub.f32 %v153, %v225
  %v230 = vsub.f32 %v158, %v225
  %v231 = vsub.f32 %v161, %v225
  %v232 = vsub.f32 %v166, %v225
  %v233 = vsub.f32 %v169, %v225
  %v234 = vsub.f32 %v174, %v225
  %v235 = vsub.f32 %v177, %v225
  %v236 = vsub.f32 %v182, %v225
  %v237 = vsub.f32 %v185, %v225
  %v238 = vsub.f32 %v190, %v225
  %v239 = vsub.f32 %v193, %v225
  %v240 = vsub.f32 %v198, %v225
  %v241 = vsub.f32 %v201, %v225
  %v242 = vmul.f32 %v226, %v226
  %v243 = vmul.f32 %v227, %v227
  %v244 = vmul.f32 %v228, %v228
  %v245 = vmul.f32 %v229, %v229
  %v246 = vmul.f32 %v230, %v230
  %v247 = vmul.f32 %v231, %v231
  %v248 = vmul.f32 %v232, %v232
  %v249 = vmul.f32 %v233, %v233
  %v250 = vmul.f32 %v234, %v234
  %v251 = vmul.f32 %v235, %v235
  %v252 = vmul.f32 %v236, %v236
  %v253 = vmul.f32 %v237, %v237
  %v254 = vmul.f32 %v238, %v238
  %v255 = vmul.f32 %v239, %v239
  %v256 = vmul.f32 %v240, %v240
  %v257 = vmul.f32 %v241, %v241
  %v258 = vadd.f32 %v242, %v243
  %v259 = vadd.f32 %v258, %v244
  %v260 = vadd.f32 %v259, %v245
  %v261 = vadd.f32 %v260, %v246
  %v262 = vadd.f32 %v261, %v247
  %v263 = vadd.f32 %v262, %v248
  %v264 = vadd.f32 %v263, %v249
  %v265 = vadd.f32 %v264, %v250
  %v266 = vadd.f32 %v265, %v251
  %v267 = vadd.f32 %v266, %v252
  %v268 = vadd.f32 %v267, %v253
  %v269 = vadd.f32 %v268, %v254
  %v270 = vadd.f32 %v269, %v255
  %v271 = vadd.f32 %v270, %v256
  %v272 = vadd.f32 %v271, %v257
  %v273 = vrot.slane %v272, 4
  %v274 = vadd.f32 %v272, %v273
  %v275 = vrot.slane %v274, 2
  %v276 = vadd.f32 %v274, %v275
  %v277 = vrot.slane %v276, 1
  %v278 = vadd.f32 %v276, %v277
  %v279 = vmul.f32 %v278, 0.0078125
  %v280 = vld [vmem:[%s2] sm:$0x1]
  %v281 = vadd.f32 %v279, 1e-05
  %v282 = vrsqrt.pop %v281
  %v283 = vmul.f32 %v280, %v282
  %v285 = vlaneseq
  %v286 = vshrl.u32 %v285, 7
  %v287 = vsub.s32 0, %v286
  %v288 = vrot.slane %v283, %v287
  %v290 = vmul.f32 %v226, %v288
  %v291 = vmul.f32 %v227, %v288
  %v292 = vmul.f32 %v228, %v288
  %v293 = vmul.f32 %v229, %v288
  %v294 = vmul.f32 %v230, %v288
  %v295 = vmul.f32 %v231, %v288
  %v296 = vmul.f32 %v232, %v288
  %v297 = vmul.f32 %v233, %v288
  %v298 = vmul.f32 %v234, %v288
  %v299 = vmul.f32 %v235, %v288
  %v300 = vmul.f32 %v236, %v288
  %v301 = vmul.f32 %v237, %v288
  %v302 = vmul.f32 %v238, %v288
  %v303 = vmul.f32 %v239, %v288
  %v304 = vmul.f32 %v240, %v288
  %v305 = vmul.f32 %v241, %v288
  %v306 = vld [vmem:[%s3] sm:$0x1]
  %v308 = vlaneseq
  %v309 = vshrl.u32 %v308, 7
  %v310 = vsub.s32 0, %v309
  %v311 = vrot.slane %v306, %v310
  %v313 = vadd.f32 %v290, %v311
  %v314 = vadd.f32 %v291, %v311
  %v315 = vadd.f32 %v292, %v311
  %v316 = vadd.f32 %v293, %v311
  %v317 = vadd.f32 %v294, %v311
  %v318 = vadd.f32 %v295, %v311
  %v319 = vadd.f32 %v296, %v311
  %v320 = vadd.f32 %v297, %v311
  %v321 = vadd.f32 %v298, %v311
  %v322 = vadd.f32 %v299, %v311
  %v323 = vadd.f32 %v300, %v311
  %v324 = vadd.f32 %v301, %v311
  %v325 = vadd.f32 %v302, %v311
  %v326 = vadd.f32 %v303, %v311
  %v327 = vadd.f32 %v304, %v311
  %v328 = vadd.f32 %v305, %v311
  %v329 = vld [vmem:[%s4] sm:$0x1]
  %vm330 = vcmp.gt.f32.partialorder %v329, 0.5
  %v331 = vmax.f32 %v313, 0.0
  %v332 = vmax.f32 %v314, 0.0
  %v333 = vmax.f32 %v315, 0.0
  %v334 = vmax.f32 %v316, 0.0
  %v335 = vmax.f32 %v317, 0.0
  %v336 = vmax.f32 %v318, 0.0
  %v337 = vmax.f32 %v319, 0.0
  %v338 = vmax.f32 %v320, 0.0
  %v339 = vmax.f32 %v321, 0.0
  %v340 = vmax.f32 %v322, 0.0
  %v341 = vmax.f32 %v323, 0.0
  %v342 = vmax.f32 %v324, 0.0
  %v343 = vmax.f32 %v325, 0.0
  %v344 = vmax.f32 %v326, 0.0
  %v345 = vmax.f32 %v327, 0.0
  %v346 = vmax.f32 %v328, 0.0
  %v347 = vsel %vm330, 1, 0
  %v348 = vlaneseq
  %v349 = vshrl.u32 %v348, 7
  %v350 = vsub.s32 0, %v349
  %v351 = vrot.slane %v347, %v350
  %vm352 = vcmp.eq.s32.totalorder %v351, 1
  %v353 = vsel %vm352, %v331, %v313
  %v354 = vsel %vm352, %v332, %v314
  %v355 = vsel %vm352, %v333, %v315
  %v356 = vsel %vm352, %v334, %v316
  %v357 = vsel %vm352, %v335, %v317
  %v358 = vsel %vm352, %v336, %v318
  %v359 = vsel %vm352, %v337, %v319
  %v360 = vsel %vm352, %v338, %v320
  %v361 = vsel %vm352, %v339, %v321
  %v362 = vsel %vm352, %v340, %v322
  %v363 = vsel %vm352, %v341, %v323
  %v364 = vsel %vm352, %v342, %v324
  %v365 = vsel %vm352, %v343, %v325
  %v366 = vsel %vm352, %v344, %v326
  %v367 = vsel %vm352, %v345, %v327
  %v368 = vsel %vm352, %v346, %v328
  %v369 = vpack.c.bf16 %v354, %v353
  %v370 = vpack.c.bf16 %v356, %v355
  %v371 = vpack.c.bf16 %v358, %v357
  %v372 = vpack.c.bf16 %v360, %v359
  %v373 = vpack.c.bf16 %v362, %v361
  %v374 = vpack.c.bf16 %v364, %v363
  %v375 = vpack.c.bf16 %v366, %v365
  %v376 = vpack.c.bf16 %v368, %v367
  %v385 = vunpack.c.l.b16 %v369
  %v386 = vunpack.c.h.b16 %v369
  %v387 = vunpack.c.l.b16 %v370
  %v388 = vunpack.c.h.b16 %v370
  %v389 = vunpack.c.l.b16 %v371
  %v390 = vunpack.c.h.b16 %v371
  %v391 = vunpack.c.l.b16 %v372
  %v392 = vunpack.c.h.b16 %v372
  %v393 = vunpack.c.l.b16 %v373
  %v394 = vunpack.c.h.b16 %v373
  %v395 = vunpack.c.l.b16 %v374
  %v396 = vunpack.c.h.b16 %v374
  %v397 = vunpack.c.l.b16 %v375
  %v398 = vunpack.c.h.b16 %v375
  %v399 = vunpack.c.l.b16 %v376
  %v400 = vunpack.c.h.b16 %v376
  %v401 = vpack.c.b16 %v385, %v385
  %v402 = vpack.c.b16 %v386, %v386
  %v403 = vpack.c.b16 %v387, %v387
  %v404 = vpack.c.b16 %v388, %v388
  %v405 = vpack.c.b16 %v389, %v389
  %v406 = vpack.c.b16 %v390, %v390
  %v407 = vpack.c.b16 %v391, %v391
  %v408 = vpack.c.b16 %v392, %v392
  %v409 = vpack.c.b16 %v393, %v393
  %v410 = vpack.c.b16 %v394, %v394
  %v411 = vpack.c.b16 %v395, %v395
  %v412 = vpack.c.b16 %v396, %v396
  %v413 = vpack.c.b16 %v397, %v397
  %v414 = vpack.c.b16 %v398, %v398
  %v415 = vpack.c.b16 %v399, %v399
  %v416 = vpack.c.b16 %v400, %v400
  %433 = vst [vmem:[%s5] sm:$0xf] %v401
  %434 = vst [vmem:[%s5 + $0x4] sm:$0xf] %v402
  %435 = vst [vmem:[%s5 + $0x8] sm:$0xf] %v403
  %436 = vst [vmem:[%s5 + $0xc] sm:$0xf] %v404
  %437 = vst [vmem:[%s5 + $0x10] sm:$0xf] %v405
  %438 = vst [vmem:[%s5 + $0x14] sm:$0xf] %v406
  %439 = vst [vmem:[%s5 + $0x18] sm:$0xf] %v407
  %440 = vst [vmem:[%s5 + $0x1c] sm:$0xf] %v408
  %441 = vst [vmem:[%s5 + $0x20] sm:$0xf] %v409
  %442 = vst [vmem:[%s5 + $0x24] sm:$0xf] %v410
  %443 = vst [vmem:[%s5 + $0x28] sm:$0xf] %v411
  %444 = vst [vmem:[%s5 + $0x2c] sm:$0xf] %v412
  %445 = vst [vmem:[%s5 + $0x30] sm:$0xf] %v413
  %446 = vst [vmem:[%s5 + $0x34] sm:$0xf] %v414
  %447 = vst [vmem:[%s5 + $0x38] sm:$0xf] %v415
  %448 = vst [vmem:[%s5 + $0x3c] sm:$0xf] %v416
  // Predicated region
  $region22: #{forward.8} parent=0 // pred_check
    _
  $region23: #{forward.8} parent=0 // pred_check_branch
    %450 = sbr.rel (0) target = $region25
  $region24: #{forward.8} parent=0 // pred_region
    _
  $region25: #{forward.8} parent=0 // pred_fallthru
    _
  // Predicated region
  $region26: #{forward.8} parent=0 // pred_check
    _
  $region27: #{forward.8} parent=0 // pred_check_branch
    %452 = sbr.rel (0) target = $region29
  $region28: #{forward.8} parent=0 // pred_region
    _
  $region29: #{forward.8} parent=0 // pred_fallthru
    _

// kernel: forward.9
$region0: #{forward.9}
  #allocation0 [shape = 'u32[]', space=smem, size = 0x4, offset = 0x4, fixed_abs, tag = 'smem constant byte address 0x4 - core index']
  #allocation1 [shape = 'u32[144,128]{1,0:T(1,128)}', space=vmem, size = 0x12000, scoped, tag = 'internal scratch']
  %s0 = inlined_call_operand.vmem [shape: bf16[1,128,9], index: 0, kind: input, shape index: {}]
  %s1 = inlined_call_operand.vmem [shape: bf16[1,9,128], index: 1, kind: input, shape index: {}]
  %s2 = inlined_call_operand.vmem [shape: f32[1,1,128], index: 2, kind: input, shape index: {}]
  %s3 = inlined_call_operand.vmem [shape: f32[1,1,128], index: 3, kind: input, shape index: {}]
  %s4 = inlined_call_operand.vmem [shape: f32[1,1,128], index: 4, kind: input, shape index: {}]
  %s5 = inlined_call_operand.vmem [shape: bf16[1,128,128], index: 5, kind: output, shape index: {}]
  %s6 = sld [smem:[#allocation0]]
  $region30: #{forward.9} parent=0
    _
  %s8 = ssub.s32 1, %s6
  %s9 = scalar_select 0, %s8, %s6
  // Predicated region
  $region2: #{forward.9} parent=0 // pred_check
    _
  $region3: #{forward.9} parent=0 // pred_check_branch
    %11 = sbr.rel (0) target = $region5
  $region4: #{forward.9} parent=0 // pred_region
    _
  $region5: #{forward.9} parent=0 // pred_fallthru
    _
  // Predicated region
  $region6: #{forward.9} parent=0 // pred_check
    _
  $region7: #{forward.9} parent=0 // pred_check_branch
    %13 = sbr.rel (0) target = $region9
  $region8: #{forward.9} parent=0 // pred_region
    _
  $region9: #{forward.9} parent=0 // pred_fallthru
    _
  // Predicated region
  $region10: #{forward.9} parent=0 // pred_check
    _
  $region11: #{forward.9} parent=0 // pred_check_branch
    %15 = sbr.rel (0) target = $region13
  $region12: #{forward.9} parent=0 // pred_region
    _
  $region13: #{forward.9} parent=0 // pred_fallthru
    _
  // Predicated region
  $region14: #{forward.9} parent=0 // pred_check
    _
  $region15: #{forward.9} parent=0 // pred_check_branch
    %17 = sbr.rel (0) target = $region17
  $region16: #{forward.9} parent=0 // pred_region
    _
  $region17: #{forward.9} parent=0 // pred_fallthru
    _
  // Predicated region
  $region18: #{forward.9} parent=0 // pred_check
    _
  $region19: #{forward.9} parent=0 // pred_check_branch
    %19 = sbr.rel (0) target = $region21
  $region20: #{forward.9} parent=0 // pred_region
    _
  $region21: #{forward.9} parent=0 // pred_fallthru
    _
  %v21 = vld [vmem:[%s0] sm:$0xf]
  %v22 = vld [vmem:[%s0 + $0x4] sm:$0xf]
  %v23 = vld [vmem:[%s0 + $0x8] sm:$0xf]
  %v24 = vld [vmem:[%s0 + $0xc] sm:$0xf]
  %v25 = vld [vmem:[%s0 + $0x10] sm:$0xf]
  %v26 = vld [vmem:[%s0 + $0x14] sm:$0xf]
  %v27 = vld [vmem:[%s0 + $0x18] sm:$0xf]
  %v28 = vld [vmem:[%s0 + $0x1c] sm:$0xf]
  %v29 = vld [vmem:[%s0 + $0x20] sm:$0xf]
  %v30 = vld [vmem:[%s0 + $0x24] sm:$0xf]
  %v31 = vld [vmem:[%s0 + $0x28] sm:$0xf]
  %v32 = vld [vmem:[%s0 + $0x2c] sm:$0xf]
  %v33 = vld [vmem:[%s0 + $0x30] sm:$0xf]
  %v34 = vld [vmem:[%s0 + $0x34] sm:$0xf]
  %v35 = vld [vmem:[%s0 + $0x38] sm:$0xf]
  %v36 = vld [vmem:[%s0 + $0x3c] sm:$0xf]
  %v37 = vld [vmem:[%s1] sm:$0xf]
  %v38 = vld [vmem:[%s1 + $0x4] sm:$0x1]
  %v55 = vunpack.c.l.b16 %v21
  %v56 = vunpack.c.l.b16 %v22
  %v57 = vunpack.c.l.b16 %v23
  %v58 = vunpack.c.l.b16 %v24
  %v59 = vunpack.c.l.b16 %v25
  %v60 = vunpack.c.l.b16 %v26
  %v61 = vunpack.c.l.b16 %v27
  %v62 = vunpack.c.l.b16 %v28
  %v63 = vunpack.c.l.b16 %v29
  %v64 = vunpack.c.l.b16 %v30
  %v65 = vunpack.c.l.b16 %v31
  %v66 = vunpack.c.l.b16 %v32
  %v67 = vunpack.c.l.b16 %v33
  %v68 = vunpack.c.l.b16 %v34
  %v69 = vunpack.c.l.b16 %v35
  %v70 = vunpack.c.l.b16 %v36
  %v71 = vpack.c.b16 %v56, %v55
  %v72 = vpack.c.b16 %v58, %v57
  %v73 = vpack.c.b16 %v60, %v59
  %v74 = vpack.c.b16 %v62, %v61
  %v75 = vpack.c.b16 %v64, %v63
  %v76 = vpack.c.b16 %v66, %v65
  %v77 = vpack.c.b16 %v68, %v67
  %v78 = vpack.c.b16 %v70, %v69
  %v81 = vunpack.c.l.b16 %v37
  %v82 = vunpack.c.l.b16 %v38
  %v83 = vpack.c.b16 %v82, %v81
  %vm84 = vcmask 72704
  %v86 = vsel %vm84, %v71, 0
  %v89 = vsel %vm84, %v72, 0
  %v92 = vsel %vm84, %v73, 0
  %v95 = vsel %vm84, %v74, 0
  %v98 = vsel %vm84, %v75, 0
  %v101 = vsel %vm84, %v76, 0
  %v104 = vsel %vm84, %v77, 0
  %v107 = vsel %vm84, %v78, 0
  %vm109 = vcmask 1043456
  %vm110 = vcmask 1044480
  %v111 = vsel %vm109, 4294967295, 65535
  %v112 = vsel %vm110, %v111, 0
  %v114 = vand.u32 %v83, %v112
  %116 = vmatprep.subr.bf16.mxu0 0
  %117 = vmatpush1.bf16.msra.mxu0 %v114
  %118 = vmatprep.subr.bf16.mxu0 0
  %119 = vmatpush1.bf16.msra.mxu0 0
  %120 = vmatprep.subr.bf16.mxu0 0
  %121 = vmatpush1.bf16.msra.mxu0 0
  %122 = vmatprep.subr.bf16.mxu0 0
  %123 = vmatpush1.bf16.msra.mxu0 0
  %124 = vmatprep.subr.bf16.mxu0 0
  %125 = vmatpush1.bf16.msra.mxu0 0
  %126 = vmatprep.subr.bf16.mxu0 0
  %127 = vmatpush1.bf16.msra.mxu0 0
  %128 = vmatprep.subr.bf16.mxu0 0
  %129 = vmatpush1.bf16.msra.mxu0 0
  %130 = vmatprep.subr.bf16.mxu0 0
  %131 = vmatpush1.bf16.msra.mxu0 0
  %132 = vmatprep.subr.bf16.mxu0 0
  %133 = vmatpush1.bf16.msra.mxu0 0
  %134 = vmatprep.subr.bf16.mxu0 0
  %135 = vmatpush1.bf16.msra.mxu0 0
  %136 = vmatprep.subr.bf16.mxu0 0
  %137 = vmatpush1.bf16.msra.mxu0 0
  %138 = vmatprep.subr.bf16.mxu0 0
  %139 = vmatpush1.bf16.msra.mxu0 0
  %140 = vmatprep.subr.bf16.mxu0 0
  %141 = vmatpush1.bf16.msra.mxu0 0
  %142 = vmatprep.subr.bf16.mxu0 0
  %143 = vmatpush1.bf16.msra.mxu0 0
  %144 = vmatprep.subr.bf16.mxu0 0
  %145 = vmatpush1.bf16.msra.mxu0 0
  %146 = vmatprep.subr.bf16.mxu0 0
  %147 = vmatpush1.bf16.msra.mxu0 0
  %148 = vmatprep.mubr.bf16.mxu0 0
  %149 = vmatmul.mubr.bf16.gmra.mrb[0].mxu0 %v86
  %v150 = vpop.f32.mrb[0].mxu0
  %v151 = vadd.f32 0.0, %v150
  %v152 = vpop.f32.mrb[0].mxu0
  %v153 = vpop.f32.mrb[0].mxu0
  %v154 = vadd.f32 0.0, %v153
  %v155 = vpop.f32.mrb[0].mxu0
  %156 = vmatprep.mubr.bf16.mxu0 0
  %157 = vmatmul.mubr.bf16.gmra.mrb[0].mxu0 %v89
  %v158 = vpop.f32.mrb[0].mxu0
  %v159 = vadd.f32 0.0, %v158
  %v160 = vpop.f32.mrb[0].mxu0
  %v161 = vpop.f32.mrb[0].mxu0
  %v162 = vadd.f32 0.0, %v161
  %v163 = vpop.f32.mrb[0].mxu0
  %164 = vmatprep.mubr.bf16.mxu0 0
  %165 = vmatmul.mubr.bf16.gmra.mrb[0].mxu0 %v92
  %v166 = vpop.f32.mrb[0].mxu0
  %v167 = vadd.f32 0.0, %v166
  %v168 = vpop.f32.mrb[0].mxu0
  %v169 = vpop.f32.mrb[0].mxu0
  %v170 = vadd.f32 0.0, %v169
  %v171 = vpop.f32.mrb[0].mxu0
  %172 = vmatprep.mubr.bf16.mxu0 0
  %173 = vmatmul.mubr.bf16.gmra.mrb[0].mxu0 %v95
  %v174 = vpop.f32.mrb[0].mxu0
  %v175 = vadd.f32 0.0, %v174
  %v176 = vpop.f32.mrb[0].mxu0
  %v177 = vpop.f32.mrb[0].mxu0
  %v178 = vadd.f32 0.0, %v177
  %v179 = vpop.f32.mrb[0].mxu0
  %180 = vmatprep.mubr.bf16.mxu0 0
  %181 = vmatmul.mubr.bf16.gmra.mrb[0].mxu0 %v98
  %v182 = vpop.f32.mrb[0].mxu0
  %v183 = vadd.f32 0.0, %v182
  %v184 = vpop.f32.mrb[0].mxu0
  %v185 = vpop.f32.mrb[0].mxu0
  %v186 = vadd.f32 0.0, %v185
  %v187 = vpop.f32.mrb[0].mxu0
  %188 = vmatprep.mubr.bf16.mxu0 0
  %189 = vmatmul.mubr.bf16.gmra.mrb[0].mxu0 %v101
  %v190 = vpop.f32.mrb[0].mxu0
  %v191 = vadd.f32 0.0, %v190
  %v192 = vpop.f32.mrb[0].mxu0
  %v193 = vpop.f32.mrb[0].mxu0
  %v194 = vadd.f32 0.0, %v193
  %v195 = vpop.f32.mrb[0].mxu0
  %196 = vmatprep.mubr.bf16.mxu0 0
  %197 = vmatmul.mubr.bf16.gmra.mrb[0].mxu0 %v104
  %v198 = vpop.f32.mrb[0].mxu0
  %v199 = vadd.f32 0.0, %v198
  %v200 = vpop.f32.mrb[0].mxu0
  %v201 = vpop.f32.mrb[0].mxu0
  %v202 = vadd.f32 0.0, %v201
  %v203 = vpop.f32.mrb[0].mxu0
  %204 = vmatprep.mubr.bf16.mxu0 0
  %205 = vmatmul.mubr.bf16.gmra.mrb[0].mxu0 %v107
  %v206 = vpop.f32.mrb[0].mxu0
  %v207 = vadd.f32 0.0, %v206
  %v208 = vpop.f32.mrb[0].mxu0
  %v209 = vpop.f32.mrb[0].mxu0
  %v210 = vadd.f32 0.0, %v209
  %v211 = vpop.f32.mrb[0].mxu0
  %212 = vdwg.mxu0
  %v213 = vadd.f32 %v151, %v154
  %v214 = vadd.f32 %v213, %v159
  %v215 = vadd.f32 %v214, %v162
  %v216 = vadd.f32 %v215, %v167
  %v217 = vadd.f32 %v216, %v170
  %v218 = vadd.f32 %v217, %v175
  %v219 = vadd.f32 %v218, %v178
  %v220 = vadd.f32 %v219, %v183
  %v221 = vadd.f32 %v220, %v186
  %v222 = vadd.f32 %v221, %v191
  %v223 = vadd.f32 %v222, %v194
  %v224 = vadd.f32 %v223, %v199
  %v225 = vadd.f32 %v224, %v202
  %v226 = vadd.f32 %v225, %v207
  %v227 = vadd.f32 %v226, %v210
  %v228 = vrot.slane %v227, 4
  %v229 = vadd.f32 %v227, %v228
  %v230 = vrot.slane %v229, 2
  %v231 = vadd.f32 %v229, %v230
  %v232 = vrot.slane %v231, 1
  %v233 = vadd.f32 %v231, %v232
  %v234 = vmul.f32 %v233, 0.0078125
  %v235 = vsub.f32 %v151, %v234
  %v236 = vsub.f32 %v154, %v234
  %v237 = vsub.f32 %v159, %v234
  %v238 = vsub.f32 %v162, %v234
  %v239 = vsub.f32 %v167, %v234
  %v240 = vsub.f32 %v170, %v234
  %v241 = vsub.f32 %v175, %v234
  %v242 = vsub.f32 %v178, %v234
  %v243 = vsub.f32 %v183, %v234
  %v244 = vsub.f32 %v186, %v234
  %v245 = vsub.f32 %v191, %v234
  %v246 = vsub.f32 %v194, %v234
  %v247 = vsub.f32 %v199, %v234
  %v248 = vsub.f32 %v202, %v234
  %v249 = vsub.f32 %v207, %v234
  %v250 = vsub.f32 %v210, %v234
  %v251 = vmul.f32 %v235, %v235
  %v252 = vmul.f32 %v236, %v236
  %v253 = vmul.f32 %v237, %v237
  %v254 = vmul.f32 %v238, %v238
  %v255 = vmul.f32 %v239, %v239
  %v256 = vmul.f32 %v240, %v240
  %v257 = vmul.f32 %v241, %v241
  %v258 = vmul.f32 %v242, %v242
  %v259 = vmul.f32 %v243, %v243
  %v260 = vmul.f32 %v244, %v244
  %v261 = vmul.f32 %v245, %v245
  %v262 = vmul.f32 %v246, %v246
  %v263 = vmul.f32 %v247, %v247
  %v264 = vmul.f32 %v248, %v248
  %v265 = vmul.f32 %v249, %v249
  %v266 = vmul.f32 %v250, %v250
  %v267 = vadd.f32 %v251, %v252
  %v268 = vadd.f32 %v267, %v253
  %v269 = vadd.f32 %v268, %v254
  %v270 = vadd.f32 %v269, %v255
  %v271 = vadd.f32 %v270, %v256
  %v272 = vadd.f32 %v271, %v257
  %v273 = vadd.f32 %v272, %v258
  %v274 = vadd.f32 %v273, %v259
  %v275 = vadd.f32 %v274, %v260
  %v276 = vadd.f32 %v275, %v261
  %v277 = vadd.f32 %v276, %v262
  %v278 = vadd.f32 %v277, %v263
  %v279 = vadd.f32 %v278, %v264
  %v280 = vadd.f32 %v279, %v265
  %v281 = vadd.f32 %v280, %v266
  %v282 = vrot.slane %v281, 4
  %v283 = vadd.f32 %v281, %v282
  %v284 = vrot.slane %v283, 2
  %v285 = vadd.f32 %v283, %v284
  %v286 = vrot.slane %v285, 1
  %v287 = vadd.f32 %v285, %v286
  %v288 = vmul.f32 %v287, 0.0078125
  %v289 = vld [vmem:[%s2] sm:$0x1]
  %v290 = vadd.f32 %v288, 1e-05
  %v291 = vrsqrt.pop %v290
  %v292 = vmul.f32 %v289, %v291
  %v294 = vlaneseq
  %v295 = vshrl.u32 %v294, 7
  %v296 = vsub.s32 0, %v295
  %v297 = vrot.slane %v292, %v296
  %v299 = vmul.f32 %v235, %v297
  %v300 = vmul.f32 %v236, %v297
  %v301 = vmul.f32 %v237, %v297
  %v302 = vmul.f32 %v238, %v297
  %v303 = vmul.f32 %v239, %v297
  %v304 = vmul.f32 %v240, %v297
  %v305 = vmul.f32 %v241, %v297
  %v306 = vmul.f32 %v242, %v297
  %v307 = vmul.f32 %v243, %v297
  %v308 = vmul.f32 %v244, %v297
  %v309 = vmul.f32 %v245, %v297
  %v310 = vmul.f32 %v246, %v297
  %v311 = vmul.f32 %v247, %v297
  %v312 = vmul.f32 %v248, %v297
  %v313 = vmul.f32 %v249, %v297
  %v314 = vmul.f32 %v250, %v297
  %v315 = vld [vmem:[%s3] sm:$0x1]
  %v317 = vlaneseq
  %v318 = vshrl.u32 %v317, 7
  %v319 = vsub.s32 0, %v318
  %v320 = vrot.slane %v315, %v319
  %v322 = vadd.f32 %v299, %v320
  %v323 = vadd.f32 %v300, %v320
  %v324 = vadd.f32 %v301, %v320
  %v325 = vadd.f32 %v302, %v320
  %v326 = vadd.f32 %v303, %v320
  %v327 = vadd.f32 %v304, %v320
  %v328 = vadd.f32 %v305, %v320
  %v329 = vadd.f32 %v306, %v320
  %v330 = vadd.f32 %v307, %v320
  %v331 = vadd.f32 %v308, %v320
  %v332 = vadd.f32 %v309, %v320
  %v333 = vadd.f32 %v310, %v320
  %v334 = vadd.f32 %v311, %v320
  %v335 = vadd.f32 %v312, %v320
  %v336 = vadd.f32 %v313, %v320
  %v337 = vadd.f32 %v314, %v320
  %v338 = vld [vmem:[%s4] sm:$0x1]
  %vm339 = vcmp.gt.f32.partialorder %v338, 0.5
  %v340 = vmax.f32 %v322, 0.0
  %v341 = vmax.f32 %v323, 0.0
  %v342 = vmax.f32 %v324, 0.0
  %v343 = vmax.f32 %v325, 0.0
  %v344 = vmax.f32 %v326, 0.0
  %v345 = vmax.f32 %v327, 0.0
  %v346 = vmax.f32 %v328, 0.0
  %v347 = vmax.f32 %v329, 0.0
  %v348 = vmax.f32 %v330, 0.0
  %v349 = vmax.f32 %v331, 0.0
  %v350 = vmax.f32 %v332, 0.0
  %v351 = vmax.f32 %v333, 0.0
  %v352 = vmax.f32 %v334, 0.0
  %v353 = vmax.f32 %v335, 0.0
  %v354 = vmax.f32 %v336, 0.0
  %v355 = vmax.f32 %v337, 0.0
  %v356 = vsel %vm339, 1, 0
  %v357 = vlaneseq
  %v358 = vshrl.u32 %v357, 7
  %v359 = vsub.s32 0, %v358
  %v360 = vrot.slane %v356, %v359
  %vm361 = vcmp.eq.s32.totalorder %v360, 1
  %v362 = vsel %vm361, %v340, %v322
  %v363 = vsel %vm361, %v341, %v323
  %v364 = vsel %vm361, %v342, %v324
  %v365 = vsel %vm361, %v343, %v325
  %v366 = vsel %vm361, %v344, %v326
  %v367 = vsel %vm361, %v345, %v327
  %v368 = vsel %vm361, %v346, %v328
  %v369 = vsel %vm361, %v347, %v329
  %v370 = vsel %vm361, %v348, %v330
  %v371 = vsel %vm361, %v349, %v331
  %v372 = vsel %vm361, %v350, %v332
  %v373 = vsel %vm361, %v351, %v333
  %v374 = vsel %vm361, %v352, %v334
  %v375 = vsel %vm361, %v353, %v335
  %v376 = vsel %vm361, %v354, %v336
  %v377 = vsel %vm361, %v355, %v337
  %v378 = vpack.c.bf16 %v363, %v362
  %v379 = vpack.c.bf16 %v365, %v364
  %v380 = vpack.c.bf16 %v367, %v366
  %v381 = vpack.c.bf16 %v369, %v368
  %v382 = vpack.c.bf16 %v371, %v370
  %v383 = vpack.c.bf16 %v373, %v372
  %v384 = vpack.c.bf16 %v375, %v374
  %v385 = vpack.c.bf16 %v377, %v376
  %v394 = vunpack.c.l.b16 %v378
  %v395 = vunpack.c.h.b16 %v378
  %v396 = vunpack.c.l.b16 %v379
  %v397 = vunpack.c.h.b16 %v379
  %v398 = vunpack.c.l.b16 %v380
  %v399 = vunpack.c.h.b16 %v380
  %v400 = vunpack.c.l.b16 %v381
  %v401 = vunpack.c.h.b16 %v381
  %v402 = vunpack.c.l.b16 %v382
  %v403 = vunpack.c.h.b16 %v382
  %v404 = vunpack.c.l.b16 %v383
  %v405 = vunpack.c.h.b16 %v383
  %v406 = vunpack.c.l.b16 %v384
  %v407 = vunpack.c.h.b16 %v384
  %v408 = vunpack.c.l.b16 %v385
  %v409 = vunpack.c.h.b16 %v385
  %v410 = vpack.c.b16 %v394, %v394
  %v411 = vpack.c.b16 %v395, %v395
  %v412 = vpack.c.b16 %v396, %v396
  %v413 = vpack.c.b16 %v397, %v397
  %v414 = vpack.c.b16 %v398, %v398
  %v415 = vpack.c.b16 %v399, %v399
  %v416 = vpack.c.b16 %v400, %v400
  %v417 = vpack.c.b16 %v401, %v401
  %v418 = vpack.c.b16 %v402, %v402
  %v419 = vpack.c.b16 %v403, %v403
  %v420 = vpack.c.b16 %v404, %v404
  %v421 = vpack.c.b16 %v405, %v405
  %v422 = vpack.c.b16 %v406, %v406
  %v423 = vpack.c.b16 %v407, %v407
  %v424 = vpack.c.b16 %v408, %v408
  %v425 = vpack.c.b16 %v409, %v409
  %442 = vst [vmem:[%s5] sm:$0xf] %v410
  %443 = vst [vmem:[%s5 + $0x4] sm:$0xf] %v411
  %444 = vst [vmem:[%s5 + $0x8] sm:$0xf] %v412
  %445 = vst [vmem:[%s5 + $0xc] sm:$0xf] %v413
  %446 = vst [vmem:[%s5 + $0x10] sm:$0xf] %v414
  %447 = vst [vmem:[%s5 + $0x14] sm:$0xf] %v415
  %448 = vst [vmem:[%s5 + $0x18] sm:$0xf] %v416
  %449 = vst [vmem:[%s5 + $0x1c] sm:$0xf] %v417
  %450 = vst [vmem:[%s5 + $0x20] sm:$0xf] %v418
  %451 = vst [vmem:[%s5 + $0x24] sm:$0xf] %v419
  %452 = vst [vmem:[%s5 + $0x28] sm:$0xf] %v420
  %453 = vst [vmem:[%s5 + $0x2c] sm:$0xf] %v421
  %454 = vst [vmem:[%s5 + $0x30] sm:$0xf] %v422
  %455 = vst [vmem:[%s5 + $0x34] sm:$0xf] %v423
  %456 = vst [vmem:[%s5 + $0x38] sm:$0xf] %v424
  %457 = vst [vmem:[%s5 + $0x3c] sm:$0xf] %v425
  // Predicated region
  $region22: #{forward.9} parent=0 // pred_check
    _
  $region23: #{forward.9} parent=0 // pred_check_branch
    %459 = sbr.rel (0) target = $region25
  $region24: #{forward.9} parent=0 // pred_region
    _
  $region25: #{forward.9} parent=0 // pred_fallthru
    _
  // Predicated region
  $region26: #{forward.9} parent=0 // pred_check
    _
  $region27: #{forward.9} parent=0 // pred_check_branch
    %461 = sbr.rel (0) target = $region29
  $region28: #{forward.9} parent=0 // pred_region
    _
  $region29: #{forward.9} parent=0 // pred_fallthru
    _

// kernel: forward.10
$region0: #{forward.10}
  #allocation0 [shape = 'u32[]', space=smem, size = 0x4, offset = 0x4, fixed_abs, tag = 'smem constant byte address 0x4 - core index']
  #allocation1 [shape = 'u32[144,128]{1,0:T(1,128)}', space=vmem, size = 0x12000, scoped, tag = 'internal scratch']
  %s0 = inlined_call_operand.vmem [shape: bf16[4,128,36], index: 0, kind: input, shape index: {}]
  %s1 = inlined_call_operand.vmem [shape: bf16[4,36,128], index: 1, kind: input, shape index: {}]
  %s2 = inlined_call_operand.vmem [shape: f32[4,1,128], index: 2, kind: input, shape index: {}]
  %s3 = inlined_call_operand.vmem [shape: f32[4,1,128], index: 3, kind: input, shape index: {}]
  %s4 = inlined_call_operand.vmem [shape: f32[4,1,128], index: 4, kind: input, shape index: {}]
  %s5 = inlined_call_operand.vmem [shape: bf16[4,128,128], index: 5, kind: output, shape index: {}]
  %s6 = sld [smem:[#allocation0]]
  $region53: #{forward.10} parent=0
    _
  %s8 = ssub.s32 1, %s6
  %s9 = scalar_select 0, %s8, %s6
  loop: start=0, step=1, limit=6
  $region2: #{forward.10} parent=0 // loop_pre_header
    _
  $region3: #{forward.10} parent=0 // loop_header
    %s11 = sphi 0, %s15
    %p12 = scmp.ge.s32.totalorder %s11, 6
    %s21 = sphi 0, %s23
    %s24 = sphi 0, %s21
    %s25 = sphi 0, %s24
    %s41 = sphi 0, %s25
    %s47 = sphi 0, %s49
    %s50 = sphi 0, %s47
    %s51 = sphi 0, %s50
    %s67 = sphi 0, %s51
    %s73 = sphi 0, %s75
    %s76 = sphi 0, %s73
    %s77 = sphi 0, %s76
    %s93 = sphi 0, %s77
    %s99 = sphi 0, %s101
    %s102 = sphi 0, %s99
    %s103 = sphi 0, %s102
    %s119 = sphi 0, %s103
    %s125 = sphi 0, %s127
    %s128 = sphi 0, %s125
    %s129 = sphi 0, %s128
    %s145 = sphi 0, %s129
    %s151 = sphi 0, %s153
    %s154 = sphi 0, %s151
    %s155 = sphi 0, %s154
    %s171 = sphi 0, %s155
  $region4: #{forward.10} parent=0 // loop_header_branch
    %14 = sbr.rel (%p12) target = $region8
  $region5: #{forward.10} parent=0 // loop_body
    %s16 = ssub.s32 %s11, 1
    %s17 = ssub.s32 %s11, 2
    %s18 = sadd.s32 %s11, 1
    %s19 = ssub.s32 %s11, %s18
    %p20 = scmp.eq.s32.totalorder %s19, 0
    %s22 = sadd.s32 %s21, 1
    %s23 = scalar_select %p20, %s21, %s22
    %p26 = pneg %p20
    %p27 = scmp.eq.s32.totalorder %s11, 3
    %p28 = por %p26, %p27
    %p29 = scmp.ne.s32.totalorder %s21, %s24
    %p30 = scmp.eq.s32.totalorder %s11, 0
    %p31 = por %p29, %p30
    %p32 = scmp.ne.s32.totalorder %s21, %s24
    %p33 = scmp.eq.s32.totalorder %s16, 3
    %p34 = por %p32, %p33
    %p35 = scmp.ne.s32.totalorder %s24, %s25
    %p36 = scmp.eq.s32.totalorder %s16, 0
    %p37 = por %p35, %p36
    %p38 = scmp.ne.s32.totalorder %s24, %s25
    %p39 = scmp.eq.s32.totalorder %s17, 3
    %p40 = por %p38, %p39
    %p42 = scmp.ne.s32.totalorder %s25, %s41
    %p43 = scmp.eq.s32.totalorder %s17, 0
    %p44 = por %p42, %p43
    %s45 = ssub.s32 %s11, %s18
    %p46 = scmp.eq.s32.totalorder %s45, 0
    %s48 = sadd.s32 %s47, 1
    %s49 = scalar_select %p46, %s47, %s48
    %p52 = pneg %p46
    %p53 = scmp.eq.s32.totalorder %s11, 3
    %p54 = por %p52, %p53
    %p55 = scmp.ne.s32.totalorder %s47, %s50
    %p56 = scmp.eq.s32.totalorder %s11, 0
    %p57 = por %p55, %p56
    %p58 = scmp.ne.s32.totalorder %s47, %s50
    %p59 = scmp.eq.s32.totalorder %s16, 3
    %p60 = por %p58, %p59
    %p61 = scmp.ne.s32.totalorder %s50, %s51
    %p62 = scmp.eq.s32.totalorder %s16, 0
    %p63 = por %p61, %p62
    %p64 = scmp.ne.s32.totalorder %s50, %s51
    %p65 = scmp.eq.s32.totalorder %s17, 3
    %p66 = por %p64, %p65
    %p68 = scmp.ne.s32.totalorder %s51, %s67
    %p69 = scmp.eq.s32.totalorder %s17, 0
    %p70 = por %p68, %p69
    %s71 = ssub.s32 %s11, %s18
    %p72 = scmp.eq.s32.totalorder %s71, 0
    %s74 = sadd.s32 %s73, 1
    %s75 = scalar_select %p72, %s73, %s74
    %p78 = pneg %p72
    %p79 = scmp.eq.s32.totalorder %s11, 3
    %p80 = por %p78, %p79
    %p81 = scmp.ne.s32.totalorder %s73, %s76
    %p82 = scmp.eq.s32.totalorder %s11, 0
    %p83 = por %p81, %p82
    %p84 = scmp.ne.s32.totalorder %s73, %s76
    %p85 = scmp.eq.s32.totalorder %s16, 3
    %p86 = por %p84, %p85
    %p87 = scmp.ne.s32.totalorder %s76, %s77
    %p88 = scmp.eq.s32.totalorder %s16, 0
    %p89 = por %p87, %p88
    %p90 = scmp.ne.s32.totalorder %s76, %s77
    %p91 = scmp.eq.s32.totalorder %s17, 3
    %p92 = por %p90, %p91
    %p94 = scmp.ne.s32.totalorder %s77, %s93
    %p95 = scmp.eq.s32.totalorder %s17, 0
    %p96 = por %p94, %p95
    %s97 = ssub.s32 %s11, %s18
    %p98 = scmp.eq.s32.totalorder %s97, 0
    %s100 = sadd.s32 %s99, 1
    %s101 = scalar_select %p98, %s99, %s100
    %p104 = pneg %p98
    %p105 = scmp.eq.s32.totalorder %s11, 3
    %p106 = por %p104, %p105
    %p107 = scmp.ne.s32.totalorder %s99, %s102
    %p108 = scmp.eq.s32.totalorder %s11, 0
    %p109 = por %p107, %p108
    %p110 = scmp.ne.s32.totalorder %s99, %s102
    %p111 = scmp.eq.s32.totalorder %s16, 3
    %p112 = por %p110, %p111
    %p113 = scmp.ne.s32.totalorder %s102, %s103
    %p114 = scmp.eq.s32.totalorder %s16, 0
    %p115 = por %p113, %p114
    %p116 = scmp.ne.s32.totalorder %s102, %s103
    %p117 = scmp.eq.s32.totalorder %s17, 3
    %p118 = por %p116, %p117
    %p120 = scmp.ne.s32.totalorder %s103, %s119
    %p121 = scmp.eq.s32.totalorder %s17, 0
    %p122 = por %p120, %p121
    %s123 = ssub.s32 %s11, %s18
    %p124 = scmp.eq.s32.totalorder %s123, 0
    %s126 = sadd.s32 %s125, 1
    %s127 = scalar_select %p124, %s125, %s126
    %p130 = pneg %p124
    %p131 = scmp.eq.s32.totalorder %s11, 3
    %p132 = por %p130, %p131
    %p133 = scmp.ne.s32.totalorder %s125, %s128
    %p134 = scmp.eq.s32.totalorder %s11, 0
    %p135 = por %p133, %p134
    %p136 = scmp.ne.s32.totalorder %s125, %s128
    %p137 = scmp.eq.s32.totalorder %s16, 3
    %p138 = por %p136, %p137
    %p139 = scmp.ne.s32.totalorder %s128, %s129
    %p140 = scmp.eq.s32.totalorder %s16, 0
    %p141 = por %p139, %p140
    %p142 = scmp.ne.s32.totalorder %s128, %s129
    %p143 = scmp.eq.s32.totalorder %s17, 3
    %p144 = por %p142, %p143
    %p146 = scmp.ne.s32.totalorder %s129, %s145
    %p147 = scmp.eq.s32.totalorder %s17, 0
    %p148 = por %p146, %p147
    %s149 = ssub.s32 %s11, %s18
    %p150 = scmp.eq.s32.totalorder %s149, 0
    %s152 = sadd.s32 %s151, 1
    %s153 = scalar_select %p150, %s151, %s152
    %p156 = pneg %p150
    %p157 = scmp.eq.s32.totalorder %s11, 3
    %p158 = por %p156, %p157
    %p159 = scmp.ne.s32.totalorder %s151, %s154
    %p160 = scmp.eq.s32.totalorder %s11, 0
    %p161 = por %p159, %p160
    %p162 = scmp.ne.s32.totalorder %s151, %s154
    %p163 = scmp.eq.s32.totalorder %s16, 3
    %p164 = por %p162, %p163
    %p165 = scmp.ne.s32.totalorder %s154, %s155
    %p166 = scmp.eq.s32.totalorder %s16, 0
    %p167 = por %p165, %p166
    %p168 = scmp.ne.s32.totalorder %s154, %s155
    %p169 = scmp.eq.s32.totalorder %s17, 3
    %p170 = por %p168, %p169
    %p172 = scmp.ne.s32.totalorder %s155, %s171
    %p173 = scmp.eq.s32.totalorder %s17, 0
    %p174 = por %p172, %p173
    %p175 = scmp.le.s32.totalorder 1, %s11
    %p176 = scmp.lt.s32.totalorder %s11, 5
    %p177 = pnand %p175, %p176
    %p178 = pneg %p177
    // Predicated region
    $region9: #{forward.10} parent=5 // pred_check
      _
    $region10: #{forward.10} parent=5 // pred_check_branch
      %180 = sbr.rel (%p177) target = $region12
    $region11: #{forward.10} parent=5 // pred_region
      %s181 = ssub.s32 %s11, 1
    $region12: #{forward.10} parent=5 // pred_fallthru
      _
    %p182 = scmp.lt.s32.totalorder %s11, 4
    // Predicated region
    $region13: #{forward.10} parent=5 // pred_check
      %p183 = pneg %p182
    $region14: #{forward.10} parent=5 // pred_check_branch
      %185 = sbr.rel (%p183) target = $region16
    $region15: #{forward.10} parent=5 // pred_region
      // Predicated region
      $region17: #{forward.10} parent=15 // pred_check
        %p186 = pneg %p31
      $region18: #{forward.10} parent=15 // pred_check_branch
        %188 = sbr.rel (%p186) target = $region20
      $region19: #{forward.10} parent=15 // pred_region
        %p189 = scmp.lt.s32.totalorder %s11, 3
        %s190 = scalar_select %p189, %s11, 3
        %s191 = smul.addr %s190, 16
        %s192 = smul.addr %s191, 4
        %s193 = scalar_lea.vmem %s0, %s192
      $region20: #{forward.10} parent=15 // pred_fallthru
        _
      // Predicated region
      $region21: #{forward.10} parent=15 // pred_check
        %p194 = pneg %p57
      $region22: #{forward.10} parent=15 // pred_check_branch
        %196 = sbr.rel (%p194) target = $region24
      $region23: #{forward.10} parent=15 // pred_region
        %p197 = scmp.lt.s32.totalorder %s11, 3
        %s198 = scalar_select %p197, %s11, 3
        %s199 = smul.addr %s198, 5
        %s200 = smul.addr %s199, 4
        %s201 = scalar_lea.vmem %s1, %s200
      $region24: #{forward.10} parent=15 // pred_fallthru
        _
      // Predicated region
      $region25: #{forward.10} parent=15 // pred_check
        %p202 = pneg %p83
      $region26: #{forward.10} parent=15 // pred_check_branch
        %204 = sbr.rel (%p202) target = $region28
      $region27: #{forward.10} parent=15 // pred_region
        %p205 = scmp.lt.s32.totalorder %s11, 3
        %s206 = scalar_select %p205, %s11, 3
        %s207 = scalar_lea.vmem %s2, %s206
      $region28: #{forward.10} parent=15 // pred_fallthru
        _
      // Predicated region
      $region29: #{forward.10} parent=15 // pred_check
        %p208 = pneg %p109
      $region30: #{forward.10} parent=15 // pred_check_branch
        %210 = sbr.rel (%p208) target = $region32
      $region31: #{forward.10} parent=15 // pred_region
        %p211 = scmp.lt.s32.totalorder %s11, 3
        %s212 = scalar_select %p211, %s11, 3
        %s213 = scalar_lea.vmem %s3, %s212
      $region32: #{forward.10} parent=15 // pred_fallthru
        _
      // Predicated region
      $region33: #{forward.10} parent=15 // pred_check
        %p214 = pneg %p135
      $region34: #{forward.10} parent=15 // pred_check_branch
        %216 = sbr.rel (%p214) target = $region36
      $region35: #{forward.10} parent=15 // pred_region
        %p217 = scmp.lt.s32.totalorder %s11, 3
        %s218 = scalar_select %p217, %s11, 3
        %s219 = scalar_lea.vmem %s4, %s218
      $region36: #{forward.10} parent=15 // pred_fallthru
        _
    $region16: #{forward.10} parent=5 // pred_fallthru
      _
    %p220 = scmp.le.s32.totalorder 1, %s11
    %p221 = scmp.lt.s32.totalorder %s11, 5
    %p222 = pnand %p220, %p221
    %p223 = pneg %p222
    // Predicated region
    $region37: #{forward.10} parent=5 // pred_check
      _
    $region38: #{forward.10} parent=5 // pred_check_branch
      %225 = sbr.rel (%p222) target = $region40
    $region39: #{forward.10} parent=5 // pred_region
      %s226 = ssub.s32 %s11, 1
      %p227 = scmp.lt.s32.totalorder %s16, 3
      %s228 = scalar_select %p227, %s16, 3
      %s229 = smul.addr %s228, 16
      %s230 = smul.addr %s229, 4
      %s231 = scalar_lea.vmem %s0, %s230
      %p232 = pneg %p37
      %p233 = pneg %p34
      %p234 = scmp.lt.s32.totalorder %s16, 3
      %s235 = scalar_select %p234, %s16, 3
      %s236 = smul.addr %s235, 5
      %s237 = smul.addr %s236, 4
      %s238 = scalar_lea.vmem %s1, %s237
      %p239 = pneg %p63
      %p240 = pneg %p60
      %p241 = scmp.lt.s32.totalorder %s16, 3
      %s242 = scalar_select %p241, %s16, 3
      %s243 = scalar_lea.vmem %s2, %s242
      %p244 = pneg %p89
      %p245 = pneg %p86
      %p246 = scmp.lt.s32.totalorder %s16, 3
      %s247 = scalar_select %p246, %s16, 3
      %s248 = scalar_lea.vmem %s3, %s247
      %p249 = pneg %p115
      %p250 = pneg %p112
      %p251 = scmp.lt.s32.totalorder %s16, 3
      %s252 = scalar_select %p251, %s16, 3
      %s253 = scalar_lea.vmem %s4, %s252
      %p254 = pneg %p141
      %p255 = pneg %p138
      %p256 = pneg %p167
      %p257 = pneg %p164
      %p258 = scmp.lt.s32.totalorder %s16, 3
      %s259 = scalar_select %p258, %s16, 3
      %s260 = smul.addr %s259, 16
      %s261 = smul.addr %s260, 4
      %s262 = scalar_lea.vmem %s5, %s261
      %p263 = scmp.lt.s32.totalorder %s16, 3
      %s264 = scalar_select %p263, %s16, 3
      %s265 = smul.addr %s264, 16
      %s266 = smul.addr %s265, 4
      %s267 = scalar_lea.vmem %s0, %s266
      %p268 = scmp.lt.s32.totalorder %s16, 3
      %s269 = scalar_select %p268, %s16, 3
      %s270 = smul.addr %s269, 5
      %s271 = smul.addr %s270, 4
      %s272 = scalar_lea.vmem %s1, %s271
      %p273 = scmp.lt.s32.totalorder %s16, 3
      %s274 = scalar_select %p273, %s16, 3
      %s275 = scalar_lea.vmem %s2, %s274
      %p276 = scmp.lt.s32.totalorder %s16, 3
      %s277 = scalar_select %p276, %s16, 3
      %s278 = scalar_lea.vmem %s3, %s277
      %p279 = scmp.lt.s32.totalorder %s16, 3
      %s280 = scalar_select %p279, %s16, 3
      %s281 = scalar_lea.vmem %s4, %s280
      %p282 = scmp.lt.s32.totalorder %s16, 3
      %s283 = scalar_select %p282, %s16, 3
      %s284 = smul.addr %s283, 16
      %s285 = smul.addr %s284, 4
      %s286 = scalar_lea.vmem %s5, %s285
      %v288 = vld [vmem:[%s267] sm:$0xf]
      %v289 = vld [vmem:[%s267 + $0x4] sm:$0xf]
      %v290 = vld [vmem:[%s267 + $0x8] sm:$0xf]
      %v291 = vld [vmem:[%s267 + $0xc] sm:$0xf]
      %v292 = vld [vmem:[%s267 + $0x10] sm:$0xf]
      %v293 = vld [vmem:[%s267 + $0x14] sm:$0xf]
      %v294 = vld [vmem:[%s267 + $0x18] sm:$0xf]
      %v295 = vld [vmem:[%s267 + $0x1c] sm:$0xf]
      %v296 = vld [vmem:[%s267 + $0x20] sm:$0xf]
      %v297 = vld [vmem:[%s267 + $0x24] sm:$0xf]
      %v298 = vld [vmem:[%s267 + $0x28] sm:$0xf]
      %v299 = vld [vmem:[%s267 + $0x2c] sm:$0xf]
      %v300 = vld [vmem:[%s267 + $0x30] sm:$0xf]
      %v301 = vld [vmem:[%s267 + $0x34] sm:$0xf]
      %v302 = vld [vmem:[%s267 + $0x38] sm:$0xf]
      %v303 = vld [vmem:[%s267 + $0x3c] sm:$0xf]
      %v304 = vld [vmem:[%s272] sm:$0xf]
      %v305 = vld [vmem:[%s272 + $0x4] sm:$0xf]
      %v306 = vld [vmem:[%s272 + $0x8] sm:$0xf]
      %v307 = vld [vmem:[%s272 + $0xc] sm:$0xf]
      %v308 = vld [vmem:[%s272 + $0x10] sm:$0x3]
      %v325 = vunpack.c.l.b16 %v288
      %v326 = vunpack.c.l.b16 %v289
      %v327 = vunpack.c.l.b16 %v290
      %v328 = vunpack.c.l.b16 %v291
      %v329 = vunpack.c.l.b16 %v292
      %v330 = vunpack.c.l.b16 %v293
      %v331 = vunpack.c.l.b16 %v294
      %v332 = vunpack.c.l.b16 %v295
      %v333 = vunpack.c.l.b16 %v296
      %v334 = vunpack.c.l.b16 %v297
      %v335 = vunpack.c.l.b16 %v298
      %v336 = vunpack.c.l.b16 %v299
      %v337 = vunpack.c.l.b16 %v300
      %v338 = vunpack.c.l.b16 %v301
      %v339 = vunpack.c.l.b16 %v302
      %v340 = vunpack.c.l.b16 %v303
      %v341 = vpack.c.b16 %v326, %v325
      %v342 = vpack.c.b16 %v328, %v327
      %v343 = vpack.c.b16 %v330, %v329
      %v344 = vpack.c.b16 %v332, %v331
      %v345 = vpack.c.b16 %v334, %v333
      %v346 = vpack.c.b16 %v336, %v335
      %v347 = vpack.c.b16 %v338, %v337
      %v348 = vpack.c.b16 %v340, %v339
      %v354 = vunpack.c.l.b16 %v304
      %v355 = vunpack.c.l.b16 %v305
      %v356 = vunpack.c.l.b16 %v306
      %v357 = vunpack.c.l.b16 %v307
      %v358 = vunpack.c.l.b16 %v308
      %v359 = vpack.c.b16 %v355, %v354
      %v360 = vpack.c.b16 %v357, %v356
      %v361 = vpack.c.b16 %v358, %v358
      %vm364 = vcmask 293888
      %v366 = vsel %vm364, %v341, 0
      %v369 = vsel %vm364, %v342, 0
      %v372 = vsel %vm364, %v343, 0
      %v375 = vsel %vm364, %v344, 0
      %v378 = vsel %vm364, %v345, 0
      %v381 = vsel %vm364, %v346, 0
      %v384 = vsel %vm364, %v347, 0
      %v387 = vsel %vm364, %v348, 0
      %vm389 = vcmask 1041408
      %v391 = vsel %vm389, %v361, 0
      %393 = vmatprep.subr.bf16.mxu0 0
      %394 = vmatpush1.bf16.msra.mxu0 %v359
      %395 = vmatprep.subr.bf16.mxu0 0
      %396 = vmatpush1.bf16.msra.mxu0 %v360
      %397 = vmatprep.subr.bf16.mxu0 0
      %398 = vmatpush1.bf16.msra.mxu0 %v391
      %399 = vmatprep.subr.bf16.mxu0 0
      %400 = vmatpush1.bf16.msra.mxu0 0
      %401 = vmatprep.subr.bf16.mxu0 0
      %402 = vmatpush1.bf16.msra.mxu0 0
      %403 = vmatprep.subr.bf16.mxu0 0
      %404 = vmatpush1.bf16.msra.mxu0 0
      %405 = vmatprep.subr.bf16.mxu0 0
      %406 = vmatpush1.bf16.msra.mxu0 0
      %407 = vmatprep.subr.bf16.mxu0 0
      %408 = vmatpush1.bf16.msra.mxu0 0
      %409 = vmatprep.subr.bf16.mxu0 0
      %410 = vmatpush1.bf16.msra.mxu0 0
      %411 = vmatprep.subr.bf16.mxu0 0
      %412 = vmatpush1.bf16.msra.mxu0 0
      %413 = vmatprep.subr.bf16.mxu0 0
      %414 = vmatpush1.bf16.msra.mxu0 0
      %415 = vmatprep.subr.bf16.mxu0 0
      %416 = vmatpush1.bf16.msra.mxu0 0
      %417 = vmatprep.subr.bf16.mxu0 0
      %418 = vmatpush1.bf16.msra.mxu0 0
      %419 = vmatprep.subr.bf16.mxu0 0
      %420 = vmatpush1.bf16.msra.mxu0 0
      %421 = vmatprep.subr.bf16.mxu0 0
      %422 = vmatpush1.bf16.msra.mxu0 0
      %423 = vmatprep.subr.bf16.mxu0 0
      %424 = vmatpush1.bf16.msra.mxu0 0
      %425 = vmatprep.mubr.bf16.mxu0 0
      %426 = vmatmul.mubr.bf16.gmra.mrb[0].mxu0 %v366
      %v427 = vpop.f32.mrb[0].mxu0
      %v428 = vadd.f32 0.0, %v427
      %v429 = vpop.f32.mrb[0].mxu0
      %v430 = vpop.f32.mrb[0].mxu0
      %v431 = vadd.f32 0.0, %v430
      %v432 = vpop.f32.mrb[0].mxu0
      %433 = vmatprep.mubr.bf16.mxu0 0
      %434 = vmatmul.mubr.bf16.gmra.mrb[0].mxu0 %v369
      %v435 = vpop.f32.mrb[0].mxu0
      %v436 = vadd.f32 0.0, %v435
      %v437 = vpop.f32.mrb[0].mxu0
      %v438 = vpop.f32.mrb[0].mxu0
      %v439 = vadd.f32 0.0, %v438
      %v440 = vpop.f32.mrb[0].mxu0
      %441 = vmatprep.mubr.bf16.mxu0 0
      %442 = vmatmul.mubr.bf16.gmra.mrb[0].mxu0 %v372
      %v443 = vpop.f32.mrb[0].mxu0
      %v444 = vadd.f32 0.0, %v443
      %v445 = vpop.f32.mrb[0].mxu0
      %v446 = vpop.f32.mrb[0].mxu0
      %v447 = vadd.f32 0.0, %v446
      %v448 = vpop.f32.mrb[0].mxu0
      %449 = vmatprep.mubr.bf16.mxu0 0
      %450 = vmatmul.mubr.bf16.gmra.mrb[0].mxu0 %v375
      %v451 = vpop.f32.mrb[0].mxu0
      %v452 = vadd.f32 0.0, %v451
      %v453 = vpop.f32.mrb[0].mxu0
      %v454 = vpop.f32.mrb[0].mxu0
      %v455 = vadd.f32 0.0, %v454
      %v456 = vpop.f32.mrb[0].mxu0
      %457 = vmatprep.mubr.bf16.mxu0 0
      %458 = vmatmul.mubr.bf16.gmra.mrb[0].mxu0 %v378
      %v459 = vpop.f32.mrb[0].mxu0
      %v460 = vadd.f32 0.0, %v459
      %v461 = vpop.f32.mrb[0].mxu0
      %v462 = vpop.f32.mrb[0].mxu0
      %v463 = vadd.f32 0.0, %v462
      %v464 = vpop.f32.mrb[0].mxu0
      %465 = vmatprep.mubr.bf16.mxu0 0
      %466 = vmatmul.mubr.bf16.gmra.mrb[0].mxu0 %v381
      %v467 = vpop.f32.mrb[0].mxu0
      %v468 = vadd.f32 0.0, %v467
      %v469 = vpop.f32.mrb[0].mxu0
      %v470 = vpop.f32.mrb[0].mxu0
      %v471 = vadd.f32 0.0, %v470
      %v472 = vpop.f32.mrb[0].mxu0
      %473 = vmatprep.mubr.bf16.mxu0 0
      %474 = vmatmul.mubr.bf16.gmra.mrb[0].mxu0 %v384
      %v475 = vpop.f32.mrb[0].mxu0
      %v476 = vadd.f32 0.0, %v475
      %v477 = vpop.f32.mrb[0].mxu0
      %v478 = vpop.f32.mrb[0].mxu0
      %v479 = vadd.f32 0.0, %v478
      %v480 = vpop.f32.mrb[0].mxu0
      %481 = vmatprep.mubr.bf16.mxu0 0
      %482 = vmatmul.mubr.bf16.gmra.mrb[0].mxu0 %v387
      %v483 = vpop.f32.mrb[0].mxu0
      %v484 = vadd.f32 0.0, %v483
      %v485 = vpop.f32.mrb[0].mxu0
      %v486 = vpop.f32.mrb[0].mxu0
      %v487 = vadd.f32 0.0, %v486
      %v488 = vpop.f32.mrb[0].mxu0
      %489 = vdwg.mxu0
      %v490 = vadd.f32 %v428, %v431
      %v491 = vadd.f32 %v490, %v436
      %v492 = vadd.f32 %v491, %v439
      %v493 = vadd.f32 %v492, %v444
      %v494 = vadd.f32 %v493, %v447
      %v495 = vadd.f32 %v494, %v452
      %v496 = vadd.f32 %v495, %v455
      %v497 = vadd.f32 %v496, %v460
      %v498 = vadd.f32 %v497, %v463
      %v499 = vadd.f32 %v498, %v468
      %v500 = vadd.f32 %v499, %v471
      %v501 = vadd.f32 %v500, %v476
      %v502 = vadd.f32 %v501, %v479
      %v503 = vadd.f32 %v502, %v484
      %v504 = vadd.f32 %v503, %v487
      %v505 = vrot.slane %v504, 4
      %v506 = vadd.f32 %v504, %v505
      %v507 = vrot.slane %v506, 2
      %v508 = vadd.f32 %v506, %v507
      %v509 = vrot.slane %v508, 1
      %v510 = vadd.f32 %v508, %v509
      %v511 = vmul.f32 %v510, 0.0078125
      %v512 = vsub.f32 %v428, %v511
      %v513 = vsub.f32 %v431, %v511
      %v514 = vsub.f32 %v436, %v511
      %v515 = vsub.f32 %v439, %v511
      %v516 = vsub.f32 %v444, %v511
      %v517 = vsub.f32 %v447, %v511
      %v518 = vsub.f32 %v452, %v511
      %v519 = vsub.f32 %v455, %v511
      %v520 = vsub.f32 %v460, %v511
      %v521 = vsub.f32 %v463, %v511
      %v522 = vsub.f32 %v468, %v511
      %v523 = vsub.f32 %v471, %v511
      %v524 = vsub.f32 %v476, %v511
      %v525 = vsub.f32 %v479, %v511
      %v526 = vsub.f32 %v484, %v511
      %v527 = vsub.f32 %v487, %v511
      %v528 = vmul.f32 %v512, %v512
      %v529 = vmul.f32 %v513, %v513
      %v530 = vmul.f32 %v514, %v514
      %v531 = vmul.f32 %v515, %v515
      %v532 = vmul.f32 %v516, %v516
      %v533 = vmul.f32 %v517, %v517
      %v534 = vmul.f32 %v518, %v518
      %v535 = vmul.f32 %v519, %v519
      %v536 = vmul.f32 %v520, %v520
      %v537 = vmul.f32 %v521, %v521
      %v538 = vmul.f32 %v522, %v522
      %v539 = vmul.f32 %v523, %v523
      %v540 = vmul.f32 %v524, %v524
      %v541 = vmul.f32 %v525, %v525
      %v542 = vmul.f32 %v526, %v526
      %v543 = vmul.f32 %v527, %v527
      %v544 = vadd.f32 %v528, %v529
      %v545 = vadd.f32 %v544, %v530
      %v546 = vadd.f32 %v545, %v531
      %v547 = vadd.f32 %v546, %v532
      %v548 = vadd.f32 %v547, %v533
      %v549 = vadd.f32 %v548, %v534
      %v550 = vadd.f32 %v549, %v535
      %v551 = vadd.f32 %v550, %v536
      %v552 = vadd.f32 %v551, %v537
      %v553 = vadd.f32 %v552, %v538
      %v554 = vadd.f32 %v553, %v539
      %v555 = vadd.f32 %v554, %v540
      %v556 = vadd.f32 %v555, %v541
      %v557 = vadd.f32 %v556, %v542
      %v558 = vadd.f32 %v557, %v543
      %v559 = vrot.slane %v558, 4
      %v560 = vadd.f32 %v558, %v559
      %v561 = vrot.slane %v560, 2
      %v562 = vadd.f32 %v560, %v561
      %v563 = vrot.slane %v562, 1
      %v564 = vadd.f32 %v562, %v563
      %v565 = vmul.f32 %v564, 0.0078125
      %v566 = vld [vmem:[%s275] sm:$0x1]
      %v567 = vadd.f32 %v565, 1e-05
      %v568 = vrsqrt.pop %v567
      %v569 = vmul.f32 %v566, %v568
      %v571 = vlaneseq
      %v572 = vshrl.u32 %v571, 7
      %v573 = vsub.s32 0, %v572
      %v574 = vrot.slane %v569, %v573
      %v576 = vmul.f32 %v512, %v574
      %v577 = vmul.f32 %v513, %v574
      %v578 = vmul.f32 %v514, %v574
      %v579 = vmul.f32 %v515, %v574
      %v580 = vmul.f32 %v516, %v574
      %v581 = vmul.f32 %v517, %v574
      %v582 = vmul.f32 %v518, %v574
      %v583 = vmul.f32 %v519, %v574
      %v584 = vmul.f32 %v520, %v574
      %v585 = vmul.f32 %v521, %v574
      %v586 = vmul.f32 %v522, %v574
      %v587 = vmul.f32 %v523, %v574
      %v588 = vmul.f32 %v524, %v574
      %v589 = vmul.f32 %v525, %v574
      %v590 = vmul.f32 %v526, %v574
      %v591 = vmul.f32 %v527, %v574
      %v592 = vld [vmem:[%s278] sm:$0x1]
      %v594 = vlaneseq
      %v595 = vshrl.u32 %v594, 7
      %v596 = vsub.s32 0, %v595
      %v597 = vrot.slane %v592, %v596
      %v599 = vadd.f32 %v576, %v597
      %v600 = vadd.f32 %v577, %v597
      %v601 = vadd.f32 %v578, %v597
      %v602 = vadd.f32 %v579, %v597
      %v603 = vadd.f32 %v580, %v597
      %v604 = vadd.f32 %v581, %v597
      %v605 = vadd.f32 %v582, %v597
      %v606 = vadd.f32 %v583, %v597
      %v607 = vadd.f32 %v584, %v597
      %v608 = vadd.f32 %v585, %v597
      %v609 = vadd.f32 %v586, %v597
      %v610 = vadd.f32 %v587, %v597
      %v611 = vadd.f32 %v588, %v597
      %v612 = vadd.f32 %v589, %v597
      %v613 = vadd.f32 %v590, %v597
      %v614 = vadd.f32 %v591, %v597
      %v615 = vld [vmem:[%s281] sm:$0x1]
      %vm616 = vcmp.gt.f32.partialorder %v615, 0.5
      %v617 = vmax.f32 %v599, 0.0
      %v618 = vmax.f32 %v600, 0.0
      %v619 = vmax.f32 %v601, 0.0
      %v620 = vmax.f32 %v602, 0.0
      %v621 = vmax.f32 %v603, 0.0
      %v622 = vmax.f32 %v604, 0.0
      %v623 = vmax.f32 %v605, 0.0
      %v624 = vmax.f32 %v606, 0.0
      %v625 = vmax.f32 %v607, 0.0
      %v626 = vmax.f32 %v608, 0.0
      %v627 = vmax.f32 %v609, 0.0
      %v628 = vmax.f32 %v610, 0.0
      %v629 = vmax.f32 %v611, 0.0
      %v630 = vmax.f32 %v612, 0.0
      %v631 = vmax.f32 %v613, 0.0
      %v632 = vmax.f32 %v614, 0.0
      %v633 = vsel %vm616, 1, 0
      %v634 = vlaneseq
      %v635 = vshrl.u32 %v634, 7
      %v636 = vsub.s32 0, %v635
      %v637 = vrot.slane %v633, %v636
      %vm638 = vcmp.eq.s32.totalorder %v637, 1
      %v639 = vsel %vm638, %v617, %v599
      %v640 = vsel %vm638, %v618, %v600
      %v641 = vsel %vm638, %v619, %v601
      %v642 = vsel %vm638, %v620, %v602
      %v643 = vsel %vm638, %v621, %v603
      %v644 = vsel %vm638, %v622, %v604
      %v645 = vsel %vm638, %v623, %v605
      %v646 = vsel %vm638, %v624, %v606
      %v647 = vsel %vm638, %v625, %v607
      %v648 = vsel %vm638, %v626, %v608
      %v649 = vsel %vm638, %v627, %v609
      %v650 = vsel %vm638, %v628, %v610
      %v651 = vsel %vm638, %v629, %v611
      %v652 = vsel %vm638, %v630, %v612
      %v653 = vsel %vm638, %v631, %v613
      %v654 = vsel %vm638, %v632, %v614
      %v655 = vpack.c.bf16 %v640, %v639
      %v656 = vpack.c.bf16 %v642, %v641
      %v657 = vpack.c.bf16 %v644, %v643
      %v658 = vpack.c.bf16 %v646, %v645
      %v659 = vpack.c.bf16 %v648, %v647
      %v660 = vpack.c.bf16 %v650, %v649
      %v661 = vpack.c.bf16 %v652, %v651
      %v662 = vpack.c.bf16 %v654, %v653
      %v671 = vunpack.c.l.b16 %v655
      %v672 = vunpack.c.h.b16 %v655
      %v673 = vunpack.c.l.b16 %v656
      %v674 = vunpack.c.h.b16 %v656
      %v675 = vunpack.c.l.b16 %v657
      %v676 = vunpack.c.h.b16 %v657
      %v677 = vunpack.c.l.b16 %v658
      %v678 = vunpack.c.h.b16 %v658
      %v679 = vunpack.c.l.b16 %v659
      %v680 = vunpack.c.h.b16 %v659
      %v681 = vunpack.c.l.b16 %v660
      %v682 = vunpack.c.h.b16 %v660
      %v683 = vunpack.c.l.b16 %v661
      %v684 = vunpack.c.h.b16 %v661
      %v685 = vunpack.c.l.b16 %v662
      %v686 = vunpack.c.h.b16 %v662
      %v687 = vpack.c.b16 %v671, %v671
      %v688 = vpack.c.b16 %v672, %v672
      %v689 = vpack.c.b16 %v673, %v673
      %v690 = vpack.c.b16 %v674, %v674
      %v691 = vpack.c.b16 %v675, %v675
      %v692 = vpack.c.b16 %v676, %v676
      %v693 = vpack.c.b16 %v677, %v677
      %v694 = vpack.c.b16 %v678, %v678
      %v695 = vpack.c.b16 %v679, %v679
      %v696 = vpack.c.b16 %v680, %v680
      %v697 = vpack.c.b16 %v681, %v681
      %v698 = vpack.c.b16 %v682, %v682
      %v699 = vpack.c.b16 %v683, %v683
      %v700 = vpack.c.b16 %v684, %v684
      %v701 = vpack.c.b16 %v685, %v685
      %v702 = vpack.c.b16 %v686, %v686
      %719 = vst [vmem:[%s286] sm:$0xf] %v687
      %720 = vst [vmem:[%s286 + $0x4] sm:$0xf] %v688
      %721 = vst [vmem:[%s286 + $0x8] sm:$0xf] %v689
      %722 = vst [vmem:[%s286 + $0xc] sm:$0xf] %v690
      %723 = vst [vmem:[%s286 + $0x10] sm:$0xf] %v691
      %724 = vst [vmem:[%s286 + $0x14] sm:$0xf] %v692
      %725 = vst [vmem:[%s286 + $0x18] sm:$0xf] %v693
      %726 = vst [vmem:[%s286 + $0x1c] sm:$0xf] %v694
      %727 = vst [vmem:[%s286 + $0x20] sm:$0xf] %v695
      %728 = vst [vmem:[%s286 + $0x24] sm:$0xf] %v696
      %729 = vst [vmem:[%s286 + $0x28] sm:$0xf] %v697
      %730 = vst [vmem:[%s286 + $0x2c] sm:$0xf] %v698
      %731 = vst [vmem:[%s286 + $0x30] sm:$0xf] %v699
      %732 = vst [vmem:[%s286 + $0x34] sm:$0xf] %v700
      %733 = vst [vmem:[%s286 + $0x38] sm:$0xf] %v701
      %734 = vst [vmem:[%s286 + $0x3c] sm:$0xf] %v702
      %p735 = scmp.lt.s32.totalorder %s16, 3
      %s736 = scalar_select %p735, %s16, 3
      %s737 = smul.addr %s736, 16
      %s738 = smul.addr %s737, 4
      %s739 = scalar_lea.vmem %s5, %s738
      // Predicated region
      $region41: #{forward.10} parent=39 // pred_check
        %p740 = pneg %p164
      $region42: #{forward.10} parent=39 // pred_check_branch
        %742 = sbr.rel (%p740) target = $region44
      $region43: #{forward.10} parent=39 // pred_region
        _
      $region44: #{forward.10} parent=39 // pred_fallthru
        _
    $region40: #{forward.10} parent=5 // pred_fallthru
      _
    %p743 = scmp.le.s32.totalorder 2, %s11
    // Predicated region
    $region45: #{forward.10} parent=5 // pred_check
      %p744 = pneg %p743
    $region46: #{forward.10} parent=5 // pred_check_branch
      %746 = sbr.rel (%p744) target = $region48
    $region47: #{forward.10} parent=5 // pred_region
      %s747 = ssub.s32 %s11, 2
      // Predicated region
      $region49: #{forward.10} parent=47 // pred_check
        %p748 = pneg %p170
      $region50: #{forward.10} parent=47 // pred_check_branch
        %750 = sbr.rel (%p748) target = $region52
      $region51: #{forward.10} parent=47 // pred_region
        %p751 = scmp.lt.s32.totalorder %s17, 3
        %s752 = scalar_select %p751, %s17, 3
        %s753 = smul.addr %s752, 16
        %s754 = smul.addr %s753, 4
        %s755 = scalar_lea.vmem %s5, %s754
      $region52: #{forward.10} parent=47 // pred_fallthru
        _
    $region48: #{forward.10} parent=5 // pred_fallthru
      _
  $region6: #{forward.10} parent=0 // loop_footer
    %s15 = sadd.s32 1, %s11
  $region7: #{forward.10} parent=0 // loop_footer_branch
    %10 = sbr.rel target = $region3
  $region8: #{forward.10} parent=0 // loop_exit
    _

// kernel: forward.11
$region0: #{forward.11}
  #allocation0 [shape = 'u32[]', space=smem, size = 0x4, offset = 0x4, fixed_abs, tag = 'smem constant byte address 0x4 - core index']
  #allocation1 [shape = 'u32[144,128]{1,0:T(1,128)}', space=vmem, size = 0x12000, scoped, tag = 'internal scratch']
  %s0 = inlined_call_operand.vmem [shape: bf16[1,128,16], index: 0, kind: input, shape index: {}]
  %s1 = inlined_call_operand.vmem [shape: bf16[1,16,128], index: 1, kind: input, shape index: {}]
  %s2 = inlined_call_operand.vmem [shape: f32[1,1,128], index: 2, kind: input, shape index: {}]
  %s3 = inlined_call_operand.vmem [shape: f32[1,1,128], index: 3, kind: input, shape index: {}]
  %s4 = inlined_call_operand.vmem [shape: f32[1,1,128], index: 4, kind: input, shape index: {}]
  %s5 = inlined_call_operand.vmem [shape: bf16[1,128,128], index: 5, kind: input, shape index: {}]
  %s6 = inlined_call_operand.hbm [shape: f32[1,128,128], index: 6, kind: output, shape index: {}]
  %s7 = sld [smem:[#allocation0]]
  $region34: #{forward.11} parent=0
    _
  %s9 = ssub.s32 1, %s7
  %s10 = scalar_select 0, %s9, %s7
  $region1: #{forward.11} parent=0
    #allocation2 [shape = 'u8[65536]{0}', space=vmem, size = 0x10000, scoped, tag = 'output window, operand 0, single buffered']
    #allocation3 [shape = 's32[1]{0}', space=sflag, size = 0x4, scoped, tag = 'scoped memory for forward.11']
    %11 = vsyncpa [#allocation3], 0
    // Predicated region
    $region2: #{forward.11} parent=1 // pred_check
      _
    $region3: #{forward.11} parent=1 // pred_check_branch
      %13 = sbr.rel (0) target = $region5
    $region4: #{forward.11} parent=1 // pred_region
      _
    $region5: #{forward.11} parent=1 // pred_fallthru
      _
    // Predicated region
    $region6: #{forward.11} parent=1 // pred_check
      _
    $region7: #{forward.11} parent=1 // pred_check_branch
      %15 = sbr.rel (0) target = $region9
    $region8: #{forward.11} parent=1 // pred_region
      _
    $region9: #{forward.11} parent=1 // pred_fallthru
      _
    // Predicated region
    $region10: #{forward.11} parent=1 // pred_check
      _
    $region11: #{forward.11} parent=1 // pred_check_branch
      %17 = sbr.rel (0) target = $region13
    $region12: #{forward.11} parent=1 // pred_region
      _
    $region13: #{forward.11} parent=1 // pred_fallthru
      _
    // Predicated region
    $region14: #{forward.11} parent=1 // pred_check
      _
    $region15: #{forward.11} parent=1 // pred_check_branch
      %19 = sbr.rel (0) target = $region17
    $region16: #{forward.11} parent=1 // pred_region
      _
    $region17: #{forward.11} parent=1 // pred_fallthru
      _
    // Predicated region
    $region18: #{forward.11} parent=1 // pred_check
      _
    $region19: #{forward.11} parent=1 // pred_check_branch
      %21 = sbr.rel (0) target = $region21
    $region20: #{forward.11} parent=1 // pred_region
      _
    $region21: #{forward.11} parent=1 // pred_fallthru
      _
    // Predicated region
    $region22: #{forward.11} parent=1 // pred_check
      _
    $region23: #{forward.11} parent=1 // pred_check_branch
      %23 = sbr.rel (0) target = $region25
    $region24: #{forward.11} parent=1 // pred_region
      _
    $region25: #{forward.11} parent=1 // pred_fallthru
      _
    %v25 = vld [vmem:[%s0] sm:$0xf]
    %v26 = vld [vmem:[%s0 + $0x4] sm:$0xf]
    %v27 = vld [vmem:[%s0 + $0x8] sm:$0xf]
    %v28 = vld [vmem:[%s0 + $0xc] sm:$0xf]
    %v29 = vld [vmem:[%s0 + $0x10] sm:$0xf]
    %v30 = vld [vmem:[%s0 + $0x14] sm:$0xf]
    %v31 = vld [vmem:[%s0 + $0x18] sm:$0xf]
    %v32 = vld [vmem:[%s0 + $0x1c] sm:$0xf]
    %v33 = vld [vmem:[%s0 + $0x20] sm:$0xf]
    %v34 = vld [vmem:[%s0 + $0x24] sm:$0xf]
    %v35 = vld [vmem:[%s0 + $0x28] sm:$0xf]
    %v36 = vld [vmem:[%s0 + $0x2c] sm:$0xf]
    %v37 = vld [vmem:[%s0 + $0x30] sm:$0xf]
    %v38 = vld [vmem:[%s0 + $0x34] sm:$0xf]
    %v39 = vld [vmem:[%s0 + $0x38] sm:$0xf]
    %v40 = vld [vmem:[%s0 + $0x3c] sm:$0xf]
    %v41 = vld [vmem:[%s1] sm:$0xf]
    %v42 = vld [vmem:[%s1 + $0x4] sm:$0xf]
    %v59 = vunpack.c.l.b16 %v25
    %v60 = vunpack.c.l.b16 %v26
    %v61 = vunpack.c.l.b16 %v27
    %v62 = vunpack.c.l.b16 %v28
    %v63 = vunpack.c.l.b16 %v29
    %v64 = vunpack.c.l.b16 %v30
    %v65 = vunpack.c.l.b16 %v31
    %v66 = vunpack.c.l.b16 %v32
    %v67 = vunpack.c.l.b16 %v33
    %v68 = vunpack.c.l.b16 %v34
    %v69 = vunpack.c.l.b16 %v35
    %v70 = vunpack.c.l.b16 %v36
    %v71 = vunpack.c.l.b16 %v37
    %v72 = vunpack.c.l.b16 %v38
    %v73 = vunpack.c.l.b16 %v39
    %v74 = vunpack.c.l.b16 %v40
    %v75 = vpack.c.b16 %v60, %v59
    %v76 = vpack.c.b16 %v62, %v61
    %v77 = vpack.c.b16 %v64, %v63
    %v78 = vpack.c.b16 %v66, %v65
    %v79 = vpack.c.b16 %v68, %v67
    %v80 = vpack.c.b16 %v70, %v69
    %v81 = vpack.c.b16 %v72, %v71
    %v82 = vpack.c.b16 %v74, %v73
    %v85 = vunpack.c.l.b16 %v41
    %v86 = vunpack.c.l.b16 %v42
    %v87 = vpack.c.b16 %v86, %v85
    %vm89 = vcmask 130048
    %v91 = vsel %vm89, %v75, 0
    %v94 = vsel %vm89, %v76, 0
    %v97 = vsel %vm89, %v77, 0
    %v100 = vsel %vm89, %v78, 0
    %v103 = vsel %vm89, %v79, 0
    %v106 = vsel %vm89, %v80, 0
    %v109 = vsel %vm89, %v81, 0
    %v112 = vsel %vm89, %v82, 0
    %114 = vmatprep.subr.bf16.mxu0 0
    %115 = vmatpush1.bf16.msra.mxu0 %v87
    %116 = vmatprep.subr.bf16.mxu0 0
    %117 = vmatpush1.bf16.msra.mxu0 0
    %118 = vmatprep.subr.bf16.mxu0 0
    %119 = vmatpush1.bf16.msra.mxu0 0
    %120 = vmatprep.subr.bf16.mxu0 0
    %121 = vmatpush1.bf16.msra.mxu0 0
    %122 = vmatprep.subr.bf16.mxu0 0
    %123 = vmatpush1.bf16.msra.mxu0 0
    %124 = vmatprep.subr.bf16.mxu0 0
    %125 = vmatpush1.bf16.msra.mxu0 0
    %126 = vmatprep.subr.bf16.mxu0 0
    %127 = vmatpush1.bf16.msra.mxu0 0
    %128 = vmatprep.subr.bf16.mxu0 0
    %129 = vmatpush1.bf16.msra.mxu0 0
    %130 = vmatprep.subr.bf16.mxu0 0
    %131 = vmatpush1.bf16.msra.mxu0 0
    %132 = vmatprep.subr.bf16.mxu0 0
    %133 = vmatpush1.bf16.msra.mxu0 0
    %134 = vmatprep.subr.bf16.mxu0 0
    %135 = vmatpush1.bf16.msra.mxu0 0
    %136 = vmatprep.subr.bf16.mxu0 0
    %137 = vmatpush1.bf16.msra.mxu0 0
    %138 = vmatprep.subr.bf16.mxu0 0
    %139 = vmatpush1.bf16.msra.mxu0 0
    %140 = vmatprep.subr.bf16.mxu0 0
    %141 = vmatpush1.bf16.msra.mxu0 0
    %142 = vmatprep.subr.bf16.mxu0 0
    %143 = vmatpush1.bf16.msra.mxu0 0
    %144 = vmatprep.subr.bf16.mxu0 0
    %145 = vmatpush1.bf16.msra.mxu0 0
    %146 = vmatprep.mubr.bf16.mxu0 0
    %147 = vmatmul.mubr.bf16.gmra.mrb[0].mxu0 %v91
    %v148 = vpop.f32.mrb[0].mxu0
    %v149 = vadd.f32 0.0, %v148
    %v150 = vpop.f32.mrb[0].mxu0
    %v151 = vpop.f32.mrb[0].mxu0
    %v152 = vadd.f32 0.0, %v151
    %v153 = vpop.f32.mrb[0].mxu0
    %154 = vmatprep.mubr.bf16.mxu0 0
    %155 = vmatmul.mubr.bf16.gmra.mrb[0].mxu0 %v94
    %v156 = vpop.f32.mrb[0].mxu0
    %v157 = vadd.f32 0.0, %v156
    %v158 = vpop.f32.mrb[0].mxu0
    %v159 = vpop.f32.mrb[0].mxu0
    %v160 = vadd.f32 0.0, %v159
    %v161 = vpop.f32.mrb[0].mxu0
    %162 = vmatprep.mubr.bf16.mxu0 0
    %163 = vmatmul.mubr.bf16.gmra.mrb[0].mxu0 %v97
    %v164 = vpop.f32.mrb[0].mxu0
    %v165 = vadd.f32 0.0, %v164
    %v166 = vpop.f32.mrb[0].mxu0
    %v167 = vpop.f32.mrb[0].mxu0
    %v168 = vadd.f32 0.0, %v167
    %v169 = vpop.f32.mrb[0].mxu0
    %170 = vmatprep.mubr.bf16.mxu0 0
    %171 = vmatmul.mubr.bf16.gmra.mrb[0].mxu0 %v100
    %v172 = vpop.f32.mrb[0].mxu0
    %v173 = vadd.f32 0.0, %v172
    %v174 = vpop.f32.mrb[0].mxu0
    %v175 = vpop.f32.mrb[0].mxu0
    %v176 = vadd.f32 0.0, %v175
    %v177 = vpop.f32.mrb[0].mxu0
    %178 = vmatprep.mubr.bf16.mxu0 0
    %179 = vmatmul.mubr.bf16.gmra.mrb[0].mxu0 %v103
    %v180 = vpop.f32.mrb[0].mxu0
    %v181 = vadd.f32 0.0, %v180
    %v182 = vpop.f32.mrb[0].mxu0
    %v183 = vpop.f32.mrb[0].mxu0
    %v184 = vadd.f32 0.0, %v183
    %v185 = vpop.f32.mrb[0].mxu0
    %186 = vmatprep.mubr.bf16.mxu0 0
    %187 = vmatmul.mubr.bf16.gmra.mrb[0].mxu0 %v106
    %v188 = vpop.f32.mrb[0].mxu0
    %v189 = vadd.f32 0.0, %v188
    %v190 = vpop.f32.mrb[0].mxu0
    %v191 = vpop.f32.mrb[0].mxu0
    %v192 = vadd.f32 0.0, %v191
    %v193 = vpop.f32.mrb[0].mxu0
    %194 = vmatprep.mubr.bf16.mxu0 0
    %195 = vmatmul.mubr.bf16.gmra.mrb[0].mxu0 %v109
    %v196 = vpop.f32.mrb[0].mxu0
    %v197 = vadd.f32 0.0, %v196
    %v198 = vpop.f32.mrb[0].mxu0
    %v199 = vpop.f32.mrb[0].mxu0
    %v200 = vadd.f32 0.0, %v199
    %v201 = vpop.f32.mrb[0].mxu0
    %202 = vmatprep.mubr.bf16.mxu0 0
    %203 = vmatmul.mubr.bf16.gmra.mrb[0].mxu0 %v112
    %v204 = vpop.f32.mrb[0].mxu0
    %v205 = vadd.f32 0.0, %v204
    %v206 = vpop.f32.mrb[0].mxu0
    %v207 = vpop.f32.mrb[0].mxu0
    %v208 = vadd.f32 0.0, %v207
    %v209 = vpop.f32.mrb[0].mxu0
    %210 = vdwg.mxu0
    %v211 = vadd.f32 %v149, %v152
    %v212 = vadd.f32 %v211, %v157
    %v213 = vadd.f32 %v212, %v160
    %v214 = vadd.f32 %v213, %v165
    %v215 = vadd.f32 %v214, %v168
    %v216 = vadd.f32 %v215, %v173
    %v217 = vadd.f32 %v216, %v176
    %v218 = vadd.f32 %v217, %v181
    %v219 = vadd.f32 %v218, %v184
    %v220 = vadd.f32 %v219, %v189
    %v221 = vadd.f32 %v220, %v192
    %v222 = vadd.f32 %v221, %v197
    %v223 = vadd.f32 %v222, %v200
    %v224 = vadd.f32 %v223, %v205
    %v225 = vadd.f32 %v224, %v208
    %v226 = vrot.slane %v225, 4
    %v227 = vadd.f32 %v225, %v226
    %v228 = vrot.slane %v227, 2
    %v229 = vadd.f32 %v227, %v228
    %v230 = vrot.slane %v229, 1
    %v231 = vadd.f32 %v229, %v230
    %v232 = vmul.f32 %v231, 0.0078125
    %v233 = vsub.f32 %v149, %v232
    %v234 = vsub.f32 %v152, %v232
    %v235 = vsub.f32 %v157, %v232
    %v236 = vsub.f32 %v160, %v232
    %v237 = vsub.f32 %v165, %v232
    %v238 = vsub.f32 %v168, %v232
    %v239 = vsub.f32 %v173, %v232
    %v240 = vsub.f32 %v176, %v232
    %v241 = vsub.f32 %v181, %v232
    %v242 = vsub.f32 %v184, %v232
    %v243 = vsub.f32 %v189, %v232
    %v244 = vsub.f32 %v192, %v232
    %v245 = vsub.f32 %v197, %v232
    %v246 = vsub.f32 %v200, %v232
    %v247 = vsub.f32 %v205, %v232
    %v248 = vsub.f32 %v208, %v232
    %v249 = vmul.f32 %v233, %v233
    %v250 = vmul.f32 %v234, %v234
    %v251 = vmul.f32 %v235, %v235
    %v252 = vmul.f32 %v236, %v236
    %v253 = vmul.f32 %v237, %v237
    %v254 = vmul.f32 %v238, %v238
    %v255 = vmul.f32 %v239, %v239
    %v256 = vmul.f32 %v240, %v240
    %v257 = vmul.f32 %v241, %v241
    %v258 = vmul.f32 %v242, %v242
    %v259 = vmul.f32 %v243, %v243
    %v260 = vmul.f32 %v244, %v244
    %v261 = vmul.f32 %v245, %v245
    %v262 = vmul.f32 %v246, %v246
    %v263 = vmul.f32 %v247, %v247
    %v264 = vmul.f32 %v248, %v248
    %v265 = vadd.f32 %v249, %v250
    %v266 = vadd.f32 %v265, %v251
    %v267 = vadd.f32 %v266, %v252
    %v268 = vadd.f32 %v267, %v253
    %v269 = vadd.f32 %v268, %v254
    %v270 = vadd.f32 %v269, %v255
    %v271 = vadd.f32 %v270, %v256
    %v272 = vadd.f32 %v271, %v257
    %v273 = vadd.f32 %v272, %v258
    %v274 = vadd.f32 %v273, %v259
    %v275 = vadd.f32 %v274, %v260
    %v276 = vadd.f32 %v275, %v261
    %v277 = vadd.f32 %v276, %v262
    %v278 = vadd.f32 %v277, %v263
    %v279 = vadd.f32 %v278, %v264
    %v280 = vrot.slane %v279, 4
    %v281 = vadd.f32 %v279, %v280
    %v282 = vrot.slane %v281, 2
    %v283 = vadd.f32 %v281, %v282
    %v284 = vrot.slane %v283, 1
    %v285 = vadd.f32 %v283, %v284
    %v286 = vmul.f32 %v285, 0.0078125
    %v287 = vld [vmem:[%s2] sm:$0x1]
    %v288 = vadd.f32 %v286, 1e-05
    %v289 = vrsqrt.pop %v288
    %v290 = vmul.f32 %v287, %v289
    %v292 = vlaneseq
    %v293 = vshrl.u32 %v292, 7
    %v294 = vsub.s32 0, %v293
    %v295 = vrot.slane %v290, %v294
    %v297 = vmul.f32 %v233, %v295
    %v298 = vmul.f32 %v234, %v295
    %v299 = vmul.f32 %v235, %v295
    %v300 = vmul.f32 %v236, %v295
    %v301 = vmul.f32 %v237, %v295
    %v302 = vmul.f32 %v238, %v295
    %v303 = vmul.f32 %v239, %v295
    %v304 = vmul.f32 %v240, %v295
    %v305 = vmul.f32 %v241, %v295
    %v306 = vmul.f32 %v242, %v295
    %v307 = vmul.f32 %v243, %v295
    %v308 = vmul.f32 %v244, %v295
    %v309 = vmul.f32 %v245, %v295
    %v310 = vmul.f32 %v246, %v295
    %v311 = vmul.f32 %v247, %v295
    %v312 = vmul.f32 %v248, %v295
    %v313 = vld [vmem:[%s3] sm:$0x1]
    %v315 = vlaneseq
    %v316 = vshrl.u32 %v315, 7
    %v317 = vsub.s32 0, %v316
    %v318 = vrot.slane %v313, %v317
    %v320 = vadd.f32 %v297, %v318
    %v321 = vadd.f32 %v298, %v318
    %v322 = vadd.f32 %v299, %v318
    %v323 = vadd.f32 %v300, %v318
    %v324 = vadd.f32 %v301, %v318
    %v325 = vadd.f32 %v302, %v318
    %v326 = vadd.f32 %v303, %v318
    %v327 = vadd.f32 %v304, %v318
    %v328 = vadd.f32 %v305, %v318
    %v329 = vadd.f32 %v306, %v318
    %v330 = vadd.f32 %v307, %v318
    %v331 = vadd.f32 %v308, %v318
    %v332 = vadd.f32 %v309, %v318
    %v333 = vadd.f32 %v310, %v318
    %v334 = vadd.f32 %v311, %v318
    %v335 = vadd.f32 %v312, %v318
    %v336 = vld [vmem:[%s4] sm:$0x1]
    %vm337 = vcmp.gt.f32.partialorder %v336, 0.5
    %v338 = vmax.f32 %v320, 0.0
    %v339 = vmax.f32 %v321, 0.0
    %v340 = vmax.f32 %v322, 0.0
    %v341 = vmax.f32 %v323, 0.0
    %v342 = vmax.f32 %v324, 0.0
    %v343 = vmax.f32 %v325, 0.0
    %v344 = vmax.f32 %v326, 0.0
    %v345 = vmax.f32 %v327, 0.0
    %v346 = vmax.f32 %v328, 0.0
    %v347 = vmax.f32 %v329, 0.0
    %v348 = vmax.f32 %v330, 0.0
    %v349 = vmax.f32 %v331, 0.0
    %v350 = vmax.f32 %v332, 0.0
    %v351 = vmax.f32 %v333, 0.0
    %v352 = vmax.f32 %v334, 0.0
    %v353 = vmax.f32 %v335, 0.0
    %v354 = vsel %vm337, 1, 0
    %v355 = vlaneseq
    %v356 = vshrl.u32 %v355, 7
    %v357 = vsub.s32 0, %v356
    %v358 = vrot.slane %v354, %v357
    %vm359 = vcmp.eq.s32.totalorder %v358, 1
    %v360 = vsel %vm359, %v338, %v320
    %v361 = vsel %vm359, %v339, %v321
    %v362 = vsel %vm359, %v340, %v322
    %v363 = vsel %vm359, %v341, %v323
    %v364 = vsel %vm359, %v342, %v324
    %v365 = vsel %vm359, %v343, %v325
    %v366 = vsel %vm359, %v344, %v326
    %v367 = vsel %vm359, %v345, %v327
    %v368 = vsel %vm359, %v346, %v328
    %v369 = vsel %vm359, %v347, %v329
    %v370 = vsel %vm359, %v348, %v330
    %v371 = vsel %vm359, %v349, %v331
    %v372 = vsel %vm359, %v350, %v332
    %v373 = vsel %vm359, %v351, %v333
    %v374 = vsel %vm359, %v352, %v334
    %v375 = vsel %vm359, %v353, %v335
    %v376 = vmul.f32 %v360, 0.1
    %v377 = vmul.f32 %v361, 0.1
    %v378 = vmul.f32 %v362, 0.1
    %v379 = vmul.f32 %v363, 0.1
    %v380 = vmul.f32 %v364, 0.1
    %v381 = vmul.f32 %v365, 0.1
    %v382 = vmul.f32 %v366, 0.1
    %v383 = vmul.f32 %v367, 0.1
    %v384 = vmul.f32 %v368, 0.1
    %v385 = vmul.f32 %v369, 0.1
    %v386 = vmul.f32 %v370, 0.1
    %v387 = vmul.f32 %v371, 0.1
    %v388 = vmul.f32 %v372, 0.1
    %v389 = vmul.f32 %v373, 0.1
    %v390 = vmul.f32 %v374, 0.1
    %v391 = vmul.f32 %v375, 0.1
    %v392 = vld [vmem:[%s5] sm:$0xf]
    %v393 = vld [vmem:[%s5 + $0x4] sm:$0xf]
    %v394 = vld [vmem:[%s5 + $0x8] sm:$0xf]
    %v395 = vld [vmem:[%s5 + $0xc] sm:$0xf]
    %v396 = vld [vmem:[%s5 + $0x10] sm:$0xf]
    %v397 = vld [vmem:[%s5 + $0x14] sm:$0xf]
    %v398 = vld [vmem:[%s5 + $0x18] sm:$0xf]
    %v399 = vld [vmem:[%s5 + $0x1c] sm:$0xf]
    %v400 = vld [vmem:[%s5 + $0x20] sm:$0xf]
    %v401 = vld [vmem:[%s5 + $0x24] sm:$0xf]
    %v402 = vld [vmem:[%s5 + $0x28] sm:$0xf]
    %v403 = vld [vmem:[%s5 + $0x2c] sm:$0xf]
    %v404 = vld [vmem:[%s5 + $0x30] sm:$0xf]
    %v405 = vld [vmem:[%s5 + $0x34] sm:$0xf]
    %v406 = vld [vmem:[%s5 + $0x38] sm:$0xf]
    %v407 = vld [vmem:[%s5 + $0x3c] sm:$0xf]
    %v408 = vunpack.c.l.bf16 %v392
    %v409 = vunpack.c.l.bf16 %v393
    %v410 = vunpack.c.l.bf16 %v394
    %v411 = vunpack.c.l.bf16 %v395
    %v412 = vunpack.c.l.bf16 %v396
    %v413 = vunpack.c.l.bf16 %v397
    %v414 = vunpack.c.l.bf16 %v398
    %v415 = vunpack.c.l.bf16 %v399
    %v416 = vunpack.c.l.bf16 %v400
    %v417 = vunpack.c.l.bf16 %v401
    %v418 = vunpack.c.l.bf16 %v402
    %v419 = vunpack.c.l.bf16 %v403
    %v420 = vunpack.c.l.bf16 %v404
    %v421 = vunpack.c.l.bf16 %v405
    %v422 = vunpack.c.l.bf16 %v406
    %v423 = vunpack.c.l.bf16 %v407
    %v424 = vadd.f32 %v376, %v408
    %v425 = vadd.f32 %v377, %v409
    %v426 = vadd.f32 %v378, %v410
    %v427 = vadd.f32 %v379, %v411
    %v428 = vadd.f32 %v380, %v412
    %v429 = vadd.f32 %v381, %v413
    %v430 = vadd.f32 %v382, %v414
    %v431 = vadd.f32 %v383, %v415
    %v432 = vadd.f32 %v384, %v416
    %v433 = vadd.f32 %v385, %v417
    %v434 = vadd.f32 %v386, %v418
    %v435 = vadd.f32 %v387, %v419
    %v436 = vadd.f32 %v388, %v420
    %v437 = vadd.f32 %v389, %v421
    %v438 = vadd.f32 %v390, %v422
    %v439 = vadd.f32 %v391, %v423
    %v440 = vmax.f32 %v424, 0.0
    %v441 = vmax.f32 %v425, 0.0
    %v442 = vmax.f32 %v426, 0.0
    %v443 = vmax.f32 %v427, 0.0
    %v444 = vmax.f32 %v428, 0.0
    %v445 = vmax.f32 %v429, 0.0
    %v446 = vmax.f32 %v430, 0.0
    %v447 = vmax.f32 %v431, 0.0
    %v448 = vmax.f32 %v432, 0.0
    %v449 = vmax.f32 %v433, 0.0
    %v450 = vmax.f32 %v434, 0.0
    %v451 = vmax.f32 %v435, 0.0
    %v452 = vmax.f32 %v436, 0.0
    %v453 = vmax.f32 %v437, 0.0
    %v454 = vmax.f32 %v438, 0.0
    %v455 = vmax.f32 %v439, 0.0
    %456 = vst [vmem:[#allocation2] sm:$0xff] %v440
    %457 = vst [vmem:[#allocation2 + $0x8] sm:$0xff] %v441
    %458 = vst [vmem:[#allocation2 + $0x10] sm:$0xff] %v442
    %459 = vst [vmem:[#allocation2 + $0x18] sm:$0xff] %v443
    %460 = vst [vmem:[#allocation2 + $0x20] sm:$0xff] %v444
    %461 = vst [vmem:[#allocation2 + $0x28] sm:$0xff] %v445
    %462 = vst [vmem:[#allocation2 + $0x30] sm:$0xff] %v446
    %463 = vst [vmem:[#allocation2 + $0x38] sm:$0xff] %v447
    %464 = vst [vmem:[#allocation2 + $0x40] sm:$0xff] %v448
    %465 = vst [vmem:[#allocation2 + $0x48] sm:$0xff] %v449
    %466 = vst [vmem:[#allocation2 + $0x50] sm:$0xff] %v450
    %467 = vst [vmem:[#allocation2 + $0x58] sm:$0xff] %v451
    %468 = vst [vmem:[#allocation2 + $0x60] sm:$0xff] %v452
    %469 = vst [vmem:[#allocation2 + $0x68] sm:$0xff] %v453
    %470 = vst [vmem:[#allocation2 + $0x70] sm:$0xff] %v454
    %471 = vst [vmem:[#allocation2 + $0x78] sm:$0xff] %v455
    // Predicated region
    $region26: #{forward.11} parent=1 // pred_check
      _
    $region27: #{forward.11} parent=1 // pred_check_branch
      %473 = sbr.rel (0) target = $region29
    $region28: #{forward.11} parent=1 // pred_region
      %s475 = ssub.s32 2048, 2048
      %476 = vsyncadd [#allocation3], %s475
      %s477 = sshll.u32 [#allocation2], 4
      %s478 = int_to_ptr.vmem [resolvable:$true] %s477
      %483 = dma.vmem_to_hbm [thread:$0]  %s478, 2048, %s6, [#allocation3], 128, 128, 8
    $region29: #{forward.11} parent=1 // pred_fallthru
      _
    // Predicated region
    $region30: #{forward.11} parent=1 // pred_check
      _
    $region31: #{forward.11} parent=1 // pred_check_branch
      %485 = sbr.rel (0) target = $region33
    $region32: #{forward.11} parent=1 // pred_region
      %486 = dma.done [#allocation3], 2048
    $region33: #{forward.11} parent=1 // pred_fallthru
      _
    %487 = vsyncpa [#allocation3], 1

</llo_original>
